<compile_context>
chip_gen: v6e
topology: v6e:2x2x1
jax: 0.10.0
libtpu: 0.0.40
codegen_flags: <defaults>
</compile_context>

<pallas_src>
import functools

import jax
import jax.numpy as jnp
import numpy as np
from jax.experimental import pallas as pl
from jax.experimental.pallas import tpu as pltpu


# ---------------------------------------------------------------------------
# per-generation VMEM budgeting
# ---------------------------------------------------------------------------

@functools.lru_cache(maxsize=None)
def _vmem_plan():
    """Returns (chunk_budget_bytes, vmem_limit_bytes) derived from the chip's VMEM.

    v5e/v6e have 128 MiB VMEM -> large chunks; v7x has 64 MiB -> stay under ~48 MiB.
    Falls back to the conservative (v7x-safe) numbers if the query is unavailable."""
    cap = 64 * 1024 * 1024                       # conservative default == v7x per-TC VMEM
    try:
        cap = int(pltpu.get_tpu_info().vmem_capacity_bytes)
    except Exception:
        pass
    limit = max(32 * 1024 * 1024, min(cap - (16 << 20), 100 * 1024 * 1024))
    budget = max(8 * 1024 * 1024, limit - (12 << 20))   # headroom for weights (2x) + state
    return budget, limit


# ---------------------------------------------------------------------------
# fused bidirectional LSTM layer kernel (optionally with fused fc_mu/fc_logvar)
# ---------------------------------------------------------------------------

def _bilstm_kernel(*refs, batch, unroll, last):
    """One time-chunk of a fused forward+backward LSTM layer.

    Rows are time-major: row = t * batch + b.  Forward x/out blocks walk chunks
    0,1,... while backward blocks walk nc-1, nc-2, ... (via the BlockSpec index_maps);
    inside the kernel the backward direction processes its chunk back-to-front.
    Gate order matches PyTorch: [i, f, g, o]; bias = b_ih + b_hh is pre-combined.
    h is carried in bf16 and c in f32 inside the fori_loop carry (vregs); the VMEM
    state scratch is touched only once per chunk for the cross-chunk hand-off.
    When `last` is set, the kernel emits only [h_fwd(T-1)|h_bwd(T-1)] @ W_head + b_head.
    """
    if last:
        (xaf_ref, xbf_ref, xab_ref, xbb_ref,
         wAf_ref, wBf_ref, wAb_ref, wBb_ref,
         whf_ref, whb_ref, bf_ref, bb_ref,
         wh_ref, bh_ref,
         head_ref,
         gxf_scr, gxb_scr, hf_scr, cf_scr, hb_scr, cb_scr, hbT_scr) = refs
        outf_ref = outb_ref = None
    else:
        (xaf_ref, xbf_ref, xab_ref, xbb_ref,
         wAf_ref, wBf_ref, wAb_ref, wBb_ref,
         whf_ref, whb_ref, bf_ref, bb_ref,
         outf_ref, outb_ref,
         gxf_scr, gxb_scr, hf_scr, cf_scr, hb_scr, cb_scr) = refs

    rows = xaf_ref.shape[0]
    tc = rows // batch                      # timesteps in this chunk
    H = hf_scr.shape[1]

    # Zero the recurrent state once at the first grid step; scratch persists across
    # the sequential time-chunk axis.
    @pl.when(pl.program_id(0) == 0)
    def _init():
        hf_scr[...] = jnp.zeros_like(hf_scr)
        cf_scr[...] = jnp.zeros_like(cf_scr)
        hb_scr[...] = jnp.zeros_like(hb_scr)
        cb_scr[...] = jnp.zeros_like(cb_scr)

    # ---- hoisted input projection: one big bf16 MXU matmul per direction/chunk ----
    # (bias folded in, so the serial loop below is a small matmul + elementwise only)
    gxf_scr[...] = (
        jnp.dot(xaf_ref[...], wAf_ref[...], preferred_element_type=jnp.float32)
        + jnp.dot(xbf_ref[...], wBf_ref[...], preferred_element_type=jnp.float32)
        + bf_ref[...])
    gxb_scr[...] = (
        jnp.dot(xab_ref[...], wAb_ref[...], preferred_element_type=jnp.float32)
        + jnp.dot(xbb_ref[...], wBb_ref[...], preferred_element_type=jnp.float32)
        + bb_ref[...])

    whf = whf_ref[...]                      # (H, 4H) bf16, loop-invariant
    whb = whb_ref[...]
    # TODO(synk): try pltpu.matmul_push_rhs / matmul_acc_lhs to hold W_hh resident in the
    # MXU across the unrolled steps (measure on hardware before committing).

    def _cell(g, c_prev):
        # All elementwise gate math stays in f32 (v5e VPU/EUP have no bf16 path).
        i = jax.nn.sigmoid(g[:, 0 * H:1 * H])
        f = jax.nn.sigmoid(g[:, 1 * H:2 * H])
        gg = jnp.tanh(g[:, 2 * H:3 * H])
        o = jax.nn.sigmoid(g[:, 3 * H:4 * H])
        c = f * c_prev + i * gg
        h = (o * jnp.tanh(c)).astype(jnp.bfloat16)   # single bf16 cast: reused for matmul & store
        return h, c

    def step(t, carry):
        if last:
            hf, cf, hb, cb, hbT = carry
        else:
            hf, cf, hb, cb = carry
        tb = tc - 1 - t
        rf = pl.multiple_of(t * batch, batch)
        rb = pl.multiple_of(tb * batch, batch)

        # forward direction (natural time order within this chunk)
        gf = gxf_scr[pl.ds(rf, batch), :] + jnp.dot(
            hf, whf, preferred_element_type=jnp.float32)
        hf, cf = _cell(gf, cf)

        # backward direction (chunk order already reversed by the index_map, so walking
        # local index tb back-to-front gives global times T-1 .. 0)
        gb = gxb_scr[pl.ds(rb, batch), :] + jnp.dot(
            hb, whb, preferred_element_type=jnp.float32)
        hb, cb = _cell(gb, cb)

        if last:
            # h_bwd at global time T-1 is produced at (program_id==0, local t==0)
            hbT = jnp.where(t == 0, hb, hbT)
            return hf, cf, hb, cb, hbT
        outf_ref[pl.ds(rf, batch), :] = hf
        outb_ref[pl.ds(rb, batch), :] = hb
        return hf, cf, hb, cb

    init = (hf_scr[...], cf_scr[...], hb_scr[...], cb_scr[...])
    if last:
        init = init + (jnp.zeros((batch, H), jnp.bfloat16),)

    # TODO(synk): re-sweep the unroll factor on hardware (check bundle dump for vreg spills).
    carry = jax.lax.fori_loop(0, tc, step, init, unroll=unroll)
    hf, cf, hb, cb = carry[0], carry[1], carry[2], carry[3]

    # single cross-chunk state hand-off (instead of per-timestep VMEM round-trips)
    hf_scr[...] = hf
    cf_scr[...] = cf
    hb_scr[...] = hb
    cb_scr[...] = cb

    if last:
        @pl.when(pl.program_id(0) == 0)
        def _save_hbT():
            hbT_scr[...] = carry[4]          # h_bwd(T-1), persists to the final grid step

        @pl.when(pl.program_id(0) == pl.num_programs(0) - 1)
        def _fused_heads():
            # [h_fwd(T-1) | h_bwd(T-1)] @ [W_mu | W_logvar]^T + bias, done as a row-split
            # matmul to avoid a lane-dim concat inside the kernel.
            head_ref[...] = (
                jnp.dot(hf, wh_ref[0:H, :], preferred_element_type=jnp.float32)
                + jnp.dot(hbT_scr[...], wh_ref[H:, :], preferred_element_type=jnp.float32)
                + bh_ref[...])


def _pick_time_chunk(T, B, da, db, H, max_chunk, budget_bytes, with_out=True):
    """Largest time-chunk (divisor of T, chunk*B rows divisible by 8 or == T*B) whose
    chunk-scaled VMEM footprint (double-buffered bf16 x/out blocks + f32 gate scratch)
    stays under budget_bytes (budget derived per chip in _vmem_plan)."""
    def chunk_bytes(c):
        x_b = c * B * (da + db) * 2 * 2 * 2        # fwd+bwd orderings, bf16, 2x buffers
        o_b = c * B * (2 * H) * 2 * 2 if with_out else 0   # fwd+bwd outputs, bf16, 2x buffers
        g_b = c * B * (8 * H) * 4                  # f32 gate pre-activation scratch
        return x_b + o_b + g_b

    candidates = [c for c in range(1, T + 1)
                  if T % c == 0 and ((c * B) % 8 == 0 or c == T)]
    good = [c for c in candidates if c <= max_chunk and chunk_bytes(c) <= budget_bytes]
    if good:
        return max(good)
    return min(candidates)


def _bilstm_layer(xa, xb, layer, batch, max_chunk, head=None):
    """Run one fused bidirectional LSTM layer.  If `head` = (w_head, b_head) this is the
    final layer: only the last-timestep output is produced, with fc_mu/fc_logvar fused."""
    rows, da = xa.shape
    db = xb.shape[1]
    H = layer["whh_f"].shape[0]
    T = rows // batch
    budget, vmem_limit = _vmem_plan()
    tc = _pick_time_chunk(T, batch, da, db, H, max_chunk, budget, with_out=head is None)
    nc = T // tc
    unroll = True if tc <= 8 else 8
    blk = tc * batch

    fwd_map = lambda i: (i, 0)
    bwd_map = lambda i: (nc - 1 - i, 0)
    w_map = lambda i: (0, 0)

    # TODO(synk): loop-invariant weight blocks could be single-buffered
    # (pipeline_mode=pl.Buffered(1)) to free ~weights-sized VMEM for a larger time chunk.
    in_specs = [
        pl.BlockSpec((blk, da), fwd_map),            # x half A, forward chunk order
        pl.BlockSpec((blk, db), fwd_map),            # x half B, forward chunk order
        pl.BlockSpec((blk, da), bwd_map),            # same arrays, reversed chunk order
        pl.BlockSpec((blk, db), bwd_map),
        pl.BlockSpec(layer["wA_f"].shape, w_map),
        pl.BlockSpec(layer["wB_f"].shape, w_map),
        pl.BlockSpec(layer["wA_b"].shape, w_map),
        pl.BlockSpec(layer["wB_b"].shape, w_map),
        pl.BlockSpec(layer["whh_f"].shape, w_map),
        pl.BlockSpec(layer["whh_b"].shape, w_map),
        pl.BlockSpec(layer["bias_f"].shape, w_map),
        pl.BlockSpec(layer["bias_b"].shape, w_map),
    ]
    args = [xa, xb, xa, xb,
            layer["wA_f"], layer["wB_f"], layer["wA_b"], layer["wB_b"],
            layer["whh_f"], layer["whh_b"], layer["bias_f"], layer["bias_b"]]
    scratch_shapes = [
        pltpu.VMEM((blk, 4 * H), jnp.float32),       # fwd gate pre-activations
        pltpu.VMEM((blk, 4 * H), jnp.float32),       # bwd gate pre-activations
        pltpu.VMEM((batch, H), jnp.bfloat16),        # h_fwd  (bf16-only state)
        pltpu.VMEM((batch, H), jnp.float32),         # c_fwd
        pltpu.VMEM((batch, H), jnp.bfloat16),        # h_bwd
        pltpu.VMEM((batch, H), jnp.float32),         # c_bwd
    ]

    if head is None:
        out_specs = [
            pl.BlockSpec((blk, H), fwd_map),         # forward hidden states
            pl.BlockSpec((blk, H), bwd_map),         # backward hidden states (natural time order)
        ]
        out_shape = (jax.ShapeDtypeStruct((rows, H), jnp.bfloat16),
                     jax.ShapeDtypeStruct((rows, H), jnp.bfloat16))
    else:
        w_head, b_head = head
        in_specs += [pl.BlockSpec(w_head.shape, w_map),
                     pl.BlockSpec(b_head.shape, w_map)]
        args += [w_head, b_head]
        out_specs = pl.BlockSpec((batch, b_head.shape[1]), w_map)   # (B, 2*latent), resident
        out_shape = jax.ShapeDtypeStruct((batch, b_head.shape[1]), jnp.float32)
        scratch_shapes.append(pltpu.VMEM((batch, H), jnp.bfloat16))  # h_bwd(T-1) hand-off

    # TODO(synk): on v7x (2 TensorCores) the independent fwd/bwd directions could be split
    # across cores with pl.core_map over pltpu.create_tensorcore_mesh; kept single-core here
    # so the identical kernel is also correct/optimal on v5e/v6e (1 TC).
    return pl.pallas_call(
        functools.partial(_bilstm_kernel, batch=batch, unroll=unroll, last=head is not None),
        out_shape=out_shape,
        grid=(nc,),
        in_specs=in_specs,
        out_specs=out_specs,
        scratch_shapes=scratch_shapes,
        compiler_params=pltpu.CompilerParams(
            dimension_semantics=("arbitrary",),      # recurrent state carries across chunks
            vmem_limit_bytes=vmem_limit),
    )(*args)


# ---------------------------------------------------------------------------
# forward pass
# ---------------------------------------------------------------------------

@functools.partial(jax.jit, static_argnames=("max_time_chunk",))
def vae_encoder_forward(token_ids, params, max_time_chunk=256):
    """token_ids: (B, T) int32  ->  (mu, log_var), each (B, latent_dim) float32."""
    B0, T = token_ids.shape
    # Pad batch to a sublane multiple (8): unmasked per-step stores + aligned MXU rows.
    B = ((B0 + 7) // 8) * 8
    if B != B0:
        token_ids = jnp.pad(token_ids, ((0, B - B0), (0, 0)))

    emb = jnp.take(params["embedding"], token_ids, axis=0)          # (B, T, E) bf16 gather (glue)
    x = jnp.transpose(emb, (1, 0, 2)).reshape(T * B, -1)            # time-major rows (bf16 glue)
    x = x.astype(jnp.bfloat16)
    E = x.shape[-1]
    xa, xb = x[:, :E // 2], x[:, E // 2:]                           # layer-0 input halves

    for layer in params["lstm_layers"][:-1]:
        xa, xb = _bilstm_layer(xa, xb, layer, B, max_time_chunk)    # halves feed next layer directly

    # Final layer: emits only [h_fwd(T-1) | h_bwd(T-1)] with fc_mu / fc_logvar fused in.
    head = _bilstm_layer(xa, xb, params["lstm_layers"][-1], B, max_time_chunk,
                         head=(params["w_head"], params["b_head"]))  # (B, 2L) f32
    L = head.shape[1] // 2
    return head[:B0, :L], head[:B0, L:]


# ---------------------------------------------------------------------------
# deterministic parameters (PyTorch-equivalent init, repacked for the kernels)
# ---------------------------------------------------------------------------

def make_params(key, vocab_size, embedding_dim, hidden, latent, num_layers):
    keys = iter(jax.random.split(key, 5 + num_layers * 8))

    def uni(k, shape, scale):
        return jax.random.uniform(k, shape, jnp.float32, -scale, scale)

    # embedding kept in bf16 so the gather + time-major transpose glue is bf16 end-to-end
    params = {"embedding": jax.random.normal(
        next(keys), (vocab_size, embedding_dim), jnp.float32).astype(jnp.bfloat16)}

    s = 1.0 / (hidden ** 0.5)
    layers = []
    for l in range(num_layers):
        din = embedding_dim if l == 0 else 2 * hidden
        split = din // 2                     # layer 0: E split in half; l>0: fwd-half | bwd-half
        layer = {}
        for d in ("f", "b"):
            w_ih = uni(next(keys), (4 * hidden, din), s)        # PyTorch (4H, Din)
            w_hh = uni(next(keys), (4 * hidden, hidden), s)     # PyTorch (4H, H)
            b_ih = uni(next(keys), (4 * hidden,), s)
            b_hh = uni(next(keys), (4 * hidden,), s)
            wt = jnp.transpose(w_ih)                            # (Din, 4H)
            layer[f"wA_{d}"] = wt[:split].astype(jnp.bfloat16)  # rows for input half A
            layer[f"wB_{d}"] = wt[split:].astype(jnp.bfloat16)  # rows for input half B
            layer[f"whh_{d}"] = jnp.transpose(w_hh).astype(jnp.bfloat16)   # (H, 4H)
            layer[f"bias_{d}"] = (b_ih + b_hh).reshape(1, 4 * hidden)      # f32
        layers.append(layer)
    params["lstm_layers"] = layers

    sl = 1.0 / ((2 * hidden) ** 0.5)
    w_mu = uni(next(keys), (latent, 2 * hidden), sl)
    w_lv = uni(next(keys), (latent, 2 * hidden), sl)
    b_mu = uni(next(keys), (latent,), sl)
    b_lv = uni(next(keys), (latent,), sl)
    params["w_head"] = jnp.concatenate([w_mu.T, w_lv.T], axis=1).astype(jnp.bfloat16)  # (2H, 2L)
    params["b_head"] = jnp.concatenate([b_mu, b_lv]).reshape(1, 2 * latent)            # f32
    return params


# ---------------------------------------------------------------------------
# plain-JAX reference (same dtype policy) for a correctness check
# ---------------------------------------------------------------------------

@jax.jit
def _reference_forward(token_ids, params):
    emb = jnp.take(params["embedding"], token_ids, axis=0)
    x = jnp.transpose(emb, (1, 0, 2)).astype(jnp.bfloat16)          # (T, B, E)
    T, B, E = x.shape

    def run_dir(xs, wih, whh, bias, H):
        def step(carry, x_t):
            h, c = carry
            g = (jnp.dot(x_t, wih, preferred_element_type=jnp.float32)
                 + jnp.dot(h.astype(jnp.bfloat16), whh,
                           preferred_element_type=jnp.float32)
                 + bias)
            i = jax.nn.sigmoid(g[:, :H])
            f = jax.nn.sigmoid(g[:, H:2 * H])
            gg = jnp.tanh(g[:, 2 * H:3 * H])
            o = jax.nn.sigmoid(g[:, 3 * H:])
            c = f * c + i * gg
            h = o * jnp.tanh(c)
            return (h, c), h.astype(jnp.bfloat16)
        init = (jnp.zeros((B, H), jnp.float32), jnp.zeros((B, H), jnp.float32))
        _, ys = jax.lax.scan(step, init, xs)
        return ys

    cur_a, cur_b = x[..., :E // 2], x[..., E // 2:]
    for layer in params["lstm_layers"]:
        H = layer["whh_f"].shape[0]
        xs = jnp.concatenate([cur_a, cur_b], axis=-1)
        wih_f = jnp.concatenate([layer["wA_f"], layer["wB_f"]], axis=0)
        wih_b = jnp.concatenate([layer["wA_b"], layer["wB_b"]], axis=0)
        y_f = run_dir(xs, wih_f, layer["whh_f"], layer["bias_f"], H)
        y_b = jnp.flip(run_dir(jnp.flip(xs, 0), wih_b,
                               layer["whh_b"], layer["bias_b"], H), 0)
        cur_a, cur_b = y_f, y_b

    last = jnp.concatenate([cur_a[-1], cur_b[-1]], axis=-1)
    head = (jnp.dot(last, params["w_head"], preferred_element_type=jnp.float32)
            + params["b_head"])
    L = head.shape[1] // 2
    return head[:, :L], head[:, L:]


# ---------------------------------------------------------------------------
# main
# ---------------------------------------------------------------------------

if __name__ == "__main__":
    # Small shapes consistent with the module structure (scaled-down hyperparams).
    BATCH = 2
    SEQ = 8
    VOCAB = 50
    EMBED = 32          # embedding_dim
    HIDDEN = 32         # intermediate_dim
    LATENT = 16         # latent_dim
    NUM_LAYERS = 2      # module default is 10; scaled down for the synthetic test

    key = jax.random.PRNGKey(0)
    k_tok, k_par = jax.random.split(key)

    token_ids = jax.random.randint(k_tok, (BATCH, SEQ), 0, VOCAB, dtype=jnp.int32)
    params = make_params(k_par, VOCAB, EMBED, HIDDEN, LATENT, NUM_LAYERS)

    # max_time_chunk=4 -> 2 time-chunks per layer, exercising the pipelined grid, the
    # cross-chunk recurrent-state carry, and the final-layer hbT hand-off across chunks.
    mu, log_var = vae_encoder_forward(token_ids, params, max_time_chunk=4)
    jax.block_until_ready((mu, log_var))

    assert mu.shape == (BATCH, LATENT) and log_var.shape == (BATCH, LATENT)
    assert mu.dtype == jnp.float32 and log_var.dtype == jnp.float32

    # correctness check against a plain-JAX reference with the same dtype policy
    ref_mu, ref_lv = _reference_forward(token_ids, params)
    np.testing.assert_allclose(np.asarray(mu), np.asarray(ref_mu), rtol=2e-2, atol=2e-2)
    np.testing.assert_allclose(np.asarray(log_var), np.asarray(ref_lv), rtol=2e-2, atol=2e-2)

    print("KERNEL_OK")
</pallas_src>

<mosaic_0001>
module attributes {stable_mosaic.version = 11 : i64} {
  func.func @_bilstm_kernel(%arg0: i32, %arg1: memref<32x32xbf16, #tpu.memory_space<vmem>>, %arg2: memref<32x32xbf16, #tpu.memory_space<vmem>>, %arg3: memref<32x32xbf16, #tpu.memory_space<vmem>>, %arg4: memref<32x32xbf16, #tpu.memory_space<vmem>>, %arg5: memref<32x128xbf16, #tpu.memory_space<vmem>>, %arg6: memref<32x128xbf16, #tpu.memory_space<vmem>>, %arg7: memref<32x128xbf16, #tpu.memory_space<vmem>>, %arg8: memref<32x128xbf16, #tpu.memory_space<vmem>>, %arg9: memref<32x128xbf16, #tpu.memory_space<vmem>>, %arg10: memref<32x128xbf16, #tpu.memory_space<vmem>>, %arg11: memref<1x128xf32, #tpu.memory_space<vmem>>, %arg12: memref<1x128xf32, #tpu.memory_space<vmem>>, %arg13: memref<64x32xbf16, #tpu.memory_space<vmem>>, %arg14: memref<1x32xf32, #tpu.memory_space<vmem>>, %arg15: memref<8x32xf32, #tpu.memory_space<vmem>>, %arg16: memref<32x128xf32, #tpu.memory_space<vmem>>, %arg17: memref<32x128xf32, #tpu.memory_space<vmem>>, %arg18: memref<8x32xbf16, #tpu.memory_space<vmem>>, %arg19: memref<8x32xf32, #tpu.memory_space<vmem>>, %arg20: memref<8x32xbf16, #tpu.memory_space<vmem>>, %arg21: memref<8x32xf32, #tpu.memory_space<vmem>>, %arg22: memref<8x32xbf16, #tpu.memory_space<vmem>>) attributes {dimension_semantics = [#tpu.dimension_semantics<arbitrary>], iteration_bounds = array<i64: 2>, scalar_prefetch = 0 : i64, scratch_operands = 7 : i64, tpu.core_type = #tpu.core_type<tc>, window_params = [{transform_indices = @transform_0, window_bounds = array<i64: 32, 32>}, {transform_indices = @transform_1, window_bounds = array<i64: 32, 32>}, {transform_indices = @transform_2, window_bounds = array<i64: 32, 32>}, {transform_indices = @transform_3, window_bounds = array<i64: 32, 32>}, {pipeline_mode = #tpu.pipeline_mode<synchronous>, transform_indices = @transform_4, window_bounds = array<i64: 32, 128>}, {pipeline_mode = #tpu.pipeline_mode<synchronous>, transform_indices = @transform_5, window_bounds = array<i64: 32, 128>}, {pipeline_mode = #tpu.pipeline_mode<synchronous>, transform_indices = @transform_6, window_bounds = array<i64: 32, 128>}, {pipeline_mode = #tpu.pipeline_mode<synchronous>, transform_indices = @transform_7, window_bounds = array<i64: 32, 128>}, {pipeline_mode = #tpu.pipeline_mode<synchronous>, transform_indices = @transform_8, window_bounds = array<i64: 32, 128>}, {pipeline_mode = #tpu.pipeline_mode<synchronous>, transform_indices = @transform_9, window_bounds = array<i64: 32, 128>}, {pipeline_mode = #tpu.pipeline_mode<synchronous>, transform_indices = @transform_10, window_bounds = array<i64: 1, 128>}, {pipeline_mode = #tpu.pipeline_mode<synchronous>, transform_indices = @transform_11, window_bounds = array<i64: 1, 128>}, {pipeline_mode = #tpu.pipeline_mode<synchronous>, transform_indices = @transform_12, window_bounds = array<i64: 64, 32>}, {pipeline_mode = #tpu.pipeline_mode<synchronous>, transform_indices = @transform_13, window_bounds = array<i64: 1, 32>}, {pipeline_mode = #tpu.pipeline_mode<synchronous>, transform_indices = @transform_14, window_bounds = array<i64: 8, 32>}]} {
    %c0_i32 = arith.constant 0 : i32
    %0 = arith.cmpi eq, %arg0, %c0_i32 : i32
    %1 = arith.extui %0 : i1 to i32
    %c0_i32_0 = arith.constant 0 : i32
    %2 = arith.cmpi ne, %1, %c0_i32_0 : i32
    scf.if %2 {
      %cst_108 = arith.constant 0.000000e+00 : bf16
      %310 = vector.broadcast %cst_108 : bf16 to vector<8x32xbf16>
      %c0_109 = arith.constant 0 : index
      %c0_110 = arith.constant 0 : index
      %311 = vector.load %arg18[%c0_109, %c0_110] : memref<8x32xbf16, #tpu.memory_space<vmem>>, vector<8x32xbf16>
      tpu.vector_store %arg18[%c0_109, %c0_110], %310 {strides = array<i32>} : memref<8x32xbf16, #tpu.memory_space<vmem>>, vector<8x32xbf16>,
      %cst_111 = arith.constant 0.000000e+00 : f32
      %312 = vector.broadcast %cst_111 : f32 to vector<8x32xf32>
      %c0_112 = arith.constant 0 : index
      %c0_113 = arith.constant 0 : index
      %313 = vector.load %arg19[%c0_112, %c0_113] : memref<8x32xf32, #tpu.memory_space<vmem>>, vector<8x32xf32>
      tpu.vector_store %arg19[%c0_112, %c0_113], %312 {strides = array<i32>} : memref<8x32xf32, #tpu.memory_space<vmem>>, vector<8x32xf32>,
      %cst_114 = arith.constant 0.000000e+00 : bf16
      %314 = vector.broadcast %cst_114 : bf16 to vector<8x32xbf16>
      %c0_115 = arith.constant 0 : index
      %c0_116 = arith.constant 0 : index
      %315 = vector.load %arg20[%c0_115, %c0_116] : memref<8x32xbf16, #tpu.memory_space<vmem>>, vector<8x32xbf16>
      tpu.vector_store %arg20[%c0_115, %c0_116], %314 {strides = array<i32>} : memref<8x32xbf16, #tpu.memory_space<vmem>>, vector<8x32xbf16>,
      %cst_117 = arith.constant 0.000000e+00 : f32
      %316 = vector.broadcast %cst_117 : f32 to vector<8x32xf32>
      %c0_118 = arith.constant 0 : index
      %c0_119 = arith.constant 0 : index
      %317 = vector.load %arg21[%c0_118, %c0_119] : memref<8x32xf32, #tpu.memory_space<vmem>>, vector<8x32xf32>
      tpu.vector_store %arg21[%c0_118, %c0_119], %316 {strides = array<i32>} : memref<8x32xf32, #tpu.memory_space<vmem>>, vector<8x32xf32>,
    } else {
    }
    %c0 = arith.constant 0 : index
    %c0_1 = arith.constant 0 : index
    %3 = vector.load %arg1[%c0, %c0_1] : memref<32x32xbf16, #tpu.memory_space<vmem>>, vector<32x32xbf16>
    %c0_2 = arith.constant 0 : index
    %c0_3 = arith.constant 0 : index
    %4 = vector.load %arg5[%c0_2, %c0_3] : memref<32x128xbf16, #tpu.memory_space<vmem>>, vector<32x128xbf16>
    %cst = arith.constant dense<0.000000e+00> : vector<32x128xf32>
    %5 = tpu.matmul %3, %4, %cst {dimension_numbers = #tpu.dot_dimension_numbers<[1], [0], [0], [1], [0, 0, 1, 1], [], []>} : vector<32x32xbf16>, vector<32x128xbf16>, vector<32x128xf32> -> vector<32x128xf32>
    %c0_4 = arith.constant 0 : index
    %c0_5 = arith.constant 0 : index
    %6 = vector.load %arg2[%c0_4, %c0_5] : memref<32x32xbf16, #tpu.memory_space<vmem>>, vector<32x32xbf16>
    %c0_6 = arith.constant 0 : index
    %c0_7 = arith.constant 0 : index
    %7 = vector.load %arg6[%c0_6, %c0_7] : memref<32x128xbf16, #tpu.memory_space<vmem>>, vector<32x128xbf16>
    %cst_8 = arith.constant dense<0.000000e+00> : vector<32x128xf32>
    %8 = tpu.matmul %6, %7, %cst_8 {dimension_numbers = #tpu.dot_dimension_numbers<[1], [0], [0], [1], [0, 0, 1, 1], [], []>} : vector<32x32xbf16>, vector<32x128xbf16>, vector<32x128xf32> -> vector<32x128xf32>
    %9 = arith.addf %5, %8 : vector<32x128xf32>
    %c0_9 = arith.constant 0 : index
    %c0_10 = arith.constant 0 : index
    %10 = vector.load %arg11[%c0_9, %c0_10] : memref<1x128xf32, #tpu.memory_space<vmem>>, vector<1x128xf32>
    %11 = vector.broadcast %10 : vector<1x128xf32> to vector<32x128xf32>
    %12 = arith.addf %9, %11 : vector<32x128xf32>
    %c0_11 = arith.constant 0 : index
    %c0_12 = arith.constant 0 : index
    %13 = vector.load %arg16[%c0_11, %c0_12] : memref<32x128xf32, #tpu.memory_space<vmem>>, vector<32x128xf32>
    tpu.vector_store %arg16[%c0_11, %c0_12], %12 {strides = array<i32>} : memref<32x128xf32, #tpu.memory_space<vmem>>, vector<32x128xf32>,
    %c0_13 = arith.constant 0 : index
    %c0_14 = arith.constant 0 : index
    %14 = vector.load %arg3[%c0_13, %c0_14] : memref<32x32xbf16, #tpu.memory_space<vmem>>, vector<32x32xbf16>
    %c0_15 = arith.constant 0 : index
    %c0_16 = arith.constant 0 : index
    %15 = vector.load %arg7[%c0_15, %c0_16] : memref<32x128xbf16, #tpu.memory_space<vmem>>, vector<32x128xbf16>
    %cst_17 = arith.constant dense<0.000000e+00> : vector<32x128xf32>
    %16 = tpu.matmul %14, %15, %cst_17 {dimension_numbers = #tpu.dot_dimension_numbers<[1], [0], [0], [1], [0, 0, 1, 1], [], []>} : vector<32x32xbf16>, vector<32x128xbf16>, vector<32x128xf32> -> vector<32x128xf32>
    %c0_18 = arith.constant 0 : index
    %c0_19 = arith.constant 0 : index
    %17 = vector.load %arg4[%c0_18, %c0_19] : memref<32x32xbf16, #tpu.memory_space<vmem>>, vector<32x32xbf16>
    %c0_20 = arith.constant 0 : index
    %c0_21 = arith.constant 0 : index
    %18 = vector.load %arg8[%c0_20, %c0_21] : memref<32x128xbf16, #tpu.memory_space<vmem>>, vector<32x128xbf16>
    %cst_22 = arith.constant dense<0.000000e+00> : vector<32x128xf32>
    %19 = tpu.matmul %17, %18, %cst_22 {dimension_numbers = #tpu.dot_dimension_numbers<[1], [0], [0], [1], [0, 0, 1, 1], [], []>} : vector<32x32xbf16>, vector<32x128xbf16>, vector<32x128xf32> -> vector<32x128xf32>
    %20 = arith.addf %16, %19 : vector<32x128xf32>
    %c0_23 = arith.constant 0 : index
    %c0_24 = arith.constant 0 : index
    %21 = vector.load %arg12[%c0_23, %c0_24] : memref<1x128xf32, #tpu.memory_space<vmem>>, vector<1x128xf32>
    %22 = vector.broadcast %21 : vector<1x128xf32> to vector<32x128xf32>
    %23 = arith.addf %20, %22 : vector<32x128xf32>
    %c0_25 = arith.constant 0 : index
    %c0_26 = arith.constant 0 : index
    %24 = vector.load %arg17[%c0_25, %c0_26] : memref<32x128xf32, #tpu.memory_space<vmem>>, vector<32x128xf32>
    tpu.vector_store %arg17[%c0_25, %c0_26], %23 {strides = array<i32>} : memref<32x128xf32, #tpu.memory_space<vmem>>, vector<32x128xf32>,
    %c0_27 = arith.constant 0 : index
    %c0_28 = arith.constant 0 : index
    %25 = vector.load %arg9[%c0_27, %c0_28] : memref<32x128xbf16, #tpu.memory_space<vmem>>, vector<32x128xbf16>
    %c0_29 = arith.constant 0 : index
    %c0_30 = arith.constant 0 : index
    %26 = vector.load %arg10[%c0_29, %c0_30] : memref<32x128xbf16, #tpu.memory_space<vmem>>, vector<32x128xbf16>
    %c0_31 = arith.constant 0 : index
    %c0_32 = arith.constant 0 : index
    %27 = vector.load %arg18[%c0_31, %c0_32] : memref<8x32xbf16, #tpu.memory_space<vmem>>, vector<8x32xbf16>
    %c0_33 = arith.constant 0 : index
    %c0_34 = arith.constant 0 : index
    %28 = vector.load %arg19[%c0_33, %c0_34] : memref<8x32xf32, #tpu.memory_space<vmem>>, vector<8x32xf32>
    %c0_35 = arith.constant 0 : index
    %c0_36 = arith.constant 0 : index
    %29 = vector.load %arg20[%c0_35, %c0_36] : memref<8x32xbf16, #tpu.memory_space<vmem>>, vector<8x32xbf16>
    %c0_37 = arith.constant 0 : index
    %c0_38 = arith.constant 0 : index
    %30 = vector.load %arg21[%c0_37, %c0_38] : memref<8x32xf32, #tpu.memory_space<vmem>>, vector<8x32xf32>
    %cst_39 = arith.constant 0.000000e+00 : bf16
    %31 = vector.broadcast %cst_39 : bf16 to vector<8x32xbf16>
    %c0_i32_40 = arith.constant 0 : i32
    %c3_i32 = arith.constant 3 : i32
    %32 = arith.subi %c3_i32, %c0_i32_40 : i32
    %c8_i32 = arith.constant 8 : i32
    %33 = arith.muli %c0_i32_40, %c8_i32 : i32
    %34 = tpu.assume_multiple %33, 8 : i32
    %c8_i32_41 = arith.constant 8 : i32
    %35 = arith.muli %32, %c8_i32_41 : i32
    %36 = tpu.assume_multiple %35, 8 : i32
    %37 = arith.index_cast %34 : i32 to index
    %c0_42 = arith.constant 0 : index
    %38 = vector.load %arg16[%37, %c0_42] : memref<32x128xf32, #tpu.memory_space<vmem>>, vector<8x128xf32>
    %cst_43 = arith.constant dense<0.000000e+00> : vector<8x128xf32>
    %39 = tpu.matmul %27, %25, %cst_43 {dimension_numbers = #tpu.dot_dimension_numbers<[1], [0], [0], [1], [0, 0, 1, 1], [], []>} : vector<8x32xbf16>, vector<32x128xbf16>, vector<8x128xf32> -> vector<8x128xf32>
    %40 = arith.addf %38, %39 : vector<8x128xf32>
    %41 = vector.extract_strided_slice %40 {offsets = [0, 0], sizes = [8, 32], strides = [1, 1]} : vector<8x128xf32> to vector<8x32xf32>
    %42 = arith.negf %41 : vector<8x32xf32>
    %43 = math.exp %42 : vector<8x32xf32>
    %cst_44 = arith.constant 1.000000e+00 : f32
    %44 = vector.broadcast %cst_44 : f32 to vector<8x32xf32>
    %45 = arith.addf %44, %43 : vector<8x32xf32>
    %46 = arith.divf %44, %45 : vector<8x32xf32>
    %47 = vector.extract_strided_slice %40 {offsets = [0, 32], sizes = [8, 32], strides = [1, 1]} : vector<8x128xf32> to vector<8x32xf32>
    %48 = arith.negf %47 : vector<8x32xf32>
    %49 = math.exp %48 : vector<8x32xf32>
    %cst_45 = arith.constant 1.000000e+00 : f32
    %50 = vector.broadcast %cst_45 : f32 to vector<8x32xf32>
    %51 = arith.addf %50, %49 : vector<8x32xf32>
    %52 = arith.divf %50, %51 : vector<8x32xf32>
    %53 = vector.extract_strided_slice %40 {offsets = [0, 64], sizes = [8, 32], strides = [1, 1]} : vector<8x128xf32> to vector<8x32xf32>
    %54 = math.tanh %53 : vector<8x32xf32>
    %55 = vector.extract_strided_slice %40 {offsets = [0, 96], sizes = [8, 32], strides = [1, 1]} : vector<8x128xf32> to vector<8x32xf32>
    %56 = arith.negf %55 : vector<8x32xf32>
    %57 = math.exp %56 : vector<8x32xf32>
    %cst_46 = arith.constant 1.000000e+00 : f32
    %58 = vector.broadcast %cst_46 : f32 to vector<8x32xf32>
    %59 = arith.addf %58, %57 : vector<8x32xf32>
    %60 = arith.divf %58, %59 : vector<8x32xf32>
    %61 = arith.mulf %52, %28 : vector<8x32xf32>
    %62 = arith.mulf %46, %54 : vector<8x32xf32>
    %63 = arith.addf %61, %62 : vector<8x32xf32>
    %64 = math.tanh %63 : vector<8x32xf32>
    %65 = arith.mulf %60, %64 : vector<8x32xf32>
    %66 = arith.truncf %65 : vector<8x32xf32> to vector<8x32xbf16>
    %67 = arith.index_cast %36 : i32 to index
    %c0_47 = arith.constant 0 : index
    %68 = vector.load %arg17[%67, %c0_47] : memref<32x128xf32, #tpu.memory_space<vmem>>, vector<8x128xf32>
    %cst_48 = arith.constant dense<0.000000e+00> : vector<8x128xf32>
    %69 = tpu.matmul %29, %26, %cst_48 {dimension_numbers = #tpu.dot_dimension_numbers<[1], [0], [0], [1], [0, 0, 1, 1], [], []>} : vector<8x32xbf16>, vector<32x128xbf16>, vector<8x128xf32> -> vector<8x128xf32>
    %70 = arith.addf %68, %69 : vector<8x128xf32>
    %71 = vector.extract_strided_slice %70 {offsets = [0, 0], sizes = [8, 32], strides = [1, 1]} : vector<8x128xf32> to vector<8x32xf32>
    %72 = arith.negf %71 : vector<8x32xf32>
    %73 = math.exp %72 : vector<8x32xf32>
    %cst_49 = arith.constant 1.000000e+00 : f32
    %74 = vector.broadcast %cst_49 : f32 to vector<8x32xf32>
    %75 = arith.addf %74, %73 : vector<8x32xf32>
    %76 = arith.divf %74, %75 : vector<8x32xf32>
    %77 = vector.extract_strided_slice %70 {offsets = [0, 32], sizes = [8, 32], strides = [1, 1]} : vector<8x128xf32> to vector<8x32xf32>
    %78 = arith.negf %77 : vector<8x32xf32>
    %79 = math.exp %78 : vector<8x32xf32>
    %cst_50 = arith.constant 1.000000e+00 : f32
    %80 = vector.broadcast %cst_50 : f32 to vector<8x32xf32>
    %81 = arith.addf %80, %79 : vector<8x32xf32>
    %82 = arith.divf %80, %81 : vector<8x32xf32>
    %83 = vector.extract_strided_slice %70 {offsets = [0, 64], sizes = [8, 32], strides = [1, 1]} : vector<8x128xf32> to vector<8x32xf32>
    %84 = math.tanh %83 : vector<8x32xf32>
    %85 = vector.extract_strided_slice %70 {offsets = [0, 96], sizes = [8, 32], strides = [1, 1]} : vector<8x128xf32> to vector<8x32xf32>
    %86 = arith.negf %85 : vector<8x32xf32>
    %87 = math.exp %86 : vector<8x32xf32>
    %cst_51 = arith.constant 1.000000e+00 : f32
    %88 = vector.broadcast %cst_51 : f32 to vector<8x32xf32>
    %89 = arith.addf %88, %87 : vector<8x32xf32>
    %90 = arith.divf %88, %89 : vector<8x32xf32>
    %91 = arith.mulf %82, %30 : vector<8x32xf32>
    %92 = arith.mulf %76, %84 : vector<8x32xf32>
    %93 = arith.addf %91, %92 : vector<8x32xf32>
    %94 = math.tanh %93 : vector<8x32xf32>
    %95 = arith.mulf %90, %94 : vector<8x32xf32>
    %96 = arith.truncf %95 : vector<8x32xf32> to vector<8x32xbf16>
    %c0_i32_52 = arith.constant 0 : i32
    %97 = arith.cmpi eq, %c0_i32_40, %c0_i32_52 : i32
    %98 = arith.select %97, %96, %31 : vector<8x32xbf16>
    %c1_i32 = arith.constant 1 : i32
    %c3_i32_53 = arith.constant 3 : i32
    %99 = arith.subi %c3_i32_53, %c1_i32 : i32
    %c8_i32_54 = arith.constant 8 : i32
    %100 = arith.muli %c1_i32, %c8_i32_54 : i32
    %101 = tpu.assume_multiple %100, 8 : i32
    %c8_i32_55 = arith.constant 8 : i32
    %102 = arith.muli %99, %c8_i32_55 : i32
    %103 = tpu.assume_multiple %102, 8 : i32
    %104 = arith.index_cast %101 : i32 to index
    %c0_56 = arith.constant 0 : index
    %105 = vector.load %arg16[%104, %c0_56] : memref<32x128xf32, #tpu.memory_space<vmem>>, vector<8x128xf32>
    %cst_57 = arith.constant dense<0.000000e+00> : vector<8x128xf32>
    %106 = tpu.matmul %66, %25, %cst_57 {dimension_numbers = #tpu.dot_dimension_numbers<[1], [0], [0], [1], [0, 0, 1, 1], [], []>} : vector<8x32xbf16>, vector<32x128xbf16>, vector<8x128xf32> -> vector<8x128xf32>
    %107 = arith.addf %105, %106 : vector<8x128xf32>
    %108 = vector.extract_strided_slice %107 {offsets = [0, 0], sizes = [8, 32], strides = [1, 1]} : vector<8x128xf32> to vector<8x32xf32>
    %109 = arith.negf %108 : vector<8x32xf32>
    %110 = math.exp %109 : vector<8x32xf32>
    %cst_58 = arith.constant 1.000000e+00 : f32
    %111 = vector.broadcast %cst_58 : f32 to vector<8x32xf32>
    %112 = arith.addf %111, %110 : vector<8x32xf32>
    %113 = arith.divf %111, %112 : vector<8x32xf32>
    %114 = vector.extract_strided_slice %107 {offsets = [0, 32], sizes = [8, 32], strides = [1, 1]} : vector<8x128xf32> to vector<8x32xf32>
    %115 = arith.negf %114 : vector<8x32xf32>
    %116 = math.exp %115 : vector<8x32xf32>
    %cst_59 = arith.constant 1.000000e+00 : f32
    %117 = vector.broadcast %cst_59 : f32 to vector<8x32xf32>
    %118 = arith.addf %117, %116 : vector<8x32xf32>
    %119 = arith.divf %117, %118 : vector<8x32xf32>
    %120 = vector.extract_strided_slice %107 {offsets = [0, 64], sizes = [8, 32], strides = [1, 1]} : vector<8x128xf32> to vector<8x32xf32>
    %121 = math.tanh %120 : vector<8x32xf32>
    %122 = vector.extract_strided_slice %107 {offsets = [0, 96], sizes = [8, 32], strides = [1, 1]} : vector<8x128xf32> to vector<8x32xf32>
    %123 = arith.negf %122 : vector<8x32xf32>
    %124 = math.exp %123 : vector<8x32xf32>
    %cst_60 = arith.constant 1.000000e+00 : f32
    %125 = vector.broadcast %cst_60 : f32 to vector<8x32xf32>
    %126 = arith.addf %125, %124 : vector<8x32xf32>
    %127 = arith.divf %125, %126 : vector<8x32xf32>
    %128 = arith.mulf %119, %63 : vector<8x32xf32>
    %129 = arith.mulf %113, %121 : vector<8x32xf32>
    %130 = arith.addf %128, %129 : vector<8x32xf32>
    %131 = math.tanh %130 : vector<8x32xf32>
    %132 = arith.mulf %127, %131 : vector<8x32xf32>
    %133 = arith.truncf %132 : vector<8x32xf32> to vector<8x32xbf16>
    %134 = arith.index_cast %103 : i32 to index
    %c0_61 = arith.constant 0 : index
    %135 = vector.load %arg17[%134, %c0_61] : memref<32x128xf32, #tpu.memory_space<vmem>>, vector<8x128xf32>
    %cst_62 = arith.constant dense<0.000000e+00> : vector<8x128xf32>
    %136 = tpu.matmul %96, %26, %cst_62 {dimension_numbers = #tpu.dot_dimension_numbers<[1], [0], [0], [1], [0, 0, 1, 1], [], []>} : vector<8x32xbf16>, vector<32x128xbf16>, vector<8x128xf32> -> vector<8x128xf32>
    %137 = arith.addf %135, %136 : vector<8x128xf32>
    %138 = vector.extract_strided_slice %137 {offsets = [0, 0], sizes = [8, 32], strides = [1, 1]} : vector<8x128xf32> to vector<8x32xf32>
    %139 = arith.negf %138 : vector<8x32xf32>
    %140 = math.exp %139 : vector<8x32xf32>
    %cst_63 = arith.constant 1.000000e+00 : f32
    %141 = vector.broadcast %cst_63 : f32 to vector<8x32xf32>
    %142 = arith.addf %141, %140 : vector<8x32xf32>
    %143 = arith.divf %141, %142 : vector<8x32xf32>
    %144 = vector.extract_strided_slice %137 {offsets = [0, 32], sizes = [8, 32], strides = [1, 1]} : vector<8x128xf32> to vector<8x32xf32>
    %145 = arith.negf %144 : vector<8x32xf32>
    %146 = math.exp %145 : vector<8x32xf32>
    %cst_64 = arith.constant 1.000000e+00 : f32
    %147 = vector.broadcast %cst_64 : f32 to vector<8x32xf32>
    %148 = arith.addf %147, %146 : vector<8x32xf32>
    %149 = arith.divf %147, %148 : vector<8x32xf32>
    %150 = vector.extract_strided_slice %137 {offsets = [0, 64], sizes = [8, 32], strides = [1, 1]} : vector<8x128xf32> to vector<8x32xf32>
    %151 = math.tanh %150 : vector<8x32xf32>
    %152 = vector.extract_strided_slice %137 {offsets = [0, 96], sizes = [8, 32], strides = [1, 1]} : vector<8x128xf32> to vector<8x32xf32>
    %153 = arith.negf %152 : vector<8x32xf32>
    %154 = math.exp %153 : vector<8x32xf32>
    %cst_65 = arith.constant 1.000000e+00 : f32
    %155 = vector.broadcast %cst_65 : f32 to vector<8x32xf32>
    %156 = arith.addf %155, %154 : vector<8x32xf32>
    %157 = arith.divf %155, %156 : vector<8x32xf32>
    %158 = arith.mulf %149, %93 : vector<8x32xf32>
    %159 = arith.mulf %143, %151 : vector<8x32xf32>
    %160 = arith.addf %158, %159 : vector<8x32xf32>
    %161 = math.tanh %160 : vector<8x32xf32>
    %162 = arith.mulf %157, %161 : vector<8x32xf32>
    %163 = arith.truncf %162 : vector<8x32xf32> to vector<8x32xbf16>
    %c0_i32_66 = arith.constant 0 : i32
    %164 = arith.cmpi eq, %c1_i32, %c0_i32_66 : i32
    %165 = arith.select %164, %163, %98 : vector<8x32xbf16>
    %c2_i32 = arith.constant 2 : i32
    %c3_i32_67 = arith.constant 3 : i32
    %166 = arith.subi %c3_i32_67, %c2_i32 : i32
    %c8_i32_68 = arith.constant 8 : i32
    %167 = arith.muli %c2_i32, %c8_i32_68 : i32
    %168 = tpu.assume_multiple %167, 8 : i32
    %c8_i32_69 = arith.constant 8 : i32
    %169 = arith.muli %166, %c8_i32_69 : i32
    %170 = tpu.assume_multiple %169, 8 : i32
    %171 = arith.index_cast %168 : i32 to index
    %c0_70 = arith.constant 0 : index
    %172 = vector.load %arg16[%171, %c0_70] : memref<32x128xf32, #tpu.memory_space<vmem>>, vector<8x128xf32>
    %cst_71 = arith.constant dense<0.000000e+00> : vector<8x128xf32>
    %173 = tpu.matmul %133, %25, %cst_71 {dimension_numbers = #tpu.dot_dimension_numbers<[1], [0], [0], [1], [0, 0, 1, 1], [], []>} : vector<8x32xbf16>, vector<32x128xbf16>, vector<8x128xf32> -> vector<8x128xf32>
    %174 = arith.addf %172, %173 : vector<8x128xf32>
    %175 = vector.extract_strided_slice %174 {offsets = [0, 0], sizes = [8, 32], strides = [1, 1]} : vector<8x128xf32> to vector<8x32xf32>
    %176 = arith.negf %175 : vector<8x32xf32>
    %177 = math.exp %176 : vector<8x32xf32>
    %cst_72 = arith.constant 1.000000e+00 : f32
    %178 = vector.broadcast %cst_72 : f32 to vector<8x32xf32>
    %179 = arith.addf %178, %177 : vector<8x32xf32>
    %180 = arith.divf %178, %179 : vector<8x32xf32>
    %181 = vector.extract_strided_slice %174 {offsets = [0, 32], sizes = [8, 32], strides = [1, 1]} : vector<8x128xf32> to vector<8x32xf32>
    %182 = arith.negf %181 : vector<8x32xf32>
    %183 = math.exp %182 : vector<8x32xf32>
    %cst_73 = arith.constant 1.000000e+00 : f32
    %184 = vector.broadcast %cst_73 : f32 to vector<8x32xf32>
    %185 = arith.addf %184, %183 : vector<8x32xf32>
    %186 = arith.divf %184, %185 : vector<8x32xf32>
    %187 = vector.extract_strided_slice %174 {offsets = [0, 64], sizes = [8, 32], strides = [1, 1]} : vector<8x128xf32> to vector<8x32xf32>
    %188 = math.tanh %187 : vector<8x32xf32>
    %189 = vector.extract_strided_slice %174 {offsets = [0, 96], sizes = [8, 32], strides = [1, 1]} : vector<8x128xf32> to vector<8x32xf32>
    %190 = arith.negf %189 : vector<8x32xf32>
    %191 = math.exp %190 : vector<8x32xf32>
    %cst_74 = arith.constant 1.000000e+00 : f32
    %192 = vector.broadcast %cst_74 : f32 to vector<8x32xf32>
    %193 = arith.addf %192, %191 : vector<8x32xf32>
    %194 = arith.divf %192, %193 : vector<8x32xf32>
    %195 = arith.mulf %186, %130 : vector<8x32xf32>
    %196 = arith.mulf %180, %188 : vector<8x32xf32>
    %197 = arith.addf %195, %196 : vector<8x32xf32>
    %198 = math.tanh %197 : vector<8x32xf32>
    %199 = arith.mulf %194, %198 : vector<8x32xf32>
    %200 = arith.truncf %199 : vector<8x32xf32> to vector<8x32xbf16>
    %201 = arith.index_cast %170 : i32 to index
    %c0_75 = arith.constant 0 : index
    %202 = vector.load %arg17[%201, %c0_75] : memref<32x128xf32, #tpu.memory_space<vmem>>, vector<8x128xf32>
    %cst_76 = arith.constant dense<0.000000e+00> : vector<8x128xf32>
    %203 = tpu.matmul %163, %26, %cst_76 {dimension_numbers = #tpu.dot_dimension_numbers<[1], [0], [0], [1], [0, 0, 1, 1], [], []>} : vector<8x32xbf16>, vector<32x128xbf16>, vector<8x128xf32> -> vector<8x128xf32>
    %204 = arith.addf %202, %203 : vector<8x128xf32>
    %205 = vector.extract_strided_slice %204 {offsets = [0, 0], sizes = [8, 32], strides = [1, 1]} : vector<8x128xf32> to vector<8x32xf32>
    %206 = arith.negf %205 : vector<8x32xf32>
    %207 = math.exp %206 : vector<8x32xf32>
    %cst_77 = arith.constant 1.000000e+00 : f32
    %208 = vector.broadcast %cst_77 : f32 to vector<8x32xf32>
    %209 = arith.addf %208, %207 : vector<8x32xf32>
    %210 = arith.divf %208, %209 : vector<8x32xf32>
    %211 = vector.extract_strided_slice %204 {offsets = [0, 32], sizes = [8, 32], strides = [1, 1]} : vector<8x128xf32> to vector<8x32xf32>
    %212 = arith.negf %211 : vector<8x32xf32>
    %213 = math.exp %212 : vector<8x32xf32>
    %cst_78 = arith.constant 1.000000e+00 : f32
    %214 = vector.broadcast %cst_78 : f32 to vector<8x32xf32>
    %215 = arith.addf %214, %213 : vector<8x32xf32>
    %216 = arith.divf %214, %215 : vector<8x32xf32>
    %217 = vector.extract_strided_slice %204 {offsets = [0, 64], sizes = [8, 32], strides = [1, 1]} : vector<8x128xf32> to vector<8x32xf32>
    %218 = math.tanh %217 : vector<8x32xf32>
    %219 = vector.extract_strided_slice %204 {offsets = [0, 96], sizes = [8, 32], strides = [1, 1]} : vector<8x128xf32> to vector<8x32xf32>
    %220 = arith.negf %219 : vector<8x32xf32>
    %221 = math.exp %220 : vector<8x32xf32>
    %cst_79 = arith.constant 1.000000e+00 : f32
    %222 = vector.broadcast %cst_79 : f32 to vector<8x32xf32>
    %223 = arith.addf %222, %221 : vector<8x32xf32>
    %224 = arith.divf %222, %223 : vector<8x32xf32>
    %225 = arith.mulf %216, %160 : vector<8x32xf32>
    %226 = arith.mulf %210, %218 : vector<8x32xf32>
    %227 = arith.addf %225, %226 : vector<8x32xf32>
    %228 = math.tanh %227 : vector<8x32xf32>
    %229 = arith.mulf %224, %228 : vector<8x32xf32>
    %230 = arith.truncf %229 : vector<8x32xf32> to vector<8x32xbf16>
    %c0_i32_80 = arith.constant 0 : i32
    %231 = arith.cmpi eq, %c2_i32, %c0_i32_80 : i32
    %232 = arith.select %231, %230, %165 : vector<8x32xbf16>
    %c3_i32_81 = arith.constant 3 : i32
    %c3_i32_82 = arith.constant 3 : i32
    %233 = arith.subi %c3_i32_82, %c3_i32_81 : i32
    %c8_i32_83 = arith.constant 8 : i32
    %234 = arith.muli %c3_i32_81, %c8_i32_83 : i32
    %235 = tpu.assume_multiple %234, 8 : i32
    %c8_i32_84 = arith.constant 8 : i32
    %236 = arith.muli %233, %c8_i32_84 : i32
    %237 = tpu.assume_multiple %236, 8 : i32
    %238 = arith.index_cast %235 : i32 to index
    %c0_85 = arith.constant 0 : index
    %239 = vector.load %arg16[%238, %c0_85] : memref<32x128xf32, #tpu.memory_space<vmem>>, vector<8x128xf32>
    %cst_86 = arith.constant dense<0.000000e+00> : vector<8x128xf32>
    %240 = tpu.matmul %200, %25, %cst_86 {dimension_numbers = #tpu.dot_dimension_numbers<[1], [0], [0], [1], [0, 0, 1, 1], [], []>} : vector<8x32xbf16>, vector<32x128xbf16>, vector<8x128xf32> -> vector<8x128xf32>
    %241 = arith.addf %239, %240 : vector<8x128xf32>
    %242 = vector.extract_strided_slice %241 {offsets = [0, 0], sizes = [8, 32], strides = [1, 1]} : vector<8x128xf32> to vector<8x32xf32>
    %243 = arith.negf %242 : vector<8x32xf32>
    %244 = math.exp %243 : vector<8x32xf32>
    %cst_87 = arith.constant 1.000000e+00 : f32
    %245 = vector.broadcast %cst_87 : f32 to vector<8x32xf32>
    %246 = arith.addf %245, %244 : vector<8x32xf32>
    %247 = arith.divf %245, %246 : vector<8x32xf32>
    %248 = vector.extract_strided_slice %241 {offsets = [0, 32], sizes = [8, 32], strides = [1, 1]} : vector<8x128xf32> to vector<8x32xf32>
    %249 = arith.negf %248 : vector<8x32xf32>
    %250 = math.exp %249 : vector<8x32xf32>
    %cst_88 = arith.constant 1.000000e+00 : f32
    %251 = vector.broadcast %cst_88 : f32 to vector<8x32xf32>
    %252 = arith.addf %251, %250 : vector<8x32xf32>
    %253 = arith.divf %251, %252 : vector<8x32xf32>
    %254 = vector.extract_strided_slice %241 {offsets = [0, 64], sizes = [8, 32], strides = [1, 1]} : vector<8x128xf32> to vector<8x32xf32>
    %255 = math.tanh %254 : vector<8x32xf32>
    %256 = vector.extract_strided_slice %241 {offsets = [0, 96], sizes = [8, 32], strides = [1, 1]} : vector<8x128xf32> to vector<8x32xf32>
    %257 = arith.negf %256 : vector<8x32xf32>
    %258 = math.exp %257 : vector<8x32xf32>
    %cst_89 = arith.constant 1.000000e+00 : f32
    %259 = vector.broadcast %cst_89 : f32 to vector<8x32xf32>
    %260 = arith.addf %259, %258 : vector<8x32xf32>
    %261 = arith.divf %259, %260 : vector<8x32xf32>
    %262 = arith.mulf %253, %197 : vector<8x32xf32>
    %263 = arith.mulf %247, %255 : vector<8x32xf32>
    %264 = arith.addf %262, %263 : vector<8x32xf32>
    %265 = math.tanh %264 : vector<8x32xf32>
    %266 = arith.mulf %261, %265 : vector<8x32xf32>
    %267 = arith.truncf %266 : vector<8x32xf32> to vector<8x32xbf16>
    %268 = arith.index_cast %237 : i32 to index
    %c0_90 = arith.constant 0 : index
    %269 = vector.load %arg17[%268, %c0_90] : memref<32x128xf32, #tpu.memory_space<vmem>>, vector<8x128xf32>
    %cst_91 = arith.constant dense<0.000000e+00> : vector<8x128xf32>
    %270 = tpu.matmul %230, %26, %cst_91 {dimension_numbers = #tpu.dot_dimension_numbers<[1], [0], [0], [1], [0, 0, 1, 1], [], []>} : vector<8x32xbf16>, vector<32x128xbf16>, vector<8x128xf32> -> vector<8x128xf32>
    %271 = arith.addf %269, %270 : vector<8x128xf32>
    %272 = vector.extract_strided_slice %271 {offsets = [0, 0], sizes = [8, 32], strides = [1, 1]} : vector<8x128xf32> to vector<8x32xf32>
    %273 = arith.negf %272 : vector<8x32xf32>
    %274 = math.exp %273 : vector<8x32xf32>
    %cst_92 = arith.constant 1.000000e+00 : f32
    %275 = vector.broadcast %cst_92 : f32 to vector<8x32xf32>
    %276 = arith.addf %275, %274 : vector<8x32xf32>
    %277 = arith.divf %275, %276 : vector<8x32xf32>
    %278 = vector.extract_strided_slice %271 {offsets = [0, 32], sizes = [8, 32], strides = [1, 1]} : vector<8x128xf32> to vector<8x32xf32>
    %279 = arith.negf %278 : vector<8x32xf32>
    %280 = math.exp %279 : vector<8x32xf32>
    %cst_93 = arith.constant 1.000000e+00 : f32
    %281 = vector.broadcast %cst_93 : f32 to vector<8x32xf32>
    %282 = arith.addf %281, %280 : vector<8x32xf32>
    %283 = arith.divf %281, %282 : vector<8x32xf32>
    %284 = vector.extract_strided_slice %271 {offsets = [0, 64], sizes = [8, 32], strides = [1, 1]} : vector<8x128xf32> to vector<8x32xf32>
    %285 = math.tanh %284 : vector<8x32xf32>
    %286 = vector.extract_strided_slice %271 {offsets = [0, 96], sizes = [8, 32], strides = [1, 1]} : vector<8x128xf32> to vector<8x32xf32>
    %287 = arith.negf %286 : vector<8x32xf32>
    %288 = math.exp %287 : vector<8x32xf32>
    %cst_94 = arith.constant 1.000000e+00 : f32
    %289 = vector.broadcast %cst_94 : f32 to vector<8x32xf32>
    %290 = arith.addf %289, %288 : vector<8x32xf32>
    %291 = arith.divf %289, %290 : vector<8x32xf32>
    %292 = arith.mulf %283, %227 : vector<8x32xf32>
    %293 = arith.mulf %277, %285 : vector<8x32xf32>
    %294 = arith.addf %292, %293 : vector<8x32xf32>
    %295 = math.tanh %294 : vector<8x32xf32>
    %296 = arith.mulf %291, %295 : vector<8x32xf32>
    %297 = arith.truncf %296 : vector<8x32xf32> to vector<8x32xbf16>
    %c0_i32_95 = arith.constant 0 : i32
    %298 = arith.cmpi eq, %c3_i32_81, %c0_i32_95 : i32
    %299 = arith.select %298, %297, %232 : vector<8x32xbf16>
    %c4_i32 = arith.constant 4 : i32
    %c0_96 = arith.constant 0 : index
    %c0_97 = arith.constant 0 : index
    %300 = vector.load %arg18[%c0_96, %c0_97] : memref<8x32xbf16, #tpu.memory_space<vmem>>, vector<8x32xbf16>
    tpu.vector_store %arg18[%c0_96, %c0_97], %267 {strides = array<i32>} : memref<8x32xbf16, #tpu.memory_space<vmem>>, vector<8x32xbf16>,
    %c0_98 = arith.constant 0 : index
    %c0_99 = arith.constant 0 : index
    %301 = vector.load %arg19[%c0_98, %c0_99] : memref<8x32xf32, #tpu.memory_space<vmem>>, vector<8x32xf32>
    tpu.vector_store %arg19[%c0_98, %c0_99], %264 {strides = array<i32>} : memref<8x32xf32, #tpu.memory_space<vmem>>, vector<8x32xf32>,
    %c0_100 = arith.constant 0 : index
    %c0_101 = arith.constant 0 : index
    %302 = vector.load %arg20[%c0_100, %c0_101] : memref<8x32xbf16, #tpu.memory_space<vmem>>, vector<8x32xbf16>
    tpu.vector_store %arg20[%c0_100, %c0_101], %297 {strides = array<i32>} : memref<8x32xbf16, #tpu.memory_space<vmem>>, vector<8x32xbf16>,
    %c0_102 = arith.constant 0 : index
    %c0_103 = arith.constant 0 : index
    %303 = vector.load %arg21[%c0_102, %c0_103] : memref<8x32xf32, #tpu.memory_space<vmem>>, vector<8x32xf32>
    tpu.vector_store %arg21[%c0_102, %c0_103], %294 {strides = array<i32>} : memref<8x32xf32, #tpu.memory_space<vmem>>, vector<8x32xf32>,
    %c0_i32_104 = arith.constant 0 : i32
    %304 = arith.cmpi eq, %arg0, %c0_i32_104 : i32
    %305 = arith.extui %304 : i1 to i32
    %c0_i32_105 = arith.constant 0 : i32
    %306 = arith.cmpi ne, %305, %c0_i32_105 : i32
    scf.if %306 {
      %c0_108 = arith.constant 0 : index
      %c0_109 = arith.constant 0 : index
      %310 = vector.load %arg22[%c0_108, %c0_109] : memref<8x32xbf16, #tpu.memory_space<vmem>>, vector<8x32xbf16>
      tpu.vector_store %arg22[%c0_108, %c0_109], %299 {strides = array<i32>} : memref<8x32xbf16, #tpu.memory_space<vmem>>, vector<8x32xbf16>,
    } else {
    }
    %c1_i32_106 = arith.constant 1 : i32
    %307 = arith.cmpi eq, %arg0, %c1_i32_106 : i32
    %308 = arith.extui %307 : i1 to i32
    %c0_i32_107 = arith.constant 0 : i32
    %309 = arith.cmpi ne, %308, %c0_i32_107 : i32
    scf.if %309 {
      %c0_108 = arith.constant 0 : index
      %c0_109 = arith.constant 0 : index
      %310 = vector.load %arg13[%c0_108, %c0_109] : memref<64x32xbf16, #tpu.memory_space<vmem>>, vector<32x32xbf16>
      %cst_110 = arith.constant dense<0.000000e+00> : vector<8x32xf32>
      %311 = tpu.matmul %267, %310, %cst_110 {dimension_numbers = #tpu.dot_dimension_numbers<[1], [0], [0], [1], [0, 0, 1, 1], [], []>} : vector<8x32xbf16>, vector<32x32xbf16>, vector<8x32xf32> -> vector<8x32xf32>
      %c0_111 = arith.constant 0 : index
      %c0_112 = arith.constant 0 : index
      %312 = vector.load %arg22[%c0_111, %c0_112] : memref<8x32xbf16, #tpu.memory_space<vmem>>, vector<8x32xbf16>
      %c32 = arith.constant 32 : index
      %c0_113 = arith.constant 0 : index
      %313 = vector.load %arg13[%c32, %c0_113] : memref<64x32xbf16, #tpu.memory_space<vmem>>, vector<32x32xbf16>
      %cst_114 = arith.constant dense<0.000000e+00> : vector<8x32xf32>
      %314 = tpu.matmul %312, %313, %cst_114 {dimension_numbers = #tpu.dot_dimension_numbers<[1], [0], [0], [1], [0, 0, 1, 1], [], []>} : vector<8x32xbf16>, vector<32x32xbf16>, vector<8x32xf32> -> vector<8x32xf32>
      %315 = arith.addf %311, %314 : vector<8x32xf32>
      %c0_115 = arith.constant 0 : index
      %c0_116 = arith.constant 0 : index
      %316 = vector.load %arg14[%c0_115, %c0_116] : memref<1x32xf32, #tpu.memory_space<vmem>>, vector<1x32xf32>
      %317 = vector.broadcast %316 : vector<1x32xf32> to vector<8x32xf32>
      %318 = arith.addf %315, %317 : vector<8x32xf32>
      %c0_117 = arith.constant 0 : index
      %c0_118 = arith.constant 0 : index
      %319 = vector.load %arg15[%c0_117, %c0_118] : memref<8x32xf32, #tpu.memory_space<vmem>>, vector<8x32xf32>
      tpu.vector_store %arg15[%c0_117, %c0_118], %318 {strides = array<i32>} : memref<8x32xf32, #tpu.memory_space<vmem>>, vector<8x32xf32>,
    } else {
    }
    return
  }
  func.func @transform_0(%arg0: i32) -> (i32, i32) {
    %c0_i32 = arith.constant 0 : i32
    %c0_i32_0 = arith.constant 0 : i32
    return %arg0, %c0_i32 : i32, i32
  }
  func.func @transform_1(%arg0: i32) -> (i32, i32) {
    %c0_i32 = arith.constant 0 : i32
    %c0_i32_0 = arith.constant 0 : i32
    return %arg0, %c0_i32 : i32, i32
  }
  func.func @transform_2(%arg0: i32) -> (i32, i32) {
    %c1_i32 = arith.constant 1 : i32
    %0 = arith.subi %c1_i32, %arg0 : i32
    %c0_i32 = arith.constant 0 : i32
    %c0_i32_0 = arith.constant 0 : i32
    return %0, %c0_i32 : i32, i32
  }
  func.func @transform_3(%arg0: i32) -> (i32, i32) {
    %c1_i32 = arith.constant 1 : i32
    %0 = arith.subi %c1_i32, %arg0 : i32
    %c0_i32 = arith.constant 0 : i32
    %c0_i32_0 = arith.constant 0 : i32
    return %0, %c0_i32 : i32, i32
  }
  func.func @transform_4(%arg0: i32) -> (i32, i32) {
    %c0_i32 = arith.constant 0 : i32
    %c0_i32_0 = arith.constant 0 : i32
    %c0_i32_1 = arith.constant 0 : i32
    return %c0_i32, %c0_i32_0 : i32, i32
  }
  func.func @transform_5(%arg0: i32) -> (i32, i32) {
    %c0_i32 = arith.constant 0 : i32
    %c0_i32_0 = arith.constant 0 : i32
    %c0_i32_1 = arith.constant 0 : i32
    return %c0_i32, %c0_i32_0 : i32, i32
  }
  func.func @transform_6(%arg0: i32) -> (i32, i32) {
    %c0_i32 = arith.constant 0 : i32
    %c0_i32_0 = arith.constant 0 : i32
    %c0_i32_1 = arith.constant 0 : i32
    return %c0_i32, %c0_i32_0 : i32, i32
  }
  func.func @transform_7(%arg0: i32) -> (i32, i32) {
    %c0_i32 = arith.constant 0 : i32
    %c0_i32_0 = arith.constant 0 : i32
    %c0_i32_1 = arith.constant 0 : i32
    return %c0_i32, %c0_i32_0 : i32, i32
  }
  func.func @transform_8(%arg0: i32) -> (i32, i32) {
    %c0_i32 = arith.constant 0 : i32
    %c0_i32_0 = arith.constant 0 : i32
    %c0_i32_1 = arith.constant 0 : i32
    return %c0_i32, %c0_i32_0 : i32, i32
  }
  func.func @transform_9(%arg0: i32) -> (i32, i32) {
    %c0_i32 = arith.constant 0 : i32
    %c0_i32_0 = arith.constant 0 : i32
    %c0_i32_1 = arith.constant 0 : i32
    return %c0_i32, %c0_i32_0 : i32, i32
  }
  func.func @transform_10(%arg0: i32) -> (i32, i32) {
    %c0_i32 = arith.constant 0 : i32
    %c0_i32_0 = arith.constant 0 : i32
    %c0_i32_1 = arith.constant 0 : i32
    return %c0_i32, %c0_i32_0 : i32, i32
  }
  func.func @transform_11(%arg0: i32) -> (i32, i32) {
    %c0_i32 = arith.constant 0 : i32
    %c0_i32_0 = arith.constant 0 : i32
    %c0_i32_1 = arith.constant 0 : i32
    return %c0_i32, %c0_i32_0 : i32, i32
  }
  func.func @transform_12(%arg0: i32) -> (i32, i32) {
    %c0_i32 = arith.constant 0 : i32
    %c0_i32_0 = arith.constant 0 : i32
    %c0_i32_1 = arith.constant 0 : i32
    return %c0_i32, %c0_i32_0 : i32, i32
  }
  func.func @transform_13(%arg0: i32) -> (i32, i32) {
    %c0_i32 = arith.constant 0 : i32
    %c0_i32_0 = arith.constant 0 : i32
    %c0_i32_1 = arith.constant 0 : i32
    return %c0_i32, %c0_i32_0 : i32, i32
  }
  func.func @transform_14(%arg0: i32) -> (i32, i32) {
    %c0_i32 = arith.constant 0 : i32
    %c0_i32_0 = arith.constant 0 : i32
    %c0_i32_1 = arith.constant 0 : i32
    return %c0_i32, %c0_i32_0 : i32, i32
  }
}

module attributes {stable_mosaic.version = 11 : i64} {
  func.func @_bilstm_kernel(%arg0: i32, %arg1: memref<32x16xbf16, #tpu.memory_space<vmem>>, %arg2: memref<32x16xbf16, #tpu.memory_space<vmem>>, %arg3: memref<32x16xbf16, #tpu.memory_space<vmem>>, %arg4: memref<32x16xbf16, #tpu.memory_space<vmem>>, %arg5: memref<16x128xbf16, #tpu.memory_space<vmem>>, %arg6: memref<16x128xbf16, #tpu.memory_space<vmem>>, %arg7: memref<16x128xbf16, #tpu.memory_space<vmem>>, %arg8: memref<16x128xbf16, #tpu.memory_space<vmem>>, %arg9: memref<32x128xbf16, #tpu.memory_space<vmem>>, %arg10: memref<32x128xbf16, #tpu.memory_space<vmem>>, %arg11: memref<1x128xf32, #tpu.memory_space<vmem>>, %arg12: memref<1x128xf32, #tpu.memory_space<vmem>>, %arg13: memref<32x32xbf16, #tpu.memory_space<vmem>>, %arg14: memref<32x32xbf16, #tpu.memory_space<vmem>>, %arg15: memref<32x128xf32, #tpu.memory_space<vmem>>, %arg16: memref<32x128xf32, #tpu.memory_space<vmem>>, %arg17: memref<8x32xbf16, #tpu.memory_space<vmem>>, %arg18: memref<8x32xf32, #tpu.memory_space<vmem>>, %arg19: memref<8x32xbf16, #tpu.memory_space<vmem>>, %arg20: memref<8x32xf32, #tpu.memory_space<vmem>>) attributes {dimension_semantics = [#tpu.dimension_semantics<arbitrary>], iteration_bounds = array<i64: 2>, scalar_prefetch = 0 : i64, scratch_operands = 6 : i64, tpu.core_type = #tpu.core_type<tc>, window_params = [{transform_indices = @transform_0, window_bounds = array<i64: 32, 16>}, {transform_indices = @transform_1, window_bounds = array<i64: 32, 16>}, {transform_indices = @transform_2, window_bounds = array<i64: 32, 16>}, {transform_indices = @transform_3, window_bounds = array<i64: 32, 16>}, {pipeline_mode = #tpu.pipeline_mode<synchronous>, transform_indices = @transform_4, window_bounds = array<i64: 16, 128>}, {pipeline_mode = #tpu.pipeline_mode<synchronous>, transform_indices = @transform_5, window_bounds = array<i64: 16, 128>}, {pipeline_mode = #tpu.pipeline_mode<synchronous>, transform_indices = @transform_6, window_bounds = array<i64: 16, 128>}, {pipeline_mode = #tpu.pipeline_mode<synchronous>, transform_indices = @transform_7, window_bounds = array<i64: 16, 128>}, {pipeline_mode = #tpu.pipeline_mode<synchronous>, transform_indices = @transform_8, window_bounds = array<i64: 32, 128>}, {pipeline_mode = #tpu.pipeline_mode<synchronous>, transform_indices = @transform_9, window_bounds = array<i64: 32, 128>}, {pipeline_mode = #tpu.pipeline_mode<synchronous>, transform_indices = @transform_10, window_bounds = array<i64: 1, 128>}, {pipeline_mode = #tpu.pipeline_mode<synchronous>, transform_indices = @transform_11, window_bounds = array<i64: 1, 128>}, {transform_indices = @transform_12, window_bounds = array<i64: 32, 32>}, {transform_indices = @transform_13, window_bounds = array<i64: 32, 32>}]} {
    %c0_i32 = arith.constant 0 : i32
    %0 = arith.cmpi eq, %arg0, %c0_i32 : i32
    %1 = arith.extui %0 : i1 to i32
    %c0_i32_0 = arith.constant 0 : i32
    %2 = arith.cmpi ne, %1, %c0_i32_0 : i32
    scf.if %2 {
      %cst_107 = arith.constant 0.000000e+00 : bf16
      %311 = vector.broadcast %cst_107 : bf16 to vector<8x32xbf16>
      %c0_108 = arith.constant 0 : index
      %c0_109 = arith.constant 0 : index
      %312 = vector.load %arg17[%c0_108, %c0_109] : memref<8x32xbf16, #tpu.memory_space<vmem>>, vector<8x32xbf16>
      tpu.vector_store %arg17[%c0_108, %c0_109], %311 {strides = array<i32>} : memref<8x32xbf16, #tpu.memory_space<vmem>>, vector<8x32xbf16>,
      %cst_110 = arith.constant 0.000000e+00 : f32
      %313 = vector.broadcast %cst_110 : f32 to vector<8x32xf32>
      %c0_111 = arith.constant 0 : index
      %c0_112 = arith.constant 0 : index
      %314 = vector.load %arg18[%c0_111, %c0_112] : memref<8x32xf32, #tpu.memory_space<vmem>>, vector<8x32xf32>
      tpu.vector_store %arg18[%c0_111, %c0_112], %313 {strides = array<i32>} : memref<8x32xf32, #tpu.memory_space<vmem>>, vector<8x32xf32>,
      %cst_113 = arith.constant 0.000000e+00 : bf16
      %315 = vector.broadcast %cst_113 : bf16 to vector<8x32xbf16>
      %c0_114 = arith.constant 0 : index
      %c0_115 = arith.constant 0 : index
      %316 = vector.load %arg19[%c0_114, %c0_115] : memref<8x32xbf16, #tpu.memory_space<vmem>>, vector<8x32xbf16>
      tpu.vector_store %arg19[%c0_114, %c0_115], %315 {strides = array<i32>} : memref<8x32xbf16, #tpu.memory_space<vmem>>, vector<8x32xbf16>,
      %cst_116 = arith.constant 0.000000e+00 : f32
      %317 = vector.broadcast %cst_116 : f32 to vector<8x32xf32>
      %c0_117 = arith.constant 0 : index
      %c0_118 = arith.constant 0 : index
      %318 = vector.load %arg20[%c0_117, %c0_118] : memref<8x32xf32, #tpu.memory_space<vmem>>, vector<8x32xf32>
      tpu.vector_store %arg20[%c0_117, %c0_118], %317 {strides = array<i32>} : memref<8x32xf32, #tpu.memory_space<vmem>>, vector<8x32xf32>,
    } else {
    }
    %c0 = arith.constant 0 : index
    %c0_1 = arith.constant 0 : index
    %3 = vector.load %arg1[%c0, %c0_1] : memref<32x16xbf16, #tpu.memory_space<vmem>>, vector<32x16xbf16>
    %c0_2 = arith.constant 0 : index
    %c0_3 = arith.constant 0 : index
    %4 = vector.load %arg5[%c0_2, %c0_3] : memref<16x128xbf16, #tpu.memory_space<vmem>>, vector<16x128xbf16>
    %cst = arith.constant dense<0.000000e+00> : vector<32x128xf32>
    %5 = tpu.matmul %3, %4, %cst {dimension_numbers = #tpu.dot_dimension_numbers<[1], [0], [0], [1], [0, 0, 1, 1], [], []>} : vector<32x16xbf16>, vector<16x128xbf16>, vector<32x128xf32> -> vector<32x128xf32>
    %c0_4 = arith.constant 0 : index
    %c0_5 = arith.constant 0 : index
    %6 = vector.load %arg2[%c0_4, %c0_5] : memref<32x16xbf16, #tpu.memory_space<vmem>>, vector<32x16xbf16>
    %c0_6 = arith.constant 0 : index
    %c0_7 = arith.constant 0 : index
    %7 = vector.load %arg6[%c0_6, %c0_7] : memref<16x128xbf16, #tpu.memory_space<vmem>>, vector<16x128xbf16>
    %cst_8 = arith.constant dense<0.000000e+00> : vector<32x128xf32>
    %8 = tpu.matmul %6, %7, %cst_8 {dimension_numbers = #tpu.dot_dimension_numbers<[1], [0], [0], [1], [0, 0, 1, 1], [], []>} : vector<32x16xbf16>, vector<16x128xbf16>, vector<32x128xf32> -> vector<32x128xf32>
    %9 = arith.addf %5, %8 : vector<32x128xf32>
    %c0_9 = arith.constant 0 : index
    %c0_10 = arith.constant 0 : index
    %10 = vector.load %arg11[%c0_9, %c0_10] : memref<1x128xf32, #tpu.memory_space<vmem>>, vector<1x128xf32>
    %11 = vector.broadcast %10 : vector<1x128xf32> to vector<32x128xf32>
    %12 = arith.addf %9, %11 : vector<32x128xf32>
    %c0_11 = arith.constant 0 : index
    %c0_12 = arith.constant 0 : index
    %13 = vector.load %arg15[%c0_11, %c0_12] : memref<32x128xf32, #tpu.memory_space<vmem>>, vector<32x128xf32>
    tpu.vector_store %arg15[%c0_11, %c0_12], %12 {strides = array<i32>} : memref<32x128xf32, #tpu.memory_space<vmem>>, vector<32x128xf32>,
    %c0_13 = arith.constant 0 : index
    %c0_14 = arith.constant 0 : index
    %14 = vector.load %arg3[%c0_13, %c0_14] : memref<32x16xbf16, #tpu.memory_space<vmem>>, vector<32x16xbf16>
    %c0_15 = arith.constant 0 : index
    %c0_16 = arith.constant 0 : index
    %15 = vector.load %arg7[%c0_15, %c0_16] : memref<16x128xbf16, #tpu.memory_space<vmem>>, vector<16x128xbf16>
    %cst_17 = arith.constant dense<0.000000e+00> : vector<32x128xf32>
    %16 = tpu.matmul %14, %15, %cst_17 {dimension_numbers = #tpu.dot_dimension_numbers<[1], [0], [0], [1], [0, 0, 1, 1], [], []>} : vector<32x16xbf16>, vector<16x128xbf16>, vector<32x128xf32> -> vector<32x128xf32>
    %c0_18 = arith.constant 0 : index
    %c0_19 = arith.constant 0 : index
    %17 = vector.load %arg4[%c0_18, %c0_19] : memref<32x16xbf16, #tpu.memory_space<vmem>>, vector<32x16xbf16>
    %c0_20 = arith.constant 0 : index
    %c0_21 = arith.constant 0 : index
    %18 = vector.load %arg8[%c0_20, %c0_21] : memref<16x128xbf16, #tpu.memory_space<vmem>>, vector<16x128xbf16>
    %cst_22 = arith.constant dense<0.000000e+00> : vector<32x128xf32>
    %19 = tpu.matmul %17, %18, %cst_22 {dimension_numbers = #tpu.dot_dimension_numbers<[1], [0], [0], [1], [0, 0, 1, 1], [], []>} : vector<32x16xbf16>, vector<16x128xbf16>, vector<32x128xf32> -> vector<32x128xf32>
    %20 = arith.addf %16, %19 : vector<32x128xf32>
    %c0_23 = arith.constant 0 : index
    %c0_24 = arith.constant 0 : index
    %21 = vector.load %arg12[%c0_23, %c0_24] : memref<1x128xf32, #tpu.memory_space<vmem>>, vector<1x128xf32>
    %22 = vector.broadcast %21 : vector<1x128xf32> to vector<32x128xf32>
    %23 = arith.addf %20, %22 : vector<32x128xf32>
    %c0_25 = arith.constant 0 : index
    %c0_26 = arith.constant 0 : index
    %24 = vector.load %arg16[%c0_25, %c0_26] : memref<32x128xf32, #tpu.memory_space<vmem>>, vector<32x128xf32>
    tpu.vector_store %arg16[%c0_25, %c0_26], %23 {strides = array<i32>} : memref<32x128xf32, #tpu.memory_space<vmem>>, vector<32x128xf32>,
    %c0_27 = arith.constant 0 : index
    %c0_28 = arith.constant 0 : index
    %25 = vector.load %arg9[%c0_27, %c0_28] : memref<32x128xbf16, #tpu.memory_space<vmem>>, vector<32x128xbf16>
    %c0_29 = arith.constant 0 : index
    %c0_30 = arith.constant 0 : index
    %26 = vector.load %arg10[%c0_29, %c0_30] : memref<32x128xbf16, #tpu.memory_space<vmem>>, vector<32x128xbf16>
    %c0_31 = arith.constant 0 : index
    %c0_32 = arith.constant 0 : index
    %27 = vector.load %arg17[%c0_31, %c0_32] : memref<8x32xbf16, #tpu.memory_space<vmem>>, vector<8x32xbf16>
    %c0_33 = arith.constant 0 : index
    %c0_34 = arith.constant 0 : index
    %28 = vector.load %arg18[%c0_33, %c0_34] : memref<8x32xf32, #tpu.memory_space<vmem>>, vector<8x32xf32>
    %c0_35 = arith.constant 0 : index
    %c0_36 = arith.constant 0 : index
    %29 = vector.load %arg19[%c0_35, %c0_36] : memref<8x32xbf16, #tpu.memory_space<vmem>>, vector<8x32xbf16>
    %c0_37 = arith.constant 0 : index
    %c0_38 = arith.constant 0 : index
    %30 = vector.load %arg20[%c0_37, %c0_38] : memref<8x32xf32, #tpu.memory_space<vmem>>, vector<8x32xf32>
    %c0_i32_39 = arith.constant 0 : i32
    %c3_i32 = arith.constant 3 : i32
    %31 = arith.subi %c3_i32, %c0_i32_39 : i32
    %c8_i32 = arith.constant 8 : i32
    %32 = arith.muli %c0_i32_39, %c8_i32 : i32
    %33 = tpu.assume_multiple %32, 8 : i32
    %c8_i32_40 = arith.constant 8 : i32
    %34 = arith.muli %31, %c8_i32_40 : i32
    %35 = tpu.assume_multiple %34, 8 : i32
    %36 = arith.index_cast %33 : i32 to index
    %c0_41 = arith.constant 0 : index
    %37 = vector.load %arg15[%36, %c0_41] : memref<32x128xf32, #tpu.memory_space<vmem>>, vector<8x128xf32>
    %cst_42 = arith.constant dense<0.000000e+00> : vector<8x128xf32>
    %38 = tpu.matmul %27, %25, %cst_42 {dimension_numbers = #tpu.dot_dimension_numbers<[1], [0], [0], [1], [0, 0, 1, 1], [], []>} : vector<8x32xbf16>, vector<32x128xbf16>, vector<8x128xf32> -> vector<8x128xf32>
    %39 = arith.addf %37, %38 : vector<8x128xf32>
    %40 = vector.extract_strided_slice %39 {offsets = [0, 0], sizes = [8, 32], strides = [1, 1]} : vector<8x128xf32> to vector<8x32xf32>
    %41 = arith.negf %40 : vector<8x32xf32>
    %42 = math.exp %41 : vector<8x32xf32>
    %cst_43 = arith.constant 1.000000e+00 : f32
    %43 = vector.broadcast %cst_43 : f32 to vector<8x32xf32>
    %44 = arith.addf %43, %42 : vector<8x32xf32>
    %45 = arith.divf %43, %44 : vector<8x32xf32>
    %46 = vector.extract_strided_slice %39 {offsets = [0, 32], sizes = [8, 32], strides = [1, 1]} : vector<8x128xf32> to vector<8x32xf32>
    %47 = arith.negf %46 : vector<8x32xf32>
    %48 = math.exp %47 : vector<8x32xf32>
    %cst_44 = arith.constant 1.000000e+00 : f32
    %49 = vector.broadcast %cst_44 : f32 to vector<8x32xf32>
    %50 = arith.addf %49, %48 : vector<8x32xf32>
    %51 = arith.divf %49, %50 : vector<8x32xf32>
    %52 = vector.extract_strided_slice %39 {offsets = [0, 64], sizes = [8, 32], strides = [1, 1]} : vector<8x128xf32> to vector<8x32xf32>
    %53 = math.tanh %52 : vector<8x32xf32>
    %54 = vector.extract_strided_slice %39 {offsets = [0, 96], sizes = [8, 32], strides = [1, 1]} : vector<8x128xf32> to vector<8x32xf32>
    %55 = arith.negf %54 : vector<8x32xf32>
    %56 = math.exp %55 : vector<8x32xf32>
    %cst_45 = arith.constant 1.000000e+00 : f32
    %57 = vector.broadcast %cst_45 : f32 to vector<8x32xf32>
    %58 = arith.addf %57, %56 : vector<8x32xf32>
    %59 = arith.divf %57, %58 : vector<8x32xf32>
    %60 = arith.mulf %51, %28 : vector<8x32xf32>
    %61 = arith.mulf %45, %53 : vector<8x32xf32>
    %62 = arith.addf %60, %61 : vector<8x32xf32>
    %63 = math.tanh %62 : vector<8x32xf32>
    %64 = arith.mulf %59, %63 : vector<8x32xf32>
    %65 = arith.truncf %64 : vector<8x32xf32> to vector<8x32xbf16>
    %66 = arith.index_cast %35 : i32 to index
    %c0_46 = arith.constant 0 : index
    %67 = vector.load %arg16[%66, %c0_46] : memref<32x128xf32, #tpu.memory_space<vmem>>, vector<8x128xf32>
    %cst_47 = arith.constant dense<0.000000e+00> : vector<8x128xf32>
    %68 = tpu.matmul %29, %26, %cst_47 {dimension_numbers = #tpu.dot_dimension_numbers<[1], [0], [0], [1], [0, 0, 1, 1], [], []>} : vector<8x32xbf16>, vector<32x128xbf16>, vector<8x128xf32> -> vector<8x128xf32>
    %69 = arith.addf %67, %68 : vector<8x128xf32>
    %70 = vector.extract_strided_slice %69 {offsets = [0, 0], sizes = [8, 32], strides = [1, 1]} : vector<8x128xf32> to vector<8x32xf32>
    %71 = arith.negf %70 : vector<8x32xf32>
    %72 = math.exp %71 : vector<8x32xf32>
    %cst_48 = arith.constant 1.000000e+00 : f32
    %73 = vector.broadcast %cst_48 : f32 to vector<8x32xf32>
    %74 = arith.addf %73, %72 : vector<8x32xf32>
    %75 = arith.divf %73, %74 : vector<8x32xf32>
    %76 = vector.extract_strided_slice %69 {offsets = [0, 32], sizes = [8, 32], strides = [1, 1]} : vector<8x128xf32> to vector<8x32xf32>
    %77 = arith.negf %76 : vector<8x32xf32>
    %78 = math.exp %77 : vector<8x32xf32>
    %cst_49 = arith.constant 1.000000e+00 : f32
    %79 = vector.broadcast %cst_49 : f32 to vector<8x32xf32>
    %80 = arith.addf %79, %78 : vector<8x32xf32>
    %81 = arith.divf %79, %80 : vector<8x32xf32>
    %82 = vector.extract_strided_slice %69 {offsets = [0, 64], sizes = [8, 32], strides = [1, 1]} : vector<8x128xf32> to vector<8x32xf32>
    %83 = math.tanh %82 : vector<8x32xf32>
    %84 = vector.extract_strided_slice %69 {offsets = [0, 96], sizes = [8, 32], strides = [1, 1]} : vector<8x128xf32> to vector<8x32xf32>
    %85 = arith.negf %84 : vector<8x32xf32>
    %86 = math.exp %85 : vector<8x32xf32>
    %cst_50 = arith.constant 1.000000e+00 : f32
    %87 = vector.broadcast %cst_50 : f32 to vector<8x32xf32>
    %88 = arith.addf %87, %86 : vector<8x32xf32>
    %89 = arith.divf %87, %88 : vector<8x32xf32>
    %90 = arith.mulf %81, %30 : vector<8x32xf32>
    %91 = arith.mulf %75, %83 : vector<8x32xf32>
    %92 = arith.addf %90, %91 : vector<8x32xf32>
    %93 = math.tanh %92 : vector<8x32xf32>
    %94 = arith.mulf %89, %93 : vector<8x32xf32>
    %95 = arith.truncf %94 : vector<8x32xf32> to vector<8x32xbf16>
    %96 = arith.index_cast %33 : i32 to index
    %c0_51 = arith.constant 0 : index
    %97 = vector.load %arg13[%96, %c0_51] : memref<32x32xbf16, #tpu.memory_space<vmem>>, vector<8x32xbf16>
    tpu.vector_store %arg13[%96, %c0_51], %65 {strides = array<i32>} : memref<32x32xbf16, #tpu.memory_space<vmem>>, vector<8x32xbf16>,
    %98 = arith.index_cast %35 : i32 to index
    %c0_52 = arith.constant 0 : index
    %99 = vector.load %arg14[%98, %c0_52] : memref<32x32xbf16, #tpu.memory_space<vmem>>, vector<8x32xbf16>
    tpu.vector_store %arg14[%98, %c0_52], %95 {strides = array<i32>} : memref<32x32xbf16, #tpu.memory_space<vmem>>, vector<8x32xbf16>,
    %c1_i32 = arith.constant 1 : i32
    %c3_i32_53 = arith.constant 3 : i32
    %100 = arith.subi %c3_i32_53, %c1_i32 : i32
    %c8_i32_54 = arith.constant 8 : i32
    %101 = arith.muli %c1_i32, %c8_i32_54 : i32
    %102 = tpu.assume_multiple %101, 8 : i32
    %c8_i32_55 = arith.constant 8 : i32
    %103 = arith.muli %100, %c8_i32_55 : i32
    %104 = tpu.assume_multiple %103, 8 : i32
    %105 = arith.index_cast %102 : i32 to index
    %c0_56 = arith.constant 0 : index
    %106 = vector.load %arg15[%105, %c0_56] : memref<32x128xf32, #tpu.memory_space<vmem>>, vector<8x128xf32>
    %cst_57 = arith.constant dense<0.000000e+00> : vector<8x128xf32>
    %107 = tpu.matmul %65, %25, %cst_57 {dimension_numbers = #tpu.dot_dimension_numbers<[1], [0], [0], [1], [0, 0, 1, 1], [], []>} : vector<8x32xbf16>, vector<32x128xbf16>, vector<8x128xf32> -> vector<8x128xf32>
    %108 = arith.addf %106, %107 : vector<8x128xf32>
    %109 = vector.extract_strided_slice %108 {offsets = [0, 0], sizes = [8, 32], strides = [1, 1]} : vector<8x128xf32> to vector<8x32xf32>
    %110 = arith.negf %109 : vector<8x32xf32>
    %111 = math.exp %110 : vector<8x32xf32>
    %cst_58 = arith.constant 1.000000e+00 : f32
    %112 = vector.broadcast %cst_58 : f32 to vector<8x32xf32>
    %113 = arith.addf %112, %111 : vector<8x32xf32>
    %114 = arith.divf %112, %113 : vector<8x32xf32>
    %115 = vector.extract_strided_slice %108 {offsets = [0, 32], sizes = [8, 32], strides = [1, 1]} : vector<8x128xf32> to vector<8x32xf32>
    %116 = arith.negf %115 : vector<8x32xf32>
    %117 = math.exp %116 : vector<8x32xf32>
    %cst_59 = arith.constant 1.000000e+00 : f32
    %118 = vector.broadcast %cst_59 : f32 to vector<8x32xf32>
    %119 = arith.addf %118, %117 : vector<8x32xf32>
    %120 = arith.divf %118, %119 : vector<8x32xf32>
    %121 = vector.extract_strided_slice %108 {offsets = [0, 64], sizes = [8, 32], strides = [1, 1]} : vector<8x128xf32> to vector<8x32xf32>
    %122 = math.tanh %121 : vector<8x32xf32>
    %123 = vector.extract_strided_slice %108 {offsets = [0, 96], sizes = [8, 32], strides = [1, 1]} : vector<8x128xf32> to vector<8x32xf32>
    %124 = arith.negf %123 : vector<8x32xf32>
    %125 = math.exp %124 : vector<8x32xf32>
    %cst_60 = arith.constant 1.000000e+00 : f32
    %126 = vector.broadcast %cst_60 : f32 to vector<8x32xf32>
    %127 = arith.addf %126, %125 : vector<8x32xf32>
    %128 = arith.divf %126, %127 : vector<8x32xf32>
    %129 = arith.mulf %120, %62 : vector<8x32xf32>
    %130 = arith.mulf %114, %122 : vector<8x32xf32>
    %131 = arith.addf %129, %130 : vector<8x32xf32>
    %132 = math.tanh %131 : vector<8x32xf32>
    %133 = arith.mulf %128, %132 : vector<8x32xf32>
    %134 = arith.truncf %133 : vector<8x32xf32> to vector<8x32xbf16>
    %135 = arith.index_cast %104 : i32 to index
    %c0_61 = arith.constant 0 : index
    %136 = vector.load %arg16[%135, %c0_61] : memref<32x128xf32, #tpu.memory_space<vmem>>, vector<8x128xf32>
    %cst_62 = arith.constant dense<0.000000e+00> : vector<8x128xf32>
    %137 = tpu.matmul %95, %26, %cst_62 {dimension_numbers = #tpu.dot_dimension_numbers<[1], [0], [0], [1], [0, 0, 1, 1], [], []>} : vector<8x32xbf16>, vector<32x128xbf16>, vector<8x128xf32> -> vector<8x128xf32>
    %138 = arith.addf %136, %137 : vector<8x128xf32>
    %139 = vector.extract_strided_slice %138 {offsets = [0, 0], sizes = [8, 32], strides = [1, 1]} : vector<8x128xf32> to vector<8x32xf32>
    %140 = arith.negf %139 : vector<8x32xf32>
    %141 = math.exp %140 : vector<8x32xf32>
    %cst_63 = arith.constant 1.000000e+00 : f32
    %142 = vector.broadcast %cst_63 : f32 to vector<8x32xf32>
    %143 = arith.addf %142, %141 : vector<8x32xf32>
    %144 = arith.divf %142, %143 : vector<8x32xf32>
    %145 = vector.extract_strided_slice %138 {offsets = [0, 32], sizes = [8, 32], strides = [1, 1]} : vector<8x128xf32> to vector<8x32xf32>
    %146 = arith.negf %145 : vector<8x32xf32>
    %147 = math.exp %146 : vector<8x32xf32>
    %cst_64 = arith.constant 1.000000e+00 : f32
    %148 = vector.broadcast %cst_64 : f32 to vector<8x32xf32>
    %149 = arith.addf %148, %147 : vector<8x32xf32>
    %150 = arith.divf %148, %149 : vector<8x32xf32>
    %151 = vector.extract_strided_slice %138 {offsets = [0, 64], sizes = [8, 32], strides = [1, 1]} : vector<8x128xf32> to vector<8x32xf32>
    %152 = math.tanh %151 : vector<8x32xf32>
    %153 = vector.extract_strided_slice %138 {offsets = [0, 96], sizes = [8, 32], strides = [1, 1]} : vector<8x128xf32> to vector<8x32xf32>
    %154 = arith.negf %153 : vector<8x32xf32>
    %155 = math.exp %154 : vector<8x32xf32>
    %cst_65 = arith.constant 1.000000e+00 : f32
    %156 = vector.broadcast %cst_65 : f32 to vector<8x32xf32>
    %157 = arith.addf %156, %155 : vector<8x32xf32>
    %158 = arith.divf %156, %157 : vector<8x32xf32>
    %159 = arith.mulf %150, %92 : vector<8x32xf32>
    %160 = arith.mulf %144, %152 : vector<8x32xf32>
    %161 = arith.addf %159, %160 : vector<8x32xf32>
    %162 = math.tanh %161 : vector<8x32xf32>
    %163 = arith.mulf %158, %162 : vector<8x32xf32>
    %164 = arith.truncf %163 : vector<8x32xf32> to vector<8x32xbf16>
    %165 = arith.index_cast %102 : i32 to index
    %c0_66 = arith.constant 0 : index
    %166 = vector.load %arg13[%165, %c0_66] : memref<32x32xbf16, #tpu.memory_space<vmem>>, vector<8x32xbf16>
    tpu.vector_store %arg13[%165, %c0_66], %134 {strides = array<i32>} : memref<32x32xbf16, #tpu.memory_space<vmem>>, vector<8x32xbf16>,
    %167 = arith.index_cast %104 : i32 to index
    %c0_67 = arith.constant 0 : index
    %168 = vector.load %arg14[%167, %c0_67] : memref<32x32xbf16, #tpu.memory_space<vmem>>, vector<8x32xbf16>
    tpu.vector_store %arg14[%167, %c0_67], %164 {strides = array<i32>} : memref<32x32xbf16, #tpu.memory_space<vmem>>, vector<8x32xbf16>,
    %c2_i32 = arith.constant 2 : i32
    %c3_i32_68 = arith.constant 3 : i32
    %169 = arith.subi %c3_i32_68, %c2_i32 : i32
    %c8_i32_69 = arith.constant 8 : i32
    %170 = arith.muli %c2_i32, %c8_i32_69 : i32
    %171 = tpu.assume_multiple %170, 8 : i32
    %c8_i32_70 = arith.constant 8 : i32
    %172 = arith.muli %169, %c8_i32_70 : i32
    %173 = tpu.assume_multiple %172, 8 : i32
    %174 = arith.index_cast %171 : i32 to index
    %c0_71 = arith.constant 0 : index
    %175 = vector.load %arg15[%174, %c0_71] : memref<32x128xf32, #tpu.memory_space<vmem>>, vector<8x128xf32>
    %cst_72 = arith.constant dense<0.000000e+00> : vector<8x128xf32>
    %176 = tpu.matmul %134, %25, %cst_72 {dimension_numbers = #tpu.dot_dimension_numbers<[1], [0], [0], [1], [0, 0, 1, 1], [], []>} : vector<8x32xbf16>, vector<32x128xbf16>, vector<8x128xf32> -> vector<8x128xf32>
    %177 = arith.addf %175, %176 : vector<8x128xf32>
    %178 = vector.extract_strided_slice %177 {offsets = [0, 0], sizes = [8, 32], strides = [1, 1]} : vector<8x128xf32> to vector<8x32xf32>
    %179 = arith.negf %178 : vector<8x32xf32>
    %180 = math.exp %179 : vector<8x32xf32>
    %cst_73 = arith.constant 1.000000e+00 : f32
    %181 = vector.broadcast %cst_73 : f32 to vector<8x32xf32>
    %182 = arith.addf %181, %180 : vector<8x32xf32>
    %183 = arith.divf %181, %182 : vector<8x32xf32>
    %184 = vector.extract_strided_slice %177 {offsets = [0, 32], sizes = [8, 32], strides = [1, 1]} : vector<8x128xf32> to vector<8x32xf32>
    %185 = arith.negf %184 : vector<8x32xf32>
    %186 = math.exp %185 : vector<8x32xf32>
    %cst_74 = arith.constant 1.000000e+00 : f32
    %187 = vector.broadcast %cst_74 : f32 to vector<8x32xf32>
    %188 = arith.addf %187, %186 : vector<8x32xf32>
    %189 = arith.divf %187, %188 : vector<8x32xf32>
    %190 = vector.extract_strided_slice %177 {offsets = [0, 64], sizes = [8, 32], strides = [1, 1]} : vector<8x128xf32> to vector<8x32xf32>
    %191 = math.tanh %190 : vector<8x32xf32>
    %192 = vector.extract_strided_slice %177 {offsets = [0, 96], sizes = [8, 32], strides = [1, 1]} : vector<8x128xf32> to vector<8x32xf32>
    %193 = arith.negf %192 : vector<8x32xf32>
    %194 = math.exp %193 : vector<8x32xf32>
    %cst_75 = arith.constant 1.000000e+00 : f32
    %195 = vector.broadcast %cst_75 : f32 to vector<8x32xf32>
    %196 = arith.addf %195, %194 : vector<8x32xf32>
    %197 = arith.divf %195, %196 : vector<8x32xf32>
    %198 = arith.mulf %189, %131 : vector<8x32xf32>
    %199 = arith.mulf %183, %191 : vector<8x32xf32>
    %200 = arith.addf %198, %199 : vector<8x32xf32>
    %201 = math.tanh %200 : vector<8x32xf32>
    %202 = arith.mulf %197, %201 : vector<8x32xf32>
    %203 = arith.truncf %202 : vector<8x32xf32> to vector<8x32xbf16>
    %204 = arith.index_cast %173 : i32 to index
    %c0_76 = arith.constant 0 : index
    %205 = vector.load %arg16[%204, %c0_76] : memref<32x128xf32, #tpu.memory_space<vmem>>, vector<8x128xf32>
    %cst_77 = arith.constant dense<0.000000e+00> : vector<8x128xf32>
    %206 = tpu.matmul %164, %26, %cst_77 {dimension_numbers = #tpu.dot_dimension_numbers<[1], [0], [0], [1], [0, 0, 1, 1], [], []>} : vector<8x32xbf16>, vector<32x128xbf16>, vector<8x128xf32> -> vector<8x128xf32>
    %207 = arith.addf %205, %206 : vector<8x128xf32>
    %208 = vector.extract_strided_slice %207 {offsets = [0, 0], sizes = [8, 32], strides = [1, 1]} : vector<8x128xf32> to vector<8x32xf32>
    %209 = arith.negf %208 : vector<8x32xf32>
    %210 = math.exp %209 : vector<8x32xf32>
    %cst_78 = arith.constant 1.000000e+00 : f32
    %211 = vector.broadcast %cst_78 : f32 to vector<8x32xf32>
    %212 = arith.addf %211, %210 : vector<8x32xf32>
    %213 = arith.divf %211, %212 : vector<8x32xf32>
    %214 = vector.extract_strided_slice %207 {offsets = [0, 32], sizes = [8, 32], strides = [1, 1]} : vector<8x128xf32> to vector<8x32xf32>
    %215 = arith.negf %214 : vector<8x32xf32>
    %216 = math.exp %215 : vector<8x32xf32>
    %cst_79 = arith.constant 1.000000e+00 : f32
    %217 = vector.broadcast %cst_79 : f32 to vector<8x32xf32>
    %218 = arith.addf %217, %216 : vector<8x32xf32>
    %219 = arith.divf %217, %218 : vector<8x32xf32>
    %220 = vector.extract_strided_slice %207 {offsets = [0, 64], sizes = [8, 32], strides = [1, 1]} : vector<8x128xf32> to vector<8x32xf32>
    %221 = math.tanh %220 : vector<8x32xf32>
    %222 = vector.extract_strided_slice %207 {offsets = [0, 96], sizes = [8, 32], strides = [1, 1]} : vector<8x128xf32> to vector<8x32xf32>
    %223 = arith.negf %222 : vector<8x32xf32>
    %224 = math.exp %223 : vector<8x32xf32>
    %cst_80 = arith.constant 1.000000e+00 : f32
    %225 = vector.broadcast %cst_80 : f32 to vector<8x32xf32>
    %226 = arith.addf %225, %224 : vector<8x32xf32>
    %227 = arith.divf %225, %226 : vector<8x32xf32>
    %228 = arith.mulf %219, %161 : vector<8x32xf32>
    %229 = arith.mulf %213, %221 : vector<8x32xf32>
    %230 = arith.addf %228, %229 : vector<8x32xf32>
    %231 = math.tanh %230 : vector<8x32xf32>
    %232 = arith.mulf %227, %231 : vector<8x32xf32>
    %233 = arith.truncf %232 : vector<8x32xf32> to vector<8x32xbf16>
    %234 = arith.index_cast %171 : i32 to index
    %c0_81 = arith.constant 0 : index
    %235 = vector.load %arg13[%234, %c0_81] : memref<32x32xbf16, #tpu.memory_space<vmem>>, vector<8x32xbf16>
    tpu.vector_store %arg13[%234, %c0_81], %203 {strides = array<i32>} : memref<32x32xbf16, #tpu.memory_space<vmem>>, vector<8x32xbf16>,
    %236 = arith.index_cast %173 : i32 to index
    %c0_82 = arith.constant 0 : index
    %237 = vector.load %arg14[%236, %c0_82] : memref<32x32xbf16, #tpu.memory_space<vmem>>, vector<8x32xbf16>
    tpu.vector_store %arg14[%236, %c0_82], %233 {strides = array<i32>} : memref<32x32xbf16, #tpu.memory_space<vmem>>, vector<8x32xbf16>,
    %c3_i32_83 = arith.constant 3 : i32
    %c3_i32_84 = arith.constant 3 : i32
    %238 = arith.subi %c3_i32_84, %c3_i32_83 : i32
    %c8_i32_85 = arith.constant 8 : i32
    %239 = arith.muli %c3_i32_83, %c8_i32_85 : i32
    %240 = tpu.assume_multiple %239, 8 : i32
    %c8_i32_86 = arith.constant 8 : i32
    %241 = arith.muli %238, %c8_i32_86 : i32
    %242 = tpu.assume_multiple %241, 8 : i32
    %243 = arith.index_cast %240 : i32 to index
    %c0_87 = arith.constant 0 : index
    %244 = vector.load %arg15[%243, %c0_87] : memref<32x128xf32, #tpu.memory_space<vmem>>, vector<8x128xf32>
    %cst_88 = arith.constant dense<0.000000e+00> : vector<8x128xf32>
    %245 = tpu.matmul %203, %25, %cst_88 {dimension_numbers = #tpu.dot_dimension_numbers<[1], [0], [0], [1], [0, 0, 1, 1], [], []>} : vector<8x32xbf16>, vector<32x128xbf16>, vector<8x128xf32> -> vector<8x128xf32>
    %246 = arith.addf %244, %245 : vector<8x128xf32>
    %247 = vector.extract_strided_slice %246 {offsets = [0, 0], sizes = [8, 32], strides = [1, 1]} : vector<8x128xf32> to vector<8x32xf32>
    %248 = arith.negf %247 : vector<8x32xf32>
    %249 = math.exp %248 : vector<8x32xf32>
    %cst_89 = arith.constant 1.000000e+00 : f32
    %250 = vector.broadcast %cst_89 : f32 to vector<8x32xf32>
    %251 = arith.addf %250, %249 : vector<8x32xf32>
    %252 = arith.divf %250, %251 : vector<8x32xf32>
    %253 = vector.extract_strided_slice %246 {offsets = [0, 32], sizes = [8, 32], strides = [1, 1]} : vector<8x128xf32> to vector<8x32xf32>
    %254 = arith.negf %253 : vector<8x32xf32>
    %255 = math.exp %254 : vector<8x32xf32>
    %cst_90 = arith.constant 1.000000e+00 : f32
    %256 = vector.broadcast %cst_90 : f32 to vector<8x32xf32>
    %257 = arith.addf %256, %255 : vector<8x32xf32>
    %258 = arith.divf %256, %257 : vector<8x32xf32>
    %259 = vector.extract_strided_slice %246 {offsets = [0, 64], sizes = [8, 32], strides = [1, 1]} : vector<8x128xf32> to vector<8x32xf32>
    %260 = math.tanh %259 : vector<8x32xf32>
    %261 = vector.extract_strided_slice %246 {offsets = [0, 96], sizes = [8, 32], strides = [1, 1]} : vector<8x128xf32> to vector<8x32xf32>
    %262 = arith.negf %261 : vector<8x32xf32>
    %263 = math.exp %262 : vector<8x32xf32>
    %cst_91 = arith.constant 1.000000e+00 : f32
    %264 = vector.broadcast %cst_91 : f32 to vector<8x32xf32>
    %265 = arith.addf %264, %263 : vector<8x32xf32>
    %266 = arith.divf %264, %265 : vector<8x32xf32>
    %267 = arith.mulf %258, %200 : vector<8x32xf32>
    %268 = arith.mulf %252, %260 : vector<8x32xf32>
    %269 = arith.addf %267, %268 : vector<8x32xf32>
    %270 = math.tanh %269 : vector<8x32xf32>
    %271 = arith.mulf %266, %270 : vector<8x32xf32>
    %272 = arith.truncf %271 : vector<8x32xf32> to vector<8x32xbf16>
    %273 = arith.index_cast %242 : i32 to index
    %c0_92 = arith.constant 0 : index
    %274 = vector.load %arg16[%273, %c0_92] : memref<32x128xf32, #tpu.memory_space<vmem>>, vector<8x128xf32>
    %cst_93 = arith.constant dense<0.000000e+00> : vector<8x128xf32>
    %275 = tpu.matmul %233, %26, %cst_93 {dimension_numbers = #tpu.dot_dimension_numbers<[1], [0], [0], [1], [0, 0, 1, 1], [], []>} : vector<8x32xbf16>, vector<32x128xbf16>, vector<8x128xf32> -> vector<8x128xf32>
    %276 = arith.addf %274, %275 : vector<8x128xf32>
    %277 = vector.extract_strided_slice %276 {offsets = [0, 0], sizes = [8, 32], strides = [1, 1]} : vector<8x128xf32> to vector<8x32xf32>
    %278 = arith.negf %277 : vector<8x32xf32>
    %279 = math.exp %278 : vector<8x32xf32>
    %cst_94 = arith.constant 1.000000e+00 : f32
    %280 = vector.broadcast %cst_94 : f32 to vector<8x32xf32>
    %281 = arith.addf %280, %279 : vector<8x32xf32>
    %282 = arith.divf %280, %281 : vector<8x32xf32>
    %283 = vector.extract_strided_slice %276 {offsets = [0, 32], sizes = [8, 32], strides = [1, 1]} : vector<8x128xf32> to vector<8x32xf32>
    %284 = arith.negf %283 : vector<8x32xf32>
    %285 = math.exp %284 : vector<8x32xf32>
    %cst_95 = arith.constant 1.000000e+00 : f32
    %286 = vector.broadcast %cst_95 : f32 to vector<8x32xf32>
    %287 = arith.addf %286, %285 : vector<8x32xf32>
    %288 = arith.divf %286, %287 : vector<8x32xf32>
    %289 = vector.extract_strided_slice %276 {offsets = [0, 64], sizes = [8, 32], strides = [1, 1]} : vector<8x128xf32> to vector<8x32xf32>
    %290 = math.tanh %289 : vector<8x32xf32>
    %291 = vector.extract_strided_slice %276 {offsets = [0, 96], sizes = [8, 32], strides = [1, 1]} : vector<8x128xf32> to vector<8x32xf32>
    %292 = arith.negf %291 : vector<8x32xf32>
    %293 = math.exp %292 : vector<8x32xf32>
    %cst_96 = arith.constant 1.000000e+00 : f32
    %294 = vector.broadcast %cst_96 : f32 to vector<8x32xf32>
    %295 = arith.addf %294, %293 : vector<8x32xf32>
    %296 = arith.divf %294, %295 : vector<8x32xf32>
    %297 = arith.mulf %288, %230 : vector<8x32xf32>
    %298 = arith.mulf %282, %290 : vector<8x32xf32>
    %299 = arith.addf %297, %298 : vector<8x32xf32>
    %300 = math.tanh %299 : vector<8x32xf32>
    %301 = arith.mulf %296, %300 : vector<8x32xf32>
    %302 = arith.truncf %301 : vector<8x32xf32> to vector<8x32xbf16>
    %303 = arith.index_cast %240 : i32 to index
    %c0_97 = arith.constant 0 : index
    %304 = vector.load %arg13[%303, %c0_97] : memref<32x32xbf16, #tpu.memory_space<vmem>>, vector<8x32xbf16>
    tpu.vector_store %arg13[%303, %c0_97], %272 {strides = array<i32>} : memref<32x32xbf16, #tpu.memory_space<vmem>>, vector<8x32xbf16>,
    %305 = arith.index_cast %242 : i32 to index
    %c0_98 = arith.constant 0 : index
    %306 = vector.load %arg14[%305, %c0_98] : memref<32x32xbf16, #tpu.memory_space<vmem>>, vector<8x32xbf16>
    tpu.vector_store %arg14[%305, %c0_98], %302 {strides = array<i32>} : memref<32x32xbf16, #tpu.memory_space<vmem>>, vector<8x32xbf16>,
    %c4_i32 = arith.constant 4 : i32
    %c0_99 = arith.constant 0 : index
    %c0_100 = arith.constant 0 : index
    %307 = vector.load %arg17[%c0_99, %c0_100] : memref<8x32xbf16, #tpu.memory_space<vmem>>, vector<8x32xbf16>
    tpu.vector_store %arg17[%c0_99, %c0_100], %272 {strides = array<i32>} : memref<8x32xbf16, #tpu.memory_space<vmem>>, vector<8x32xbf16>,
    %c0_101 = arith.constant 0 : index
    %c0_102 = arith.constant 0 : index
    %308 = vector.load %arg18[%c0_101, %c0_102] : memref<8x32xf32, #tpu.memory_space<vmem>>, vector<8x32xf32>
    tpu.vector_store %arg18[%c0_101, %c0_102], %269 {strides = array<i32>} : memref<8x32xf32, #tpu.memory_space<vmem>>, vector<8x32xf32>,
    %c0_103 = arith.constant 0 : index
    %c0_104 = arith.constant 0 : index
    %309 = vector.load %arg19[%c0_103, %c0_104] : memref<8x32xbf16, #tpu.memory_space<vmem>>, vector<8x32xbf16>
    tpu.vector_store %arg19[%c0_103, %c0_104], %302 {strides = array<i32>} : memref<8x32xbf16, #tpu.memory_space<vmem>>, vector<8x32xbf16>,
    %c0_105 = arith.constant 0 : index
    %c0_106 = arith.constant 0 : index
    %310 = vector.load %arg20[%c0_105, %c0_106] : memref<8x32xf32, #tpu.memory_space<vmem>>, vector<8x32xf32>
    tpu.vector_store %arg20[%c0_105, %c0_106], %299 {strides = array<i32>} : memref<8x32xf32, #tpu.memory_space<vmem>>, vector<8x32xf32>,
    return
  }
  func.func @transform_0(%arg0: i32) -> (i32, i32) {
    %c0_i32 = arith.constant 0 : i32
    %c0_i32_0 = arith.constant 0 : i32
    return %arg0, %c0_i32 : i32, i32
  }
  func.func @transform_1(%arg0: i32) -> (i32, i32) {
    %c0_i32 = arith.constant 0 : i32
    %c0_i32_0 = arith.constant 0 : i32
    return %arg0, %c0_i32 : i32, i32
  }
  func.func @transform_2(%arg0: i32) -> (i32, i32) {
    %c1_i32 = arith.constant 1 : i32
    %0 = arith.subi %c1_i32, %arg0 : i32
    %c0_i32 = arith.constant 0 : i32
    %c0_i32_0 = arith.constant 0 : i32
    return %0, %c0_i32 : i32, i32
  }
  func.func @transform_3(%arg0: i32) -> (i32, i32) {
    %c1_i32 = arith.constant 1 : i32
    %0 = arith.subi %c1_i32, %arg0 : i32
    %c0_i32 = arith.constant 0 : i32
    %c0_i32_0 = arith.constant 0 : i32
    return %0, %c0_i32 : i32, i32
  }
  func.func @transform_4(%arg0: i32) -> (i32, i32) {
    %c0_i32 = arith.constant 0 : i32
    %c0_i32_0 = arith.constant 0 : i32
    %c0_i32_1 = arith.constant 0 : i32
    return %c0_i32, %c0_i32_0 : i32, i32
  }
  func.func @transform_5(%arg0: i32) -> (i32, i32) {
    %c0_i32 = arith.constant 0 : i32
    %c0_i32_0 = arith.constant 0 : i32
    %c0_i32_1 = arith.constant 0 : i32
    return %c0_i32, %c0_i32_0 : i32, i32
  }
  func.func @transform_6(%arg0: i32) -> (i32, i32) {
    %c0_i32 = arith.constant 0 : i32
    %c0_i32_0 = arith.constant 0 : i32
    %c0_i32_1 = arith.constant 0 : i32
    return %c0_i32, %c0_i32_0 : i32, i32
  }
  func.func @transform_7(%arg0: i32) -> (i32, i32) {
    %c0_i32 = arith.constant 0 : i32
    %c0_i32_0 = arith.constant 0 : i32
    %c0_i32_1 = arith.constant 0 : i32
    return %c0_i32, %c0_i32_0 : i32, i32
  }
  func.func @transform_8(%arg0: i32) -> (i32, i32) {
    %c0_i32 = arith.constant 0 : i32
    %c0_i32_0 = arith.constant 0 : i32
    %c0_i32_1 = arith.constant 0 : i32
    return %c0_i32, %c0_i32_0 : i32, i32
  }
  func.func @transform_9(%arg0: i32) -> (i32, i32) {
    %c0_i32 = arith.constant 0 : i32
    %c0_i32_0 = arith.constant 0 : i32
    %c0_i32_1 = arith.constant 0 : i32
    return %c0_i32, %c0_i32_0 : i32, i32
  }
  func.func @transform_10(%arg0: i32) -> (i32, i32) {
    %c0_i32 = arith.constant 0 : i32
    %c0_i32_0 = arith.constant 0 : i32
    %c0_i32_1 = arith.constant 0 : i32
    return %c0_i32, %c0_i32_0 : i32, i32
  }
  func.func @transform_11(%arg0: i32) -> (i32, i32) {
    %c0_i32 = arith.constant 0 : i32
    %c0_i32_0 = arith.constant 0 : i32
    %c0_i32_1 = arith.constant 0 : i32
    return %c0_i32, %c0_i32_0 : i32, i32
  }
  func.func @transform_12(%arg0: i32) -> (i32, i32) {
    %c0_i32 = arith.constant 0 : i32
    %c0_i32_0 = arith.constant 0 : i32
    return %arg0, %c0_i32 : i32, i32
  }
  func.func @transform_13(%arg0: i32) -> (i32, i32) {
    %c1_i32 = arith.constant 1 : i32
    %0 = arith.subi %c1_i32, %arg0 : i32
    %c0_i32 = arith.constant 0 : i32
    %c0_i32_0 = arith.constant 0 : i32
    return %0, %c0_i32 : i32, i32
  }
}

</mosaic_0001>

<llo_original>
// kernel: vae_encoder_forward.3
$region0: #{vae_encoder_forward.3}
  #allocation0 [shape = 'u32[]', space=smem, size = 0x4, offset = 0x4, fixed_abs, tag = 'smem constant byte address 0x4 - core index']
  #allocation1 [shape = 'u32[144,128]{1,0:T(1,128)}', space=vmem, size = 0x12000, scoped, tag = 'internal scratch']
  #allocation2 [shape = 'f32[32,128]{1,0:T(8,128)}', space=vmem, size = 0x4000, scoped, tag = 'scratch operand']
  #allocation3 [shape = 'f32[32,128]{1,0:T(8,128)}', space=vmem, size = 0x4000, scoped, tag = 'scratch operand']
  #allocation4 [shape = 'bf16[8,32]{1,0:T(8,128)(2,1)}', space=vmem, size = 0x800, scoped, tag = 'scratch operand']
  #allocation5 [shape = 'f32[8,32]{1,0:T(8,128)}', space=vmem, size = 0x1000, scoped, tag = 'scratch operand']
  #allocation6 [shape = 'bf16[8,32]{1,0:T(8,128)(2,1)}', space=vmem, size = 0x800, scoped, tag = 'scratch operand']
  #allocation7 [shape = 'f32[8,32]{1,0:T(8,128)}', space=vmem, size = 0x1000, scoped, tag = 'scratch operand']
  #allocation8 [shape = 'bf16[8,32]{1,0:T(8,128)(2,1)}', space=vmem, size = 0x800, scoped, tag = 'scratch operand']
  %s0 = inlined_call_operand.vmem [shape: bf16[64,32], index: 0, kind: input, shape index: {}, may-alias: {0,2}]
  %s1 = inlined_call_operand.vmem [shape: bf16[64,32], index: 1, kind: input, shape index: {}, may-alias: {1,3}]
  %s2 = inlined_call_operand.vmem [shape: bf16[64,32], index: 2, kind: input, shape index: {}, may-alias: {0,2}]
  %s3 = inlined_call_operand.vmem [shape: bf16[64,32], index: 3, kind: input, shape index: {}, may-alias: {1,3}]
  %s4 = inlined_call_operand.vmem [shape: bf16[32,128], index: 4, kind: input, shape index: {}]
  %s5 = inlined_call_operand.vmem [shape: bf16[32,128], index: 5, kind: input, shape index: {}]
  %s6 = inlined_call_operand.vmem [shape: bf16[32,128], index: 6, kind: input, shape index: {}]
  %s7 = inlined_call_operand.vmem [shape: bf16[32,128], index: 7, kind: input, shape index: {}]
  %s8 = inlined_call_operand.vmem [shape: bf16[32,128], index: 8, kind: input, shape index: {}]
  %s9 = inlined_call_operand.vmem [shape: bf16[32,128], index: 9, kind: input, shape index: {}]
  %s10 = inlined_call_operand.vmem [shape: f32[1,128], index: 10, kind: input, shape index: {}]
  %s11 = inlined_call_operand.vmem [shape: f32[1,128], index: 11, kind: input, shape index: {}]
  %s12 = inlined_call_operand.vmem [shape: bf16[64,32], index: 12, kind: input, shape index: {}]
  %s13 = inlined_call_operand.vmem [shape: f32[1,32], index: 13, kind: input, shape index: {}]
  %s14 = inlined_call_operand.vmem [shape: f32[8,32], index: 14, kind: output, shape index: {}]
  %s15 = sld [smem:[#allocation0]]
  $region101: #{vae_encoder_forward.3} parent=0
    _
  %s17 = ssub.s32 1, %s15
  %s18 = scalar_select 0, %s17, %s15
  loop: start=0, step=1, limit=4
  $region2: #{vae_encoder_forward.3} parent=0 // loop_pre_header
    _
  $region3: #{vae_encoder_forward.3} parent=0 // loop_header
    %s20 = sphi 0, %s24
    %p21 = scmp.ge.s32.totalorder %s20, 4
    %s30 = sphi 0, %s32
    %s33 = sphi 0, %s30
    %s34 = sphi 0, %s33
    %s50 = sphi 0, %s34
    %s56 = sphi 0, %s58
    %s59 = sphi 0, %s56
    %s60 = sphi 0, %s59
    %s76 = sphi 0, %s60
    %s84 = sphi 0, %s86
    %s87 = sphi 0, %s84
    %s88 = sphi 0, %s87
    %s104 = sphi 0, %s88
    %s112 = sphi 0, %s114
    %s115 = sphi 0, %s112
    %s116 = sphi 0, %s115
    %s132 = sphi 0, %s116
    %s136 = sphi 0, %s136
    %s138 = sphi 0, %s136
    %s139 = sphi 0, %s138
    %s153 = sphi 0, %s139
    %s157 = sphi 0, %s157
    %s159 = sphi 0, %s157
    %s160 = sphi 0, %s159
    %s174 = sphi 0, %s160
    %s178 = sphi 0, %s178
    %s180 = sphi 0, %s178
    %s181 = sphi 0, %s180
    %s195 = sphi 0, %s181
    %s199 = sphi 0, %s199
    %s201 = sphi 0, %s199
    %s202 = sphi 0, %s201
    %s216 = sphi 0, %s202
    %s220 = sphi 0, %s220
    %s222 = sphi 0, %s220
    %s223 = sphi 0, %s222
    %s237 = sphi 0, %s223
    %s241 = sphi 0, %s241
    %s243 = sphi 0, %s241
    %s244 = sphi 0, %s243
    %s258 = sphi 0, %s244
    %s262 = sphi 0, %s262
    %s264 = sphi 0, %s262
    %s265 = sphi 0, %s264
    %s279 = sphi 0, %s265
    %s283 = sphi 0, %s283
    %s285 = sphi 0, %s283
    %s286 = sphi 0, %s285
    %s300 = sphi 0, %s286
    %s304 = sphi 0, %s304
    %s306 = sphi 0, %s304
    %s307 = sphi 0, %s306
    %s321 = sphi 0, %s307
    %s325 = sphi 0, %s325
    %s327 = sphi 0, %s325
    %s328 = sphi 0, %s327
    %s342 = sphi 0, %s328
    %s346 = sphi 0, %s346
    %s348 = sphi 0, %s346
    %s349 = sphi 0, %s348
    %s363 = sphi 0, %s349
  $region4: #{vae_encoder_forward.3} parent=0 // loop_header_branch
    %23 = sbr.rel (%p21) target = $region8
  $region5: #{vae_encoder_forward.3} parent=0 // loop_body
    %s25 = ssub.s32 %s20, 1
    %s26 = ssub.s32 %s20, 2
    %s27 = sadd.s32 %s20, 1
    %s28 = ssub.s32 %s20, %s27
    %p29 = scmp.eq.s32.totalorder %s28, 0
    %s31 = sadd.s32 %s30, 1
    %s32 = scalar_select %p29, %s30, %s31
    %p35 = pneg %p29
    %p36 = scmp.eq.s32.totalorder %s20, 1
    %p37 = por %p35, %p36
    %p38 = scmp.ne.s32.totalorder %s30, %s33
    %p39 = scmp.eq.s32.totalorder %s20, 0
    %p40 = por %p38, %p39
    %p41 = scmp.ne.s32.totalorder %s30, %s33
    %p42 = scmp.eq.s32.totalorder %s25, 1
    %p43 = por %p41, %p42
    %p44 = scmp.ne.s32.totalorder %s33, %s34
    %p45 = scmp.eq.s32.totalorder %s25, 0
    %p46 = por %p44, %p45
    %p47 = scmp.ne.s32.totalorder %s33, %s34
    %p48 = scmp.eq.s32.totalorder %s26, 1
    %p49 = por %p47, %p48
    %p51 = scmp.ne.s32.totalorder %s34, %s50
    %p52 = scmp.eq.s32.totalorder %s26, 0
    %p53 = por %p51, %p52
    %s54 = ssub.s32 %s20, %s27
    %p55 = scmp.eq.s32.totalorder %s54, 0
    %s57 = sadd.s32 %s56, 1
    %s58 = scalar_select %p55, %s56, %s57
    %p61 = pneg %p55
    %p62 = scmp.eq.s32.totalorder %s20, 1
    %p63 = por %p61, %p62
    %p64 = scmp.ne.s32.totalorder %s56, %s59
    %p65 = scmp.eq.s32.totalorder %s20, 0
    %p66 = por %p64, %p65
    %p67 = scmp.ne.s32.totalorder %s56, %s59
    %p68 = scmp.eq.s32.totalorder %s25, 1
    %p69 = por %p67, %p68
    %p70 = scmp.ne.s32.totalorder %s59, %s60
    %p71 = scmp.eq.s32.totalorder %s25, 0
    %p72 = por %p70, %p71
    %p73 = scmp.ne.s32.totalorder %s59, %s60
    %p74 = scmp.eq.s32.totalorder %s26, 1
    %p75 = por %p73, %p74
    %p77 = scmp.ne.s32.totalorder %s60, %s76
    %p78 = scmp.eq.s32.totalorder %s26, 0
    %p79 = por %p77, %p78
    %s80 = ssub.s32 1, %s20
    %s81 = ssub.s32 1, %s27
    %s82 = ssub.s32 %s80, %s81
    %p83 = scmp.eq.s32.totalorder %s82, 0
    %s85 = sadd.s32 %s84, 1
    %s86 = scalar_select %p83, %s84, %s85
    %p89 = pneg %p83
    %p90 = scmp.eq.s32.totalorder %s20, 1
    %p91 = por %p89, %p90
    %p92 = scmp.ne.s32.totalorder %s84, %s87
    %p93 = scmp.eq.s32.totalorder %s20, 0
    %p94 = por %p92, %p93
    %p95 = scmp.ne.s32.totalorder %s84, %s87
    %p96 = scmp.eq.s32.totalorder %s25, 1
    %p97 = por %p95, %p96
    %p98 = scmp.ne.s32.totalorder %s87, %s88
    %p99 = scmp.eq.s32.totalorder %s25, 0
    %p100 = por %p98, %p99
    %p101 = scmp.ne.s32.totalorder %s87, %s88
    %p102 = scmp.eq.s32.totalorder %s26, 1
    %p103 = por %p101, %p102
    %p105 = scmp.ne.s32.totalorder %s88, %s104
    %p106 = scmp.eq.s32.totalorder %s26, 0
    %p107 = por %p105, %p106
    %s108 = ssub.s32 1, %s20
    %s109 = ssub.s32 1, %s27
    %s110 = ssub.s32 %s108, %s109
    %p111 = scmp.eq.s32.totalorder %s110, 0
    %s113 = sadd.s32 %s112, 1
    %s114 = scalar_select %p111, %s112, %s113
    %p117 = pneg %p111
    %p118 = scmp.eq.s32.totalorder %s20, 1
    %p119 = por %p117, %p118
    %p120 = scmp.ne.s32.totalorder %s112, %s115
    %p121 = scmp.eq.s32.totalorder %s20, 0
    %p122 = por %p120, %p121
    %p123 = scmp.ne.s32.totalorder %s112, %s115
    %p124 = scmp.eq.s32.totalorder %s25, 1
    %p125 = por %p123, %p124
    %p126 = scmp.ne.s32.totalorder %s115, %s116
    %p127 = scmp.eq.s32.totalorder %s25, 0
    %p128 = por %p126, %p127
    %p129 = scmp.ne.s32.totalorder %s115, %s116
    %p130 = scmp.eq.s32.totalorder %s26, 1
    %p131 = por %p129, %p130
    %p133 = scmp.ne.s32.totalorder %s116, %s132
    %p134 = scmp.eq.s32.totalorder %s26, 0
    %p135 = por %p133, %p134
    %s137 = sadd.s32 %s136, 1
    %p140 = scmp.eq.s32.totalorder %s20, 1
    %p141 = scmp.ne.s32.totalorder %s136, %s138
    %p142 = scmp.eq.s32.totalorder %s20, 0
    %p143 = por %p141, %p142
    %p144 = scmp.ne.s32.totalorder %s136, %s138
    %p145 = scmp.eq.s32.totalorder %s25, 1
    %p146 = por %p144, %p145
    %p147 = scmp.ne.s32.totalorder %s138, %s139
    %p148 = scmp.eq.s32.totalorder %s25, 0
    %p149 = por %p147, %p148
    %p150 = scmp.ne.s32.totalorder %s138, %s139
    %p151 = scmp.eq.s32.totalorder %s26, 1
    %p152 = por %p150, %p151
    %p154 = scmp.ne.s32.totalorder %s139, %s153
    %p155 = scmp.eq.s32.totalorder %s26, 0
    %p156 = por %p154, %p155
    %s158 = sadd.s32 %s157, 1
    %p161 = scmp.eq.s32.totalorder %s20, 1
    %p162 = scmp.ne.s32.totalorder %s157, %s159
    %p163 = scmp.eq.s32.totalorder %s20, 0
    %p164 = por %p162, %p163
    %p165 = scmp.ne.s32.totalorder %s157, %s159
    %p166 = scmp.eq.s32.totalorder %s25, 1
    %p167 = por %p165, %p166
    %p168 = scmp.ne.s32.totalorder %s159, %s160
    %p169 = scmp.eq.s32.totalorder %s25, 0
    %p170 = por %p168, %p169
    %p171 = scmp.ne.s32.totalorder %s159, %s160
    %p172 = scmp.eq.s32.totalorder %s26, 1
    %p173 = por %p171, %p172
    %p175 = scmp.ne.s32.totalorder %s160, %s174
    %p176 = scmp.eq.s32.totalorder %s26, 0
    %p177 = por %p175, %p176
    %s179 = sadd.s32 %s178, 1
    %p182 = scmp.eq.s32.totalorder %s20, 1
    %p183 = scmp.ne.s32.totalorder %s178, %s180
    %p184 = scmp.eq.s32.totalorder %s20, 0
    %p185 = por %p183, %p184
    %p186 = scmp.ne.s32.totalorder %s178, %s180
    %p187 = scmp.eq.s32.totalorder %s25, 1
    %p188 = por %p186, %p187
    %p189 = scmp.ne.s32.totalorder %s180, %s181
    %p190 = scmp.eq.s32.totalorder %s25, 0
    %p191 = por %p189, %p190
    %p192 = scmp.ne.s32.totalorder %s180, %s181
    %p193 = scmp.eq.s32.totalorder %s26, 1
    %p194 = por %p192, %p193
    %p196 = scmp.ne.s32.totalorder %s181, %s195
    %p197 = scmp.eq.s32.totalorder %s26, 0
    %p198 = por %p196, %p197
    %s200 = sadd.s32 %s199, 1
    %p203 = scmp.eq.s32.totalorder %s20, 1
    %p204 = scmp.ne.s32.totalorder %s199, %s201
    %p205 = scmp.eq.s32.totalorder %s20, 0
    %p206 = por %p204, %p205
    %p207 = scmp.ne.s32.totalorder %s199, %s201
    %p208 = scmp.eq.s32.totalorder %s25, 1
    %p209 = por %p207, %p208
    %p210 = scmp.ne.s32.totalorder %s201, %s202
    %p211 = scmp.eq.s32.totalorder %s25, 0
    %p212 = por %p210, %p211
    %p213 = scmp.ne.s32.totalorder %s201, %s202
    %p214 = scmp.eq.s32.totalorder %s26, 1
    %p215 = por %p213, %p214
    %p217 = scmp.ne.s32.totalorder %s202, %s216
    %p218 = scmp.eq.s32.totalorder %s26, 0
    %p219 = por %p217, %p218
    %s221 = sadd.s32 %s220, 1
    %p224 = scmp.eq.s32.totalorder %s20, 1
    %p225 = scmp.ne.s32.totalorder %s220, %s222
    %p226 = scmp.eq.s32.totalorder %s20, 0
    %p227 = por %p225, %p226
    %p228 = scmp.ne.s32.totalorder %s220, %s222
    %p229 = scmp.eq.s32.totalorder %s25, 1
    %p230 = por %p228, %p229
    %p231 = scmp.ne.s32.totalorder %s222, %s223
    %p232 = scmp.eq.s32.totalorder %s25, 0
    %p233 = por %p231, %p232
    %p234 = scmp.ne.s32.totalorder %s222, %s223
    %p235 = scmp.eq.s32.totalorder %s26, 1
    %p236 = por %p234, %p235
    %p238 = scmp.ne.s32.totalorder %s223, %s237
    %p239 = scmp.eq.s32.totalorder %s26, 0
    %p240 = por %p238, %p239
    %s242 = sadd.s32 %s241, 1
    %p245 = scmp.eq.s32.totalorder %s20, 1
    %p246 = scmp.ne.s32.totalorder %s241, %s243
    %p247 = scmp.eq.s32.totalorder %s20, 0
    %p248 = por %p246, %p247
    %p249 = scmp.ne.s32.totalorder %s241, %s243
    %p250 = scmp.eq.s32.totalorder %s25, 1
    %p251 = por %p249, %p250
    %p252 = scmp.ne.s32.totalorder %s243, %s244
    %p253 = scmp.eq.s32.totalorder %s25, 0
    %p254 = por %p252, %p253
    %p255 = scmp.ne.s32.totalorder %s243, %s244
    %p256 = scmp.eq.s32.totalorder %s26, 1
    %p257 = por %p255, %p256
    %p259 = scmp.ne.s32.totalorder %s244, %s258
    %p260 = scmp.eq.s32.totalorder %s26, 0
    %p261 = por %p259, %p260
    %s263 = sadd.s32 %s262, 1
    %p266 = scmp.eq.s32.totalorder %s20, 1
    %p267 = scmp.ne.s32.totalorder %s262, %s264
    %p268 = scmp.eq.s32.totalorder %s20, 0
    %p269 = por %p267, %p268
    %p270 = scmp.ne.s32.totalorder %s262, %s264
    %p271 = scmp.eq.s32.totalorder %s25, 1
    %p272 = por %p270, %p271
    %p273 = scmp.ne.s32.totalorder %s264, %s265
    %p274 = scmp.eq.s32.totalorder %s25, 0
    %p275 = por %p273, %p274
    %p276 = scmp.ne.s32.totalorder %s264, %s265
    %p277 = scmp.eq.s32.totalorder %s26, 1
    %p278 = por %p276, %p277
    %p280 = scmp.ne.s32.totalorder %s265, %s279
    %p281 = scmp.eq.s32.totalorder %s26, 0
    %p282 = por %p280, %p281
    %s284 = sadd.s32 %s283, 1
    %p287 = scmp.eq.s32.totalorder %s20, 1
    %p288 = scmp.ne.s32.totalorder %s283, %s285
    %p289 = scmp.eq.s32.totalorder %s20, 0
    %p290 = por %p288, %p289
    %p291 = scmp.ne.s32.totalorder %s283, %s285
    %p292 = scmp.eq.s32.totalorder %s25, 1
    %p293 = por %p291, %p292
    %p294 = scmp.ne.s32.totalorder %s285, %s286
    %p295 = scmp.eq.s32.totalorder %s25, 0
    %p296 = por %p294, %p295
    %p297 = scmp.ne.s32.totalorder %s285, %s286
    %p298 = scmp.eq.s32.totalorder %s26, 1
    %p299 = por %p297, %p298
    %p301 = scmp.ne.s32.totalorder %s286, %s300
    %p302 = scmp.eq.s32.totalorder %s26, 0
    %p303 = por %p301, %p302
    %s305 = sadd.s32 %s304, 1
    %p308 = scmp.eq.s32.totalorder %s20, 1
    %p309 = scmp.ne.s32.totalorder %s304, %s306
    %p310 = scmp.eq.s32.totalorder %s20, 0
    %p311 = por %p309, %p310
    %p312 = scmp.ne.s32.totalorder %s304, %s306
    %p313 = scmp.eq.s32.totalorder %s25, 1
    %p314 = por %p312, %p313
    %p315 = scmp.ne.s32.totalorder %s306, %s307
    %p316 = scmp.eq.s32.totalorder %s25, 0
    %p317 = por %p315, %p316
    %p318 = scmp.ne.s32.totalorder %s306, %s307
    %p319 = scmp.eq.s32.totalorder %s26, 1
    %p320 = por %p318, %p319
    %p322 = scmp.ne.s32.totalorder %s307, %s321
    %p323 = scmp.eq.s32.totalorder %s26, 0
    %p324 = por %p322, %p323
    %s326 = sadd.s32 %s325, 1
    %p329 = scmp.eq.s32.totalorder %s20, 1
    %p330 = scmp.ne.s32.totalorder %s325, %s327
    %p331 = scmp.eq.s32.totalorder %s20, 0
    %p332 = por %p330, %p331
    %p333 = scmp.ne.s32.totalorder %s325, %s327
    %p334 = scmp.eq.s32.totalorder %s25, 1
    %p335 = por %p333, %p334
    %p336 = scmp.ne.s32.totalorder %s327, %s328
    %p337 = scmp.eq.s32.totalorder %s25, 0
    %p338 = por %p336, %p337
    %p339 = scmp.ne.s32.totalorder %s327, %s328
    %p340 = scmp.eq.s32.totalorder %s26, 1
    %p341 = por %p339, %p340
    %p343 = scmp.ne.s32.totalorder %s328, %s342
    %p344 = scmp.eq.s32.totalorder %s26, 0
    %p345 = por %p343, %p344
    %s347 = sadd.s32 %s346, 1
    %p350 = scmp.eq.s32.totalorder %s20, 1
    %p351 = scmp.ne.s32.totalorder %s346, %s348
    %p352 = scmp.eq.s32.totalorder %s20, 0
    %p353 = por %p351, %p352
    %p354 = scmp.ne.s32.totalorder %s346, %s348
    %p355 = scmp.eq.s32.totalorder %s25, 1
    %p356 = por %p354, %p355
    %p357 = scmp.ne.s32.totalorder %s348, %s349
    %p358 = scmp.eq.s32.totalorder %s25, 0
    %p359 = por %p357, %p358
    %p360 = scmp.ne.s32.totalorder %s348, %s349
    %p361 = scmp.eq.s32.totalorder %s26, 1
    %p362 = por %p360, %p361
    %p364 = scmp.ne.s32.totalorder %s349, %s363
    %p365 = scmp.eq.s32.totalorder %s26, 0
    %p366 = por %p364, %p365
    %p367 = scmp.le.s32.totalorder 1, %s20
    %p368 = scmp.lt.s32.totalorder %s20, 3
    %p369 = pnand %p367, %p368
    %p370 = pneg %p369
    // Predicated region
    $region9: #{vae_encoder_forward.3} parent=5 // pred_check
      _
    $region10: #{vae_encoder_forward.3} parent=5 // pred_check_branch
      %372 = sbr.rel (%p369) target = $region12
    $region11: #{vae_encoder_forward.3} parent=5 // pred_region
      %s373 = ssub.s32 %s20, 1
      // Predicated region
      $region13: #{vae_encoder_forward.3} parent=11 // pred_check
        %p374 = pneg %p149
      $region14: #{vae_encoder_forward.3} parent=11 // pred_check_branch
        %376 = sbr.rel (%p374) target = $region16
      $region15: #{vae_encoder_forward.3} parent=11 // pred_region
        _
      $region16: #{vae_encoder_forward.3} parent=11 // pred_fallthru
        _
      // Predicated region
      $region17: #{vae_encoder_forward.3} parent=11 // pred_check
        %p377 = pneg %p170
      $region18: #{vae_encoder_forward.3} parent=11 // pred_check_branch
        %379 = sbr.rel (%p377) target = $region20
      $region19: #{vae_encoder_forward.3} parent=11 // pred_region
        _
      $region20: #{vae_encoder_forward.3} parent=11 // pred_fallthru
        _
      // Predicated region
      $region21: #{vae_encoder_forward.3} parent=11 // pred_check
        %p380 = pneg %p191
      $region22: #{vae_encoder_forward.3} parent=11 // pred_check_branch
        %382 = sbr.rel (%p380) target = $region24
      $region23: #{vae_encoder_forward.3} parent=11 // pred_region
        _
      $region24: #{vae_encoder_forward.3} parent=11 // pred_fallthru
        _
      // Predicated region
      $region25: #{vae_encoder_forward.3} parent=11 // pred_check
        %p383 = pneg %p212
      $region26: #{vae_encoder_forward.3} parent=11 // pred_check_branch
        %385 = sbr.rel (%p383) target = $region28
      $region27: #{vae_encoder_forward.3} parent=11 // pred_region
        _
      $region28: #{vae_encoder_forward.3} parent=11 // pred_fallthru
        _
      // Predicated region
      $region29: #{vae_encoder_forward.3} parent=11 // pred_check
        %p386 = pneg %p233
      $region30: #{vae_encoder_forward.3} parent=11 // pred_check_branch
        %388 = sbr.rel (%p386) target = $region32
      $region31: #{vae_encoder_forward.3} parent=11 // pred_region
        _
      $region32: #{vae_encoder_forward.3} parent=11 // pred_fallthru
        _
      // Predicated region
      $region33: #{vae_encoder_forward.3} parent=11 // pred_check
        %p389 = pneg %p254
      $region34: #{vae_encoder_forward.3} parent=11 // pred_check_branch
        %391 = sbr.rel (%p389) target = $region36
      $region35: #{vae_encoder_forward.3} parent=11 // pred_region
        _
      $region36: #{vae_encoder_forward.3} parent=11 // pred_fallthru
        _
      // Predicated region
      $region37: #{vae_encoder_forward.3} parent=11 // pred_check
        %p392 = pneg %p275
      $region38: #{vae_encoder_forward.3} parent=11 // pred_check_branch
        %394 = sbr.rel (%p392) target = $region40
      $region39: #{vae_encoder_forward.3} parent=11 // pred_region
        _
      $region40: #{vae_encoder_forward.3} parent=11 // pred_fallthru
        _
      // Predicated region
      $region41: #{vae_encoder_forward.3} parent=11 // pred_check
        %p395 = pneg %p296
      $region42: #{vae_encoder_forward.3} parent=11 // pred_check_branch
        %397 = sbr.rel (%p395) target = $region44
      $region43: #{vae_encoder_forward.3} parent=11 // pred_region
        _
      $region44: #{vae_encoder_forward.3} parent=11 // pred_fallthru
        _
      // Predicated region
      $region45: #{vae_encoder_forward.3} parent=11 // pred_check
        %p398 = pneg %p317
      $region46: #{vae_encoder_forward.3} parent=11 // pred_check_branch
        %400 = sbr.rel (%p398) target = $region48
      $region47: #{vae_encoder_forward.3} parent=11 // pred_region
        _
      $region48: #{vae_encoder_forward.3} parent=11 // pred_fallthru
        _
      // Predicated region
      $region49: #{vae_encoder_forward.3} parent=11 // pred_check
        %p401 = pneg %p338
      $region50: #{vae_encoder_forward.3} parent=11 // pred_check_branch
        %403 = sbr.rel (%p401) target = $region52
      $region51: #{vae_encoder_forward.3} parent=11 // pred_region
        _
      $region52: #{vae_encoder_forward.3} parent=11 // pred_fallthru
        _
    $region12: #{vae_encoder_forward.3} parent=5 // pred_fallthru
      _
    %p404 = scmp.lt.s32.totalorder %s20, 2
    // Predicated region
    $region53: #{vae_encoder_forward.3} parent=5 // pred_check
      %p405 = pneg %p404
    $region54: #{vae_encoder_forward.3} parent=5 // pred_check_branch
      %407 = sbr.rel (%p405) target = $region56
    $region55: #{vae_encoder_forward.3} parent=5 // pred_region
      // Predicated region
      $region57: #{vae_encoder_forward.3} parent=55 // pred_check
        %p408 = pneg %p40
      $region58: #{vae_encoder_forward.3} parent=55 // pred_check_branch
        %410 = sbr.rel (%p408) target = $region60
      $region59: #{vae_encoder_forward.3} parent=55 // pred_region
        %s411 = smul.u32 4, %s20
        %p412 = scmp.lt.s32.totalorder %s411, 7
        %s413 = scalar_select %p412, %s411, 7
        %s414 = smul.addr %s413, 4
        %s415 = scalar_lea.vmem %s0, %s414
        %s416 = smul.u32 4, %s20
      $region60: #{vae_encoder_forward.3} parent=55 // pred_fallthru
        _
      // Predicated region
      $region61: #{vae_encoder_forward.3} parent=55 // pred_check
        %p417 = pneg %p66
      $region62: #{vae_encoder_forward.3} parent=55 // pred_check_branch
        %419 = sbr.rel (%p417) target = $region64
      $region63: #{vae_encoder_forward.3} parent=55 // pred_region
        %s420 = smul.u32 4, %s20
        %p421 = scmp.lt.s32.totalorder %s420, 7
        %s422 = scalar_select %p421, %s420, 7
        %s423 = smul.addr %s422, 4
        %s424 = scalar_lea.vmem %s1, %s423
        %s425 = smul.u32 4, %s20
      $region64: #{vae_encoder_forward.3} parent=55 // pred_fallthru
        _
      // Predicated region
      $region65: #{vae_encoder_forward.3} parent=55 // pred_check
        %p426 = pneg %p94
      $region66: #{vae_encoder_forward.3} parent=55 // pred_check_branch
        %428 = sbr.rel (%p426) target = $region68
      $region67: #{vae_encoder_forward.3} parent=55 // pred_region
        %s429 = ssub.s32 1, %s20
        %s430 = smul.u32 4, %s429
        %p431 = scmp.lt.s32.totalorder %s430, 7
        %s432 = scalar_select %p431, %s430, 7
        %s433 = smul.addr %s432, 4
        %s434 = scalar_lea.vmem %s2, %s433
        %s435 = ssub.s32 1, %s20
        %s436 = smul.u32 4, %s435
      $region68: #{vae_encoder_forward.3} parent=55 // pred_fallthru
        _
      // Predicated region
      $region69: #{vae_encoder_forward.3} parent=55 // pred_check
        %p437 = pneg %p122
      $region70: #{vae_encoder_forward.3} parent=55 // pred_check_branch
        %439 = sbr.rel (%p437) target = $region72
      $region71: #{vae_encoder_forward.3} parent=55 // pred_region
        %s440 = ssub.s32 1, %s20
        %s441 = smul.u32 4, %s440
        %p442 = scmp.lt.s32.totalorder %s441, 7
        %s443 = scalar_select %p442, %s441, 7
        %s444 = smul.addr %s443, 4
        %s445 = scalar_lea.vmem %s3, %s444
        %s446 = ssub.s32 1, %s20
        %s447 = smul.u32 4, %s446
      $region72: #{vae_encoder_forward.3} parent=55 // pred_fallthru
        _
    $region56: #{vae_encoder_forward.3} parent=5 // pred_fallthru
      _
    %p448 = scmp.le.s32.totalorder 1, %s20
    %p449 = scmp.lt.s32.totalorder %s20, 3
    %p450 = pnand %p448, %p449
    %p451 = pneg %p450
    // Predicated region
    $region73: #{vae_encoder_forward.3} parent=5 // pred_check
      _
    $region74: #{vae_encoder_forward.3} parent=5 // pred_check_branch
      %453 = sbr.rel (%p450) target = $region76
    $region75: #{vae_encoder_forward.3} parent=5 // pred_region
      %s454 = ssub.s32 %s20, 1
      %s455 = smul.u32 4, %s25
      %p456 = scmp.lt.s32.totalorder %s455, 7
      %s457 = scalar_select %p456, %s455, 7
      %s458 = smul.addr %s457, 4
      %s459 = scalar_lea.vmem %s0, %s458
      %p460 = pneg %p46
      %p461 = pneg %p43
      %s462 = smul.u32 4, %s25
      %p463 = scmp.lt.s32.totalorder %s462, 7
      %s464 = scalar_select %p463, %s462, 7
      %s465 = smul.addr %s464, 4
      %s466 = scalar_lea.vmem %s1, %s465
      %p467 = pneg %p72
      %p468 = pneg %p69
      %s469 = ssub.s32 1, %s25
      %s470 = smul.u32 4, %s469
      %p471 = scmp.lt.s32.totalorder %s470, 7
      %s472 = scalar_select %p471, %s470, 7
      %s473 = smul.addr %s472, 4
      %s474 = scalar_lea.vmem %s2, %s473
      %p475 = pneg %p100
      %p476 = pneg %p97
      %s477 = ssub.s32 1, %s25
      %s478 = smul.u32 4, %s477
      %p479 = scmp.lt.s32.totalorder %s478, 7
      %s480 = scalar_select %p479, %s478, 7
      %s481 = smul.addr %s480, 4
      %s482 = scalar_lea.vmem %s3, %s481
      %p483 = pneg %p128
      %p484 = pneg %p125
      %p485 = pneg %p149
      %p486 = pneg %p146
      %p487 = pneg %p170
      %p488 = pneg %p167
      %p489 = pneg %p191
      %p490 = pneg %p188
      %p491 = pneg %p212
      %p492 = pneg %p209
      %p493 = pneg %p233
      %p494 = pneg %p230
      %p495 = pneg %p254
      %p496 = pneg %p251
      %p497 = pneg %p275
      %p498 = pneg %p272
      %p499 = pneg %p296
      %p500 = pneg %p293
      %p501 = pneg %p317
      %p502 = pneg %p314
      %p503 = pneg %p338
      %p504 = pneg %p335
      %p505 = pneg %p359
      %p506 = pneg %p356
      %s507 = smul.u32 4, %s25
      %p508 = scmp.lt.s32.totalorder %s507, 7
      %s509 = scalar_select %p508, %s507, 7
      %s510 = smul.addr %s509, 4
      %s511 = scalar_lea.vmem %s0, %s510
      %s512 = smul.u32 4, %s25
      %s513 = smul.u32 4, %s25
      %p514 = scmp.lt.s32.totalorder %s513, 7
      %s515 = scalar_select %p514, %s513, 7
      %s516 = smul.addr %s515, 4
      %s517 = scalar_lea.vmem %s1, %s516
      %s518 = smul.u32 4, %s25
      %s519 = ssub.s32 1, %s25
      %s520 = smul.u32 4, %s519
      %p521 = scmp.lt.s32.totalorder %s520, 7
      %s522 = scalar_select %p521, %s520, 7
      %s523 = smul.addr %s522, 4
      %s524 = scalar_lea.vmem %s2, %s523
      %s525 = ssub.s32 1, %s25
      %s526 = smul.u32 4, %s525
      %s527 = ssub.s32 1, %s25
      %s528 = smul.u32 4, %s527
      %p529 = scmp.lt.s32.totalorder %s528, 7
      %s530 = scalar_select %p529, %s528, 7
      %s531 = smul.addr %s530, 4
      %s532 = scalar_lea.vmem %s3, %s531
      %s533 = ssub.s32 1, %s25
      %s534 = smul.u32 4, %s533
      %p536 = scmp.eq.s32.totalorder %s25, 0
      // Predicated region
      $region77: #{vae_encoder_forward.3} parent=75 // pred_check
        %p537 = pneg %p536
      $region78: #{vae_encoder_forward.3} parent=75 // pred_check_branch
        %539 = sbr.rel (%p537) target = $region80
      $region79: #{vae_encoder_forward.3} parent=75 // pred_region
        %vm540 = vcmask 257024
        %541 = vst.msk [vmem:[#allocation4] sm:$0xf] %vm540, 0
        %vm542 = vcmask 261120
        %543 = vst.msk [vmem:[#allocation5] sm:$0xff] %vm542, 0.0
        %544 = vst.msk [vmem:[#allocation6] sm:$0xf] %vm540, 0
        %545 = vst.msk [vmem:[#allocation7] sm:$0xff] %vm542, 0.0
      $region80: #{vae_encoder_forward.3} parent=75 // pred_fallthru
        _
      %v546 = vld [vmem:[%s511] sm:$0xf]
      %v547 = vld [vmem:[%s511 + $0x4] sm:$0xf]
      %v548 = vld [vmem:[%s511 + $0x8] sm:$0xf]
      %v549 = vld [vmem:[%s511 + $0xc] sm:$0xf]
      %v550 = vld [vmem:[%s4] sm:$0xf]
      %v551 = vld [vmem:[%s4 + $0x4] sm:$0xf]
      %v552 = vld [vmem:[%s4 + $0x8] sm:$0xf]
      %v553 = vld [vmem:[%s4 + $0xc] sm:$0xf]
      %v554 = vld [vmem:[%s517] sm:$0xf]
      %v555 = vld [vmem:[%s517 + $0x4] sm:$0xf]
      %v556 = vld [vmem:[%s517 + $0x8] sm:$0xf]
      %v557 = vld [vmem:[%s517 + $0xc] sm:$0xf]
      %v558 = vld [vmem:[%s5] sm:$0xf]
      %v559 = vld [vmem:[%s5 + $0x4] sm:$0xf]
      %v560 = vld [vmem:[%s5 + $0x8] sm:$0xf]
      %v561 = vld [vmem:[%s5 + $0xc] sm:$0xf]
      %v566 = vunpack.c.l.b16 %v554
      %v567 = vunpack.c.l.b16 %v555
      %v568 = vunpack.c.l.b16 %v556
      %v569 = vunpack.c.l.b16 %v557
      %v570 = vpack.c.b16 %v567, %v566
      %v571 = vpack.c.b16 %v569, %v568
      %v576 = vunpack.c.l.b16 %v558
      %v577 = vunpack.c.l.b16 %v559
      %v578 = vunpack.c.l.b16 %v560
      %v579 = vunpack.c.l.b16 %v561
      %v580 = vpack.c.b16 %v577, %v576
      %v581 = vpack.c.b16 %v579, %v578
      %vm584 = vcmask 261120
      %v586 = vsel %vm584, %v570, 0
      %v589 = vsel %vm584, %v571, 0
      %591 = vmatprep.subr.bf16.mxu0 0
      %592 = vmatpush1.bf16.msra.mxu0 0
      %593 = vmatprep.subr.bf16.mxu0 0
      %594 = vmatpush1.bf16.msra.mxu0 0
      %595 = vmatprep.subr.bf16.mxu0 0
      %596 = vmatpush1.bf16.msra.mxu0 0
      %597 = vmatprep.subr.bf16.mxu0 0
      %598 = vmatpush1.bf16.msra.mxu0 0
      %599 = vmatprep.subr.bf16.mxu0 0
      %600 = vmatpush1.bf16.msra.mxu0 0
      %601 = vmatprep.subr.bf16.mxu0 0
      %602 = vmatpush1.bf16.msra.mxu0 0
      %603 = vmatprep.subr.bf16.mxu0 0
      %604 = vmatpush1.bf16.msra.mxu0 %v581
      %605 = vmatprep.subr.bf16.mxu0 0
      %606 = vmatpush1.bf16.msra.mxu0 %v580
      %607 = vmatprep.subr.bf16.mxu0 0
      %608 = vmatpush2.bf16.msra.mxu0 0
      %609 = vmatprep.subr.bf16.mxu0 0
      %610 = vmatpush2.bf16.msra.mxu0 0
      %611 = vmatprep.subr.bf16.mxu0 0
      %612 = vmatpush2.bf16.msra.mxu0 0
      %613 = vmatprep.subr.bf16.mxu0 0
      %614 = vmatpush2.bf16.msra.mxu0 0
      %615 = vmatprep.subr.bf16.mxu0 0
      %616 = vmatpush2.bf16.msra.mxu0 0
      %617 = vmatprep.subr.bf16.mxu0 0
      %618 = vmatpush2.bf16.msra.mxu0 0
      %619 = vmatprep.subr.bf16.mxu0 0
      %620 = vmatpush2.bf16.msra.mxu0 0
      %621 = vmatprep.subr.bf16.mxu0 0
      %622 = vmatpush2.bf16.msra.mxu0 0
      %623 = vmatprep.mubr.bf16.mxu0 0
      %624 = vmatmul.mubr.bf16.gmra.mxu0 %v586
      %v625 = vpop.f32.mrf.mxu0
      %v626 = vadd.f32 0.0, %v625
      %v627 = vpop.f32.mrf.mxu0
      %v628 = vpop.f32.mrf.mxu0
      %v629 = vadd.f32 0.0, %v628
      %v630 = vpop.f32.mrf.mxu0
      %631 = vmatprep.mubr.bf16.mxu0 0
      %632 = vmatmul.mubr.bf16.gmra.mxu0 %v589
      %v633 = vpop.f32.mrf.mxu0
      %v634 = vadd.f32 0.0, %v633
      %v635 = vpop.f32.mrf.mxu0
      %v636 = vpop.f32.mrf.mxu0
      %v637 = vadd.f32 0.0, %v636
      %v638 = vpop.f32.mrf.mxu0
      %639 = vdwg.mxu0
      %v644 = vunpack.c.l.b16 %v546
      %v645 = vunpack.c.l.b16 %v547
      %v646 = vunpack.c.l.b16 %v548
      %v647 = vunpack.c.l.b16 %v549
      %v648 = vpack.c.b16 %v645, %v644
      %v649 = vpack.c.b16 %v647, %v646
      %v654 = vunpack.c.l.b16 %v550
      %v655 = vunpack.c.l.b16 %v551
      %v656 = vunpack.c.l.b16 %v552
      %v657 = vunpack.c.l.b16 %v553
      %v658 = vpack.c.b16 %v655, %v654
      %v659 = vpack.c.b16 %v657, %v656
      %v663 = vsel %vm584, %v648, 0
      %v666 = vsel %vm584, %v649, 0
      %668 = vmatprep.subr.bf16.mxu0 0
      %669 = vmatpush1.bf16.msra.mxu0 0
      %670 = vmatprep.subr.bf16.mxu0 0
      %671 = vmatpush1.bf16.msra.mxu0 0
      %672 = vmatprep.subr.bf16.mxu0 0
      %673 = vmatpush1.bf16.msra.mxu0 0
      %674 = vmatprep.subr.bf16.mxu0 0
      %675 = vmatpush1.bf16.msra.mxu0 0
      %676 = vmatprep.subr.bf16.mxu0 0
      %677 = vmatpush1.bf16.msra.mxu0 0
      %678 = vmatprep.subr.bf16.mxu0 0
      %679 = vmatpush1.bf16.msra.mxu0 0
      %680 = vmatprep.subr.bf16.mxu0 0
      %681 = vmatpush1.bf16.msra.mxu0 %v659
      %682 = vmatprep.subr.bf16.mxu0 0
      %683 = vmatpush1.bf16.msra.mxu0 %v658
      %684 = vmatprep.subr.bf16.mxu0 0
      %685 = vmatpush2.bf16.msra.mxu0 0
      %686 = vmatprep.subr.bf16.mxu0 0
      %687 = vmatpush2.bf16.msra.mxu0 0
      %688 = vmatprep.subr.bf16.mxu0 0
      %689 = vmatpush2.bf16.msra.mxu0 0
      %690 = vmatprep.subr.bf16.mxu0 0
      %691 = vmatpush2.bf16.msra.mxu0 0
      %692 = vmatprep.subr.bf16.mxu0 0
      %693 = vmatpush2.bf16.msra.mxu0 0
      %694 = vmatprep.subr.bf16.mxu0 0
      %695 = vmatpush2.bf16.msra.mxu0 0
      %696 = vmatprep.subr.bf16.mxu0 0
      %697 = vmatpush2.bf16.msra.mxu0 0
      %698 = vmatprep.subr.bf16.mxu0 0
      %699 = vmatpush2.bf16.msra.mxu0 0
      %700 = vmatprep.mubr.bf16.mxu0 0
      %701 = vmatmul.mubr.bf16.gmra.mxu0 %v663
      %v702 = vpop.f32.mrf.mxu0
      %v703 = vadd.f32 %v626, %v702
      %v704 = vpop.f32.mrf.mxu0
      %v705 = vpop.f32.mrf.mxu0
      %v706 = vadd.f32 %v629, %v705
      %v707 = vpop.f32.mrf.mxu0
      %708 = vmatprep.mubr.bf16.mxu0 0
      %709 = vmatmul.mubr.bf16.gmra.mxu0 %v666
      %v710 = vpop.f32.mrf.mxu0
      %v711 = vadd.f32 %v634, %v710
      %v712 = vpop.f32.mrf.mxu0
      %v713 = vpop.f32.mrf.mxu0
      %v714 = vadd.f32 %v637, %v713
      %v715 = vpop.f32.mrf.mxu0
      %716 = vdwg.mxu0
      %v717 = vld [vmem:[%s10] sm:$0x1]
      %v719 = vlaneseq
      %v720 = vshrl.u32 %v719, 7
      %v721 = vsub.s32 0, %v720
      %v722 = vrot.slane %v717, %v721
      %v724 = vadd.f32 %v703, %v722
      %v725 = vadd.f32 %v706, %v722
      %v726 = vadd.f32 %v711, %v722
      %v727 = vadd.f32 %v714, %v722
      %728 = vst [vmem:[#allocation2] sm:$0xff] %v724
      %729 = vst [vmem:[#allocation2 + $0x8] sm:$0xff] %v725
      %730 = vst [vmem:[#allocation2 + $0x10] sm:$0xff] %v726
      %731 = vst [vmem:[#allocation2 + $0x18] sm:$0xff] %v727
      %v732 = vld [vmem:[%s524] sm:$0xf]
      %v733 = vld [vmem:[%s524 + $0x4] sm:$0xf]
      %v734 = vld [vmem:[%s524 + $0x8] sm:$0xf]
      %v735 = vld [vmem:[%s524 + $0xc] sm:$0xf]
      %v736 = vld [vmem:[%s6] sm:$0xf]
      %v737 = vld [vmem:[%s6 + $0x4] sm:$0xf]
      %v738 = vld [vmem:[%s6 + $0x8] sm:$0xf]
      %v739 = vld [vmem:[%s6 + $0xc] sm:$0xf]
      %v740 = vld [vmem:[%s532] sm:$0xf]
      %v741 = vld [vmem:[%s532 + $0x4] sm:$0xf]
      %v742 = vld [vmem:[%s532 + $0x8] sm:$0xf]
      %v743 = vld [vmem:[%s532 + $0xc] sm:$0xf]
      %v744 = vld [vmem:[%s7] sm:$0xf]
      %v745 = vld [vmem:[%s7 + $0x4] sm:$0xf]
      %v746 = vld [vmem:[%s7 + $0x8] sm:$0xf]
      %v747 = vld [vmem:[%s7 + $0xc] sm:$0xf]
      %v752 = vunpack.c.l.b16 %v740
      %v753 = vunpack.c.l.b16 %v741
      %v754 = vunpack.c.l.b16 %v742
      %v755 = vunpack.c.l.b16 %v743
      %v756 = vpack.c.b16 %v753, %v752
      %v757 = vpack.c.b16 %v755, %v754
      %v762 = vunpack.c.l.b16 %v744
      %v763 = vunpack.c.l.b16 %v745
      %v764 = vunpack.c.l.b16 %v746
      %v765 = vunpack.c.l.b16 %v747
      %v766 = vpack.c.b16 %v763, %v762
      %v767 = vpack.c.b16 %v765, %v764
      %v771 = vsel %vm584, %v756, 0
      %v774 = vsel %vm584, %v757, 0
      %776 = vmatprep.subr.bf16.mxu0 0
      %777 = vmatpush1.bf16.msra.mxu0 0
      %778 = vmatprep.subr.bf16.mxu0 0
      %779 = vmatpush1.bf16.msra.mxu0 0
      %780 = vmatprep.subr.bf16.mxu0 0
      %781 = vmatpush1.bf16.msra.mxu0 0
      %782 = vmatprep.subr.bf16.mxu0 0
      %783 = vmatpush1.bf16.msra.mxu0 0
      %784 = vmatprep.subr.bf16.mxu0 0
      %785 = vmatpush1.bf16.msra.mxu0 0
      %786 = vmatprep.subr.bf16.mxu0 0
      %787 = vmatpush1.bf16.msra.mxu0 0
      %788 = vmatprep.subr.bf16.mxu0 0
      %789 = vmatpush1.bf16.msra.mxu0 %v767
      %790 = vmatprep.subr.bf16.mxu0 0
      %791 = vmatpush1.bf16.msra.mxu0 %v766
      %792 = vmatprep.subr.bf16.mxu0 0
      %793 = vmatpush2.bf16.msra.mxu0 0
      %794 = vmatprep.subr.bf16.mxu0 0
      %795 = vmatpush2.bf16.msra.mxu0 0
      %796 = vmatprep.subr.bf16.mxu0 0
      %797 = vmatpush2.bf16.msra.mxu0 0
      %798 = vmatprep.subr.bf16.mxu0 0
      %799 = vmatpush2.bf16.msra.mxu0 0
      %800 = vmatprep.subr.bf16.mxu0 0
      %801 = vmatpush2.bf16.msra.mxu0 0
      %802 = vmatprep.subr.bf16.mxu0 0
      %803 = vmatpush2.bf16.msra.mxu0 0
      %804 = vmatprep.subr.bf16.mxu0 0
      %805 = vmatpush2.bf16.msra.mxu0 0
      %806 = vmatprep.subr.bf16.mxu0 0
      %807 = vmatpush2.bf16.msra.mxu0 0
      %808 = vmatprep.mubr.bf16.mxu0 0
      %809 = vmatmul.mubr.bf16.gmra.mxu0 %v771
      %v810 = vpop.f32.mrf.mxu0
      %v811 = vadd.f32 0.0, %v810
      %v812 = vpop.f32.mrf.mxu0
      %v813 = vpop.f32.mrf.mxu0
      %v814 = vadd.f32 0.0, %v813
      %v815 = vpop.f32.mrf.mxu0
      %816 = vmatprep.mubr.bf16.mxu0 0
      %817 = vmatmul.mubr.bf16.gmra.mxu0 %v774
      %v818 = vpop.f32.mrf.mxu0
      %v819 = vadd.f32 0.0, %v818
      %v820 = vpop.f32.mrf.mxu0
      %v821 = vpop.f32.mrf.mxu0
      %v822 = vadd.f32 0.0, %v821
      %v823 = vpop.f32.mrf.mxu0
      %824 = vdwg.mxu0
      %v829 = vunpack.c.l.b16 %v732
      %v830 = vunpack.c.l.b16 %v733
      %v831 = vunpack.c.l.b16 %v734
      %v832 = vunpack.c.l.b16 %v735
      %v833 = vpack.c.b16 %v830, %v829
      %v834 = vpack.c.b16 %v832, %v831
      %v839 = vunpack.c.l.b16 %v736
      %v840 = vunpack.c.l.b16 %v737
      %v841 = vunpack.c.l.b16 %v738
      %v842 = vunpack.c.l.b16 %v739
      %v843 = vpack.c.b16 %v840, %v839
      %v844 = vpack.c.b16 %v842, %v841
      %v848 = vsel %vm584, %v833, 0
      %v851 = vsel %vm584, %v834, 0
      %853 = vmatprep.subr.bf16.mxu0 0
      %854 = vmatpush1.bf16.msra.mxu0 0
      %855 = vmatprep.subr.bf16.mxu0 0
      %856 = vmatpush1.bf16.msra.mxu0 0
      %857 = vmatprep.subr.bf16.mxu0 0
      %858 = vmatpush1.bf16.msra.mxu0 0
      %859 = vmatprep.subr.bf16.mxu0 0
      %860 = vmatpush1.bf16.msra.mxu0 0
      %861 = vmatprep.subr.bf16.mxu0 0
      %862 = vmatpush1.bf16.msra.mxu0 0
      %863 = vmatprep.subr.bf16.mxu0 0
      %864 = vmatpush1.bf16.msra.mxu0 0
      %865 = vmatprep.subr.bf16.mxu0 0
      %866 = vmatpush1.bf16.msra.mxu0 %v844
      %867 = vmatprep.subr.bf16.mxu0 0
      %868 = vmatpush1.bf16.msra.mxu0 %v843
      %869 = vmatprep.subr.bf16.mxu0 0
      %870 = vmatpush2.bf16.msra.mxu0 0
      %871 = vmatprep.subr.bf16.mxu0 0
      %872 = vmatpush2.bf16.msra.mxu0 0
      %873 = vmatprep.subr.bf16.mxu0 0
      %874 = vmatpush2.bf16.msra.mxu0 0
      %875 = vmatprep.subr.bf16.mxu0 0
      %876 = vmatpush2.bf16.msra.mxu0 0
      %877 = vmatprep.subr.bf16.mxu0 0
      %878 = vmatpush2.bf16.msra.mxu0 0
      %879 = vmatprep.subr.bf16.mxu0 0
      %880 = vmatpush2.bf16.msra.mxu0 0
      %881 = vmatprep.subr.bf16.mxu0 0
      %882 = vmatpush2.bf16.msra.mxu0 0
      %883 = vmatprep.subr.bf16.mxu0 0
      %884 = vmatpush2.bf16.msra.mxu0 0
      %885 = vmatprep.mubr.bf16.mxu0 0
      %886 = vmatmul.mubr.bf16.gmra.mxu0 %v848
      %v887 = vpop.f32.mrf.mxu0
      %v888 = vadd.f32 %v811, %v887
      %v889 = vpop.f32.mrf.mxu0
      %v890 = vpop.f32.mrf.mxu0
      %v891 = vadd.f32 %v814, %v890
      %v892 = vpop.f32.mrf.mxu0
      %893 = vmatprep.mubr.bf16.mxu0 0
      %894 = vmatmul.mubr.bf16.gmra.mxu0 %v851
      %v895 = vpop.f32.mrf.mxu0
      %v896 = vadd.f32 %v819, %v895
      %v897 = vpop.f32.mrf.mxu0
      %v898 = vpop.f32.mrf.mxu0
      %v899 = vadd.f32 %v822, %v898
      %v900 = vpop.f32.mrf.mxu0
      %901 = vdwg.mxu0
      %v902 = vld [vmem:[%s11] sm:$0x1]
      %v904 = vlaneseq
      %v905 = vshrl.u32 %v904, 7
      %v906 = vsub.s32 0, %v905
      %v907 = vrot.slane %v902, %v906
      %v909 = vadd.f32 %v888, %v907
      %v910 = vadd.f32 %v891, %v907
      %v911 = vadd.f32 %v896, %v907
      %v912 = vadd.f32 %v899, %v907
      %913 = vst [vmem:[#allocation3] sm:$0xff] %v909
      %914 = vst [vmem:[#allocation3 + $0x8] sm:$0xff] %v910
      %915 = vst [vmem:[#allocation3 + $0x10] sm:$0xff] %v911
      %916 = vst [vmem:[#allocation3 + $0x18] sm:$0xff] %v912
      %v917 = vld [vmem:[%s8] sm:$0xf]
      %v918 = vld [vmem:[%s8 + $0x4] sm:$0xf]
      %v919 = vld [vmem:[%s8 + $0x8] sm:$0xf]
      %v920 = vld [vmem:[%s8 + $0xc] sm:$0xf]
      %v921 = vld [vmem:[%s9] sm:$0xf]
      %v922 = vld [vmem:[%s9 + $0x4] sm:$0xf]
      %v923 = vld [vmem:[%s9 + $0x8] sm:$0xf]
      %v924 = vld [vmem:[%s9 + $0xc] sm:$0xf]
      %v925 = vld [vmem:[#allocation4] sm:$0xf]
      %v926 = vld [vmem:[#allocation5] sm:$0xff]
      %v927 = vld [vmem:[#allocation6] sm:$0xf]
      %v928 = vld [vmem:[#allocation7] sm:$0xff]
      %v929 = vld [vmem:[#allocation2] sm:$0xff]
      %v934 = vunpack.c.l.b16 %v917
      %v935 = vunpack.c.l.b16 %v918
      %v936 = vunpack.c.l.b16 %v919
      %v937 = vunpack.c.l.b16 %v920
      %v938 = vpack.c.b16 %v935, %v934
      %v939 = vpack.c.b16 %v937, %v936
      %v943 = vsel %vm584, %v925, 0
      %945 = vmatprep.subr.bf16.mxu0 0
      %946 = vmatpush1.bf16.msra.mxu0 0
      %947 = vmatprep.subr.bf16.mxu0 0
      %948 = vmatpush1.bf16.msra.mxu0 0
      %949 = vmatprep.subr.bf16.mxu0 0
      %950 = vmatpush1.bf16.msra.mxu0 0
      %951 = vmatprep.subr.bf16.mxu0 0
      %952 = vmatpush1.bf16.msra.mxu0 0
      %953 = vmatprep.subr.bf16.mxu0 0
      %954 = vmatpush1.bf16.msra.mxu0 0
      %955 = vmatprep.subr.bf16.mxu0 0
      %956 = vmatpush1.bf16.msra.mxu0 0
      %957 = vmatprep.subr.bf16.mxu0 0
      %958 = vmatpush1.bf16.msra.mxu0 %v939
      %959 = vmatprep.subr.bf16.mxu0 0
      %960 = vmatpush1.bf16.msra.mxu0 %v938
      %961 = vmatprep.subr.bf16.mxu0 0
      %962 = vmatpush2.bf16.msra.mxu0 0
      %963 = vmatprep.subr.bf16.mxu0 0
      %964 = vmatpush2.bf16.msra.mxu0 0
      %965 = vmatprep.subr.bf16.mxu0 0
      %966 = vmatpush2.bf16.msra.mxu0 0
      %967 = vmatprep.subr.bf16.mxu0 0
      %968 = vmatpush2.bf16.msra.mxu0 0
      %969 = vmatprep.subr.bf16.mxu0 0
      %970 = vmatpush2.bf16.msra.mxu0 0
      %971 = vmatprep.subr.bf16.mxu0 0
      %972 = vmatpush2.bf16.msra.mxu0 0
      %973 = vmatprep.subr.bf16.mxu0 0
      %974 = vmatpush2.bf16.msra.mxu0 0
      %975 = vmatprep.subr.bf16.mxu0 0
      %976 = vmatpush2.bf16.msra.mxu0 0
      %977 = vmatprep.mubr.bf16.mxu0 0
      %978 = vmatmul.mubr.bf16.gmra.mxu0 %v943
      %v979 = vpop.f32.mrf.mxu0
      %v980 = vadd.f32 0.0, %v979
      %v981 = vpop.f32.mrf.mxu0
      %v982 = vpop.f32.mrf.mxu0
      %v983 = vpop.f32.mrf.mxu0
      %984 = vdwg.mxu0
      %v985 = vadd.f32 %v929, %v980
      %v986 = vxor.u32 %v985, 2147483648
      %v987 = vmul.f32 %v986, 1.442695
      %v988 = vpow.pop %v987
      %v989 = vadd.f32 %v988, 1.0
      %v990 = vrcp.pop %v989
      %v991 = vmul.f32 1.0, %v990
      %v992 = vtanh.pop %v985
      %994 = vrot.lane.b32.xlu0 %v926, 32
      %v995 = vpop.permute.xlu0 %994
      %v997 = vmul.f32 %v991, %v995
      %999 = vrot.lane.b32.xlu0 %v992, 64
      %v1000 = vpop.permute.xlu0 %999
      %v1002 = vmul.f32 %v991, %v1000
      %1004 = vrot.lane.b32.xlu0 %v1002, 32
      %v1005 = vpop.permute.xlu0 %1004
      %v1007 = vadd.f32 %v997, %v1005
      %v1008 = vtanh.pop %v1007
      %1010 = vrot.lane.b32.xlu0 %v1008, 64
      %v1011 = vpop.permute.xlu0 %1010
      %v1013 = vmul.f32 %v991, %v1011
      %v1014 = vpack.c.bf16 %v1013, %v1013
      %s1015 = scalar_lea.vmem [#allocation3], 24
      %v1016 = vld [vmem:[%s1015] sm:$0xff]
      %v1021 = vunpack.c.l.b16 %v921
      %v1022 = vunpack.c.l.b16 %v922
      %v1023 = vunpack.c.l.b16 %v923
      %v1024 = vunpack.c.l.b16 %v924
      %v1025 = vpack.c.b16 %v1022, %v1021
      %v1026 = vpack.c.b16 %v1024, %v1023
      %v1030 = vsel %vm584, %v927, 0
      %1032 = vmatprep.subr.bf16.mxu0 0
      %1033 = vmatpush1.bf16.msra.mxu0 0
      %1034 = vmatprep.subr.bf16.mxu0 0
      %1035 = vmatpush1.bf16.msra.mxu0 0
      %1036 = vmatprep.subr.bf16.mxu0 0
      %1037 = vmatpush1.bf16.msra.mxu0 0
      %1038 = vmatprep.subr.bf16.mxu0 0
      %1039 = vmatpush1.bf16.msra.mxu0 0
      %1040 = vmatprep.subr.bf16.mxu0 0
      %1041 = vmatpush1.bf16.msra.mxu0 0
      %1042 = vmatprep.subr.bf16.mxu0 0
      %1043 = vmatpush1.bf16.msra.mxu0 0
      %1044 = vmatprep.subr.bf16.mxu0 0
      %1045 = vmatpush1.bf16.msra.mxu0 %v1026
      %1046 = vmatprep.subr.bf16.mxu0 0
      %1047 = vmatpush1.bf16.msra.mxu0 %v1025
      %1048 = vmatprep.subr.bf16.mxu0 0
      %1049 = vmatpush2.bf16.msra.mxu0 0
      %1050 = vmatprep.subr.bf16.mxu0 0
      %1051 = vmatpush2.bf16.msra.mxu0 0
      %1052 = vmatprep.subr.bf16.mxu0 0
      %1053 = vmatpush2.bf16.msra.mxu0 0
      %1054 = vmatprep.subr.bf16.mxu0 0
      %1055 = vmatpush2.bf16.msra.mxu0 0
      %1056 = vmatprep.subr.bf16.mxu0 0
      %1057 = vmatpush2.bf16.msra.mxu0 0
      %1058 = vmatprep.subr.bf16.mxu0 0
      %1059 = vmatpush2.bf16.msra.mxu0 0
      %1060 = vmatprep.subr.bf16.mxu0 0
      %1061 = vmatpush2.bf16.msra.mxu0 0
      %1062 = vmatprep.subr.bf16.mxu0 0
      %1063 = vmatpush2.bf16.msra.mxu0 0
      %1064 = vmatprep.mubr.bf16.mxu0 0
      %1065 = vmatmul.mubr.bf16.gmra.mxu0 %v1030
      %v1066 = vpop.f32.mrf.mxu0
      %v1067 = vadd.f32 0.0, %v1066
      %v1068 = vpop.f32.mrf.mxu0
      %v1069 = vpop.f32.mrf.mxu0
      %v1070 = vpop.f32.mrf.mxu0
      %1071 = vdwg.mxu0
      %v1072 = vadd.f32 %v1016, %v1067
      %v1073 = vxor.u32 %v1072, 2147483648
      %v1074 = vmul.f32 %v1073, 1.442695
      %v1075 = vpow.pop %v1074
      %v1076 = vadd.f32 %v1075, 1.0
      %v1077 = vrcp.pop %v1076
      %v1078 = vmul.f32 1.0, %v1077
      %v1079 = vtanh.pop %v1072
      %1081 = vrot.lane.b32.xlu0 %v928, 32
      %v1082 = vpop.permute.xlu0 %1081
      %v1084 = vmul.f32 %v1078, %v1082
      %1086 = vrot.lane.b32.xlu0 %v1079, 64
      %v1087 = vpop.permute.xlu0 %1086
      %v1089 = vmul.f32 %v1078, %v1087
      %1091 = vrot.lane.b32.xlu0 %v1089, 32
      %v1092 = vpop.permute.xlu0 %1091
      %v1094 = vadd.f32 %v1084, %v1092
      %v1095 = vtanh.pop %v1094
      %1097 = vrot.lane.b32.xlu0 %v1095, 64
      %v1098 = vpop.permute.xlu0 %1097
      %v1100 = vmul.f32 %v1078, %v1098
      %v1101 = vpack.c.bf16 %v1100, %v1100
      %s1102 = scalar_lea.vmem [#allocation2], 8
      %v1103 = vld [vmem:[%s1102] sm:$0xff]
      %1105 = vrot.lane.b32.xlu0 %v1014, 32
      %v1106 = vpop.permute.xlu0 %1105
      %v1108 = vsel %vm584, %v1106, 0
      %1110 = vmatprep.subr.bf16.mxu0 0
      %1111 = vmatpush1.bf16.msra.mxu0 0
      %1112 = vmatprep.subr.bf16.mxu0 0
      %1113 = vmatpush1.bf16.msra.mxu0 0
      %1114 = vmatprep.subr.bf16.mxu0 0
      %1115 = vmatpush1.bf16.msra.mxu0 0
      %1116 = vmatprep.subr.bf16.mxu0 0
      %1117 = vmatpush1.bf16.msra.mxu0 0
      %1118 = vmatprep.subr.bf16.mxu0 0
      %1119 = vmatpush1.bf16.msra.mxu0 0
      %1120 = vmatprep.subr.bf16.mxu0 0
      %1121 = vmatpush1.bf16.msra.mxu0 0
      %1122 = vmatprep.subr.bf16.mxu0 0
      %1123 = vmatpush1.bf16.msra.mxu0 %v939
      %1124 = vmatprep.subr.bf16.mxu0 0
      %1125 = vmatpush1.bf16.msra.mxu0 %v938
      %1126 = vmatprep.subr.bf16.mxu0 0
      %1127 = vmatpush2.bf16.msra.mxu0 0
      %1128 = vmatprep.subr.bf16.mxu0 0
      %1129 = vmatpush2.bf16.msra.mxu0 0
      %1130 = vmatprep.subr.bf16.mxu0 0
      %1131 = vmatpush2.bf16.msra.mxu0 0
      %1132 = vmatprep.subr.bf16.mxu0 0
      %1133 = vmatpush2.bf16.msra.mxu0 0
      %1134 = vmatprep.subr.bf16.mxu0 0
      %1135 = vmatpush2.bf16.msra.mxu0 0
      %1136 = vmatprep.subr.bf16.mxu0 0
      %1137 = vmatpush2.bf16.msra.mxu0 0
      %1138 = vmatprep.subr.bf16.mxu0 0
      %1139 = vmatpush2.bf16.msra.mxu0 0
      %1140 = vmatprep.subr.bf16.mxu0 0
      %1141 = vmatpush2.bf16.msra.mxu0 0
      %1142 = vmatprep.mubr.bf16.mxu0 0
      %1143 = vmatmul.mubr.bf16.gmra.mxu0 %v1108
      %v1144 = vpop.f32.mrf.mxu0
      %v1145 = vadd.f32 0.0, %v1144
      %v1146 = vpop.f32.mrf.mxu0
      %v1147 = vpop.f32.mrf.mxu0
      %v1148 = vpop.f32.mrf.mxu0
      %1149 = vdwg.mxu0
      %v1150 = vadd.f32 %v1103, %v1145
      %v1151 = vxor.u32 %v1150, 2147483648
      %v1152 = vmul.f32 %v1151, 1.442695
      %v1153 = vpow.pop %v1152
      %v1154 = vadd.f32 %v1153, 1.0
      %v1155 = vrcp.pop %v1154
      %v1156 = vmul.f32 1.0, %v1155
      %v1157 = vtanh.pop %v1150
      %v1158 = vmul.f32 %v1156, %v1007
      %1160 = vrot.lane.b32.xlu0 %v1157, 64
      %v1161 = vpop.permute.xlu0 %1160
      %v1163 = vmul.f32 %v1156, %v1161
      %1165 = vrot.lane.b32.xlu0 %v1163, 32
      %v1166 = vpop.permute.xlu0 %1165
      %v1168 = vadd.f32 %v1158, %v1166
      %v1169 = vtanh.pop %v1168
      %1171 = vrot.lane.b32.xlu0 %v1169, 64
      %v1172 = vpop.permute.xlu0 %1171
      %v1174 = vmul.f32 %v1156, %v1172
      %v1175 = vpack.c.bf16 %v1174, %v1174
      %s1176 = scalar_lea.vmem [#allocation3], 16
      %v1177 = vld [vmem:[%s1176] sm:$0xff]
      %1179 = vrot.lane.b32.xlu0 %v1101, 32
      %v1180 = vpop.permute.xlu0 %1179
      %v1182 = vsel %vm584, %v1180, 0
      %1184 = vmatprep.subr.bf16.mxu0 0
      %1185 = vmatpush1.bf16.msra.mxu0 0
      %1186 = vmatprep.subr.bf16.mxu0 0
      %1187 = vmatpush1.bf16.msra.mxu0 0
      %1188 = vmatprep.subr.bf16.mxu0 0
      %1189 = vmatpush1.bf16.msra.mxu0 0
      %1190 = vmatprep.subr.bf16.mxu0 0
      %1191 = vmatpush1.bf16.msra.mxu0 0
      %1192 = vmatprep.subr.bf16.mxu0 0
      %1193 = vmatpush1.bf16.msra.mxu0 0
      %1194 = vmatprep.subr.bf16.mxu0 0
      %1195 = vmatpush1.bf16.msra.mxu0 0
      %1196 = vmatprep.subr.bf16.mxu0 0
      %1197 = vmatpush1.bf16.msra.mxu0 %v1026
      %1198 = vmatprep.subr.bf16.mxu0 0
      %1199 = vmatpush1.bf16.msra.mxu0 %v1025
      %1200 = vmatprep.subr.bf16.mxu0 0
      %1201 = vmatpush2.bf16.msra.mxu0 0
      %1202 = vmatprep.subr.bf16.mxu0 0
      %1203 = vmatpush2.bf16.msra.mxu0 0
      %1204 = vmatprep.subr.bf16.mxu0 0
      %1205 = vmatpush2.bf16.msra.mxu0 0
      %1206 = vmatprep.subr.bf16.mxu0 0
      %1207 = vmatpush2.bf16.msra.mxu0 0
      %1208 = vmatprep.subr.bf16.mxu0 0
      %1209 = vmatpush2.bf16.msra.mxu0 0
      %1210 = vmatprep.subr.bf16.mxu0 0
      %1211 = vmatpush2.bf16.msra.mxu0 0
      %1212 = vmatprep.subr.bf16.mxu0 0
      %1213 = vmatpush2.bf16.msra.mxu0 0
      %1214 = vmatprep.subr.bf16.mxu0 0
      %1215 = vmatpush2.bf16.msra.mxu0 0
      %1216 = vmatprep.mubr.bf16.mxu0 0
      %1217 = vmatmul.mubr.bf16.gmra.mxu0 %v1182
      %v1218 = vpop.f32.mrf.mxu0
      %v1219 = vadd.f32 0.0, %v1218
      %v1220 = vpop.f32.mrf.mxu0
      %v1221 = vpop.f32.mrf.mxu0
      %v1222 = vpop.f32.mrf.mxu0
      %1223 = vdwg.mxu0
      %v1224 = vadd.f32 %v1177, %v1219
      %v1225 = vxor.u32 %v1224, 2147483648
      %v1226 = vmul.f32 %v1225, 1.442695
      %v1227 = vpow.pop %v1226
      %v1228 = vadd.f32 %v1227, 1.0
      %v1229 = vrcp.pop %v1228
      %v1230 = vmul.f32 1.0, %v1229
      %v1231 = vtanh.pop %v1224
      %v1232 = vmul.f32 %v1230, %v1094
      %1234 = vrot.lane.b32.xlu0 %v1231, 64
      %v1235 = vpop.permute.xlu0 %1234
      %v1237 = vmul.f32 %v1230, %v1235
      %1239 = vrot.lane.b32.xlu0 %v1237, 32
      %v1240 = vpop.permute.xlu0 %1239
      %v1242 = vadd.f32 %v1232, %v1240
      %v1243 = vtanh.pop %v1242
      %1245 = vrot.lane.b32.xlu0 %v1243, 64
      %v1246 = vpop.permute.xlu0 %1245
      %v1248 = vmul.f32 %v1230, %v1246
      %v1249 = vpack.c.bf16 %v1248, %v1248
      %s1250 = scalar_lea.vmem [#allocation2], 16
      %v1251 = vld [vmem:[%s1250] sm:$0xff]
      %1253 = vrot.lane.b32.xlu0 %v1175, 32
      %v1254 = vpop.permute.xlu0 %1253
      %v1256 = vsel %vm584, %v1254, 0
      %1258 = vmatprep.subr.bf16.mxu0 0
      %1259 = vmatpush1.bf16.msra.mxu0 0
      %1260 = vmatprep.subr.bf16.mxu0 0
      %1261 = vmatpush1.bf16.msra.mxu0 0
      %1262 = vmatprep.subr.bf16.mxu0 0
      %1263 = vmatpush1.bf16.msra.mxu0 0
      %1264 = vmatprep.subr.bf16.mxu0 0
      %1265 = vmatpush1.bf16.msra.mxu0 0
      %1266 = vmatprep.subr.bf16.mxu0 0
      %1267 = vmatpush1.bf16.msra.mxu0 0
      %1268 = vmatprep.subr.bf16.mxu0 0
      %1269 = vmatpush1.bf16.msra.mxu0 0
      %1270 = vmatprep.subr.bf16.mxu0 0
      %1271 = vmatpush1.bf16.msra.mxu0 %v939
      %1272 = vmatprep.subr.bf16.mxu0 0
      %1273 = vmatpush1.bf16.msra.mxu0 %v938
      %1274 = vmatprep.subr.bf16.mxu0 0
      %1275 = vmatpush2.bf16.msra.mxu0 0
      %1276 = vmatprep.subr.bf16.mxu0 0
      %1277 = vmatpush2.bf16.msra.mxu0 0
      %1278 = vmatprep.subr.bf16.mxu0 0
      %1279 = vmatpush2.bf16.msra.mxu0 0
      %1280 = vmatprep.subr.bf16.mxu0 0
      %1281 = vmatpush2.bf16.msra.mxu0 0
      %1282 = vmatprep.subr.bf16.mxu0 0
      %1283 = vmatpush2.bf16.msra.mxu0 0
      %1284 = vmatprep.subr.bf16.mxu0 0
      %1285 = vmatpush2.bf16.msra.mxu0 0
      %1286 = vmatprep.subr.bf16.mxu0 0
      %1287 = vmatpush2.bf16.msra.mxu0 0
      %1288 = vmatprep.subr.bf16.mxu0 0
      %1289 = vmatpush2.bf16.msra.mxu0 0
      %1290 = vmatprep.mubr.bf16.mxu0 0
      %1291 = vmatmul.mubr.bf16.gmra.mxu0 %v1256
      %v1292 = vpop.f32.mrf.mxu0
      %v1293 = vadd.f32 0.0, %v1292
      %v1294 = vpop.f32.mrf.mxu0
      %v1295 = vpop.f32.mrf.mxu0
      %v1296 = vpop.f32.mrf.mxu0
      %1297 = vdwg.mxu0
      %v1298 = vadd.f32 %v1251, %v1293
      %v1299 = vxor.u32 %v1298, 2147483648
      %v1300 = vmul.f32 %v1299, 1.442695
      %v1301 = vpow.pop %v1300
      %v1302 = vadd.f32 %v1301, 1.0
      %v1303 = vrcp.pop %v1302
      %v1304 = vmul.f32 1.0, %v1303
      %v1305 = vtanh.pop %v1298
      %v1306 = vmul.f32 %v1304, %v1168
      %1308 = vrot.lane.b32.xlu0 %v1305, 64
      %v1309 = vpop.permute.xlu0 %1308
      %v1311 = vmul.f32 %v1304, %v1309
      %1313 = vrot.lane.b32.xlu0 %v1311, 32
      %v1314 = vpop.permute.xlu0 %1313
      %v1316 = vadd.f32 %v1306, %v1314
      %v1317 = vtanh.pop %v1316
      %1319 = vrot.lane.b32.xlu0 %v1317, 64
      %v1320 = vpop.permute.xlu0 %1319
      %v1322 = vmul.f32 %v1304, %v1320
      %v1323 = vpack.c.bf16 %v1322, %v1322
      %s1324 = scalar_lea.vmem [#allocation3], 8
      %v1325 = vld [vmem:[%s1324] sm:$0xff]
      %1327 = vrot.lane.b32.xlu0 %v1249, 32
      %v1328 = vpop.permute.xlu0 %1327
      %v1330 = vsel %vm584, %v1328, 0
      %1332 = vmatprep.subr.bf16.mxu0 0
      %1333 = vmatpush1.bf16.msra.mxu0 0
      %1334 = vmatprep.subr.bf16.mxu0 0
      %1335 = vmatpush1.bf16.msra.mxu0 0
      %1336 = vmatprep.subr.bf16.mxu0 0
      %1337 = vmatpush1.bf16.msra.mxu0 0
      %1338 = vmatprep.subr.bf16.mxu0 0
      %1339 = vmatpush1.bf16.msra.mxu0 0
      %1340 = vmatprep.subr.bf16.mxu0 0
      %1341 = vmatpush1.bf16.msra.mxu0 0
      %1342 = vmatprep.subr.bf16.mxu0 0
      %1343 = vmatpush1.bf16.msra.mxu0 0
      %1344 = vmatprep.subr.bf16.mxu0 0
      %1345 = vmatpush1.bf16.msra.mxu0 %v1026
      %1346 = vmatprep.subr.bf16.mxu0 0
      %1347 = vmatpush1.bf16.msra.mxu0 %v1025
      %1348 = vmatprep.subr.bf16.mxu0 0
      %1349 = vmatpush2.bf16.msra.mxu0 0
      %1350 = vmatprep.subr.bf16.mxu0 0
      %1351 = vmatpush2.bf16.msra.mxu0 0
      %1352 = vmatprep.subr.bf16.mxu0 0
      %1353 = vmatpush2.bf16.msra.mxu0 0
      %1354 = vmatprep.subr.bf16.mxu0 0
      %1355 = vmatpush2.bf16.msra.mxu0 0
      %1356 = vmatprep.subr.bf16.mxu0 0
      %1357 = vmatpush2.bf16.msra.mxu0 0
      %1358 = vmatprep.subr.bf16.mxu0 0
      %1359 = vmatpush2.bf16.msra.mxu0 0
      %1360 = vmatprep.subr.bf16.mxu0 0
      %1361 = vmatpush2.bf16.msra.mxu0 0
      %1362 = vmatprep.subr.bf16.mxu0 0
      %1363 = vmatpush2.bf16.msra.mxu0 0
      %1364 = vmatprep.mubr.bf16.mxu0 0
      %1365 = vmatmul.mubr.bf16.gmra.mxu0 %v1330
      %v1366 = vpop.f32.mrf.mxu0
      %v1367 = vadd.f32 0.0, %v1366
      %v1368 = vpop.f32.mrf.mxu0
      %v1369 = vpop.f32.mrf.mxu0
      %v1370 = vpop.f32.mrf.mxu0
      %1371 = vdwg.mxu0
      %v1372 = vadd.f32 %v1325, %v1367
      %v1373 = vxor.u32 %v1372, 2147483648
      %v1374 = vmul.f32 %v1373, 1.442695
      %v1375 = vpow.pop %v1374
      %v1376 = vadd.f32 %v1375, 1.0
      %v1377 = vrcp.pop %v1376
      %v1378 = vmul.f32 1.0, %v1377
      %v1379 = vtanh.pop %v1372
      %v1380 = vmul.f32 %v1378, %v1242
      %1382 = vrot.lane.b32.xlu0 %v1379, 64
      %v1383 = vpop.permute.xlu0 %1382
      %v1385 = vmul.f32 %v1378, %v1383
      %1387 = vrot.lane.b32.xlu0 %v1385, 32
      %v1388 = vpop.permute.xlu0 %1387
      %v1390 = vadd.f32 %v1380, %v1388
      %v1391 = vtanh.pop %v1390
      %1393 = vrot.lane.b32.xlu0 %v1391, 64
      %v1394 = vpop.permute.xlu0 %1393
      %v1396 = vmul.f32 %v1378, %v1394
      %v1397 = vpack.c.bf16 %v1396, %v1396
      %s1398 = scalar_lea.vmem [#allocation2], 24
      %v1399 = vld [vmem:[%s1398] sm:$0xff]
      %1401 = vrot.lane.b32.xlu0 %v1323, 32
      %v1402 = vpop.permute.xlu0 %1401
      %v1404 = vsel %vm584, %v1402, 0
      %1406 = vmatprep.subr.bf16.mxu0 0
      %1407 = vmatpush1.bf16.msra.mxu0 0
      %1408 = vmatprep.subr.bf16.mxu0 0
      %1409 = vmatpush1.bf16.msra.mxu0 0
      %1410 = vmatprep.subr.bf16.mxu0 0
      %1411 = vmatpush1.bf16.msra.mxu0 0
      %1412 = vmatprep.subr.bf16.mxu0 0
      %1413 = vmatpush1.bf16.msra.mxu0 0
      %1414 = vmatprep.subr.bf16.mxu0 0
      %1415 = vmatpush1.bf16.msra.mxu0 0
      %1416 = vmatprep.subr.bf16.mxu0 0
      %1417 = vmatpush1.bf16.msra.mxu0 0
      %1418 = vmatprep.subr.bf16.mxu0 0
      %1419 = vmatpush1.bf16.msra.mxu0 %v939
      %1420 = vmatprep.subr.bf16.mxu0 0
      %1421 = vmatpush1.bf16.msra.mxu0 %v938
      %1422 = vmatprep.subr.bf16.mxu0 0
      %1423 = vmatpush2.bf16.msra.mxu0 0
      %1424 = vmatprep.subr.bf16.mxu0 0
      %1425 = vmatpush2.bf16.msra.mxu0 0
      %1426 = vmatprep.subr.bf16.mxu0 0
      %1427 = vmatpush2.bf16.msra.mxu0 0
      %1428 = vmatprep.subr.bf16.mxu0 0
      %1429 = vmatpush2.bf16.msra.mxu0 0
      %1430 = vmatprep.subr.bf16.mxu0 0
      %1431 = vmatpush2.bf16.msra.mxu0 0
      %1432 = vmatprep.subr.bf16.mxu0 0
      %1433 = vmatpush2.bf16.msra.mxu0 0
      %1434 = vmatprep.subr.bf16.mxu0 0
      %1435 = vmatpush2.bf16.msra.mxu0 0
      %1436 = vmatprep.subr.bf16.mxu0 0
      %1437 = vmatpush2.bf16.msra.mxu0 0
      %1438 = vmatprep.mubr.bf16.mxu0 0
      %1439 = vmatmul.mubr.bf16.gmra.mxu0 %v1404
      %v1440 = vpop.f32.mrf.mxu0
      %v1441 = vadd.f32 0.0, %v1440
      %v1442 = vpop.f32.mrf.mxu0
      %v1443 = vpop.f32.mrf.mxu0
      %v1444 = vpop.f32.mrf.mxu0
      %1445 = vdwg.mxu0
      %v1446 = vadd.f32 %v1399, %v1441
      %v1447 = vxor.u32 %v1446, 2147483648
      %v1448 = vmul.f32 %v1447, 1.442695
      %v1449 = vpow.pop %v1448
      %v1450 = vadd.f32 %v1449, 1.0
      %v1451 = vrcp.pop %v1450
      %v1452 = vmul.f32 1.0, %v1451
      %v1453 = vtanh.pop %v1446
      %v1454 = vmul.f32 %v1452, %v1316
      %1456 = vrot.lane.b32.xlu0 %v1453, 64
      %v1457 = vpop.permute.xlu0 %1456
      %v1459 = vmul.f32 %v1452, %v1457
      %1461 = vrot.lane.b32.xlu0 %v1459, 32
      %v1462 = vpop.permute.xlu0 %1461
      %v1464 = vadd.f32 %v1454, %v1462
      %v1465 = vtanh.pop %v1464
      %1467 = vrot.lane.b32.xlu0 %v1465, 64
      %v1468 = vpop.permute.xlu0 %1467
      %v1470 = vmul.f32 %v1452, %v1468
      %v1471 = vpack.c.bf16 %v1470, %v1470
      %v1472 = vld [vmem:[#allocation3] sm:$0xff]
      %1474 = vrot.lane.b32.xlu0 %v1397, 32
      %v1475 = vpop.permute.xlu0 %1474
      %v1477 = vsel %vm584, %v1475, 0
      %1479 = vmatprep.subr.bf16.mxu0 0
      %1480 = vmatpush1.bf16.msra.mxu0 0
      %1481 = vmatprep.subr.bf16.mxu0 0
      %1482 = vmatpush1.bf16.msra.mxu0 0
      %1483 = vmatprep.subr.bf16.mxu0 0
      %1484 = vmatpush1.bf16.msra.mxu0 0
      %1485 = vmatprep.subr.bf16.mxu0 0
      %1486 = vmatpush1.bf16.msra.mxu0 0
      %1487 = vmatprep.subr.bf16.mxu0 0
      %1488 = vmatpush1.bf16.msra.mxu0 0
      %1489 = vmatprep.subr.bf16.mxu0 0
      %1490 = vmatpush1.bf16.msra.mxu0 0
      %1491 = vmatprep.subr.bf16.mxu0 0
      %1492 = vmatpush1.bf16.msra.mxu0 %v1026
      %1493 = vmatprep.subr.bf16.mxu0 0
      %1494 = vmatpush1.bf16.msra.mxu0 %v1025
      %1495 = vmatprep.subr.bf16.mxu0 0
      %1496 = vmatpush2.bf16.msra.mxu0 0
      %1497 = vmatprep.subr.bf16.mxu0 0
      %1498 = vmatpush2.bf16.msra.mxu0 0
      %1499 = vmatprep.subr.bf16.mxu0 0
      %1500 = vmatpush2.bf16.msra.mxu0 0
      %1501 = vmatprep.subr.bf16.mxu0 0
      %1502 = vmatpush2.bf16.msra.mxu0 0
      %1503 = vmatprep.subr.bf16.mxu0 0
      %1504 = vmatpush2.bf16.msra.mxu0 0
      %1505 = vmatprep.subr.bf16.mxu0 0
      %1506 = vmatpush2.bf16.msra.mxu0 0
      %1507 = vmatprep.subr.bf16.mxu0 0
      %1508 = vmatpush2.bf16.msra.mxu0 0
      %1509 = vmatprep.subr.bf16.mxu0 0
      %1510 = vmatpush2.bf16.msra.mxu0 0
      %1511 = vmatprep.mubr.bf16.mxu0 0
      %1512 = vmatmul.mubr.bf16.gmra.mxu0 %v1477
      %v1513 = vpop.f32.mrf.mxu0
      %v1514 = vadd.f32 0.0, %v1513
      %v1515 = vpop.f32.mrf.mxu0
      %v1516 = vpop.f32.mrf.mxu0
      %v1517 = vpop.f32.mrf.mxu0
      %1518 = vdwg.mxu0
      %v1519 = vadd.f32 %v1472, %v1514
      %v1520 = vxor.u32 %v1519, 2147483648
      %v1521 = vmul.f32 %v1520, 1.442695
      %v1522 = vpow.pop %v1521
      %v1523 = vadd.f32 %v1522, 1.0
      %v1524 = vrcp.pop %v1523
      %v1525 = vmul.f32 1.0, %v1524
      %v1526 = vtanh.pop %v1519
      %v1527 = vmul.f32 %v1525, %v1390
      %1529 = vrot.lane.b32.xlu0 %v1526, 64
      %v1530 = vpop.permute.xlu0 %1529
      %v1532 = vmul.f32 %v1525, %v1530
      %1534 = vrot.lane.b32.xlu0 %v1532, 32
      %v1535 = vpop.permute.xlu0 %1534
      %v1537 = vadd.f32 %v1527, %v1535
      %v1538 = vtanh.pop %v1537
      %1540 = vrot.lane.b32.xlu0 %v1538, 64
      %v1541 = vpop.permute.xlu0 %1540
      %v1543 = vmul.f32 %v1525, %v1541
      %v1544 = vpack.c.bf16 %v1543, %v1543
      %v1546 = vunpack.c.l.b16 %v1471
      %v1547 = vpack.c.b16 %v1546, %v1546
      %1548 = vrot.lane.b32.xlu0 %v1547, 32
      %v1549 = vpop.permute.xlu0 %1548
      %vm1551 = vcmask 257024
      %1552 = vst.msk [vmem:[#allocation4] sm:$0xf] %vm1551, %v1549
      %1554 = vrot.lane.b32.xlu0 %v1464, 96
      %v1555 = vpop.permute.xlu0 %1554
      %1557 = vst.msk [vmem:[#allocation5] sm:$0xff] %vm584, %v1555
      %v1559 = vunpack.c.l.b16 %v1544
      %v1560 = vpack.c.b16 %v1559, %v1559
      %1561 = vrot.lane.b32.xlu0 %v1560, 32
      %v1562 = vpop.permute.xlu0 %1561
      %1564 = vst.msk [vmem:[#allocation6] sm:$0xf] %vm1551, %v1562
      %1566 = vrot.lane.b32.xlu0 %v1537, 96
      %v1567 = vpop.permute.xlu0 %1566
      %1569 = vst.msk [vmem:[#allocation7] sm:$0xff] %vm584, %v1567
      // Predicated region
      $region81: #{vae_encoder_forward.3} parent=75 // pred_check
        %p1570 = pneg %p536
      $region82: #{vae_encoder_forward.3} parent=75 // pred_check_branch
        %1572 = sbr.rel (%p1570) target = $region84
      $region83: #{vae_encoder_forward.3} parent=75 // pred_region
        %v1573 = vunpack.c.l.b16 %v1101
        %v1574 = vpack.c.b16 %v1573, %v1573
        %1575 = vrot.lane.b32.xlu0 %v1574, 32
        %v1576 = vpop.permute.xlu0 %1575
        %1578 = vst.msk [vmem:[#allocation8] sm:$0xf] %vm1551, %v1576
      $region84: #{vae_encoder_forward.3} parent=75 // pred_fallthru
        _
      %p1579 = scmp.eq.s32.totalorder %s25, 1
      // Predicated region
      $region85: #{vae_encoder_forward.3} parent=75 // pred_check
        %p1580 = pneg %p1579
      $region86: #{vae_encoder_forward.3} parent=75 // pred_check_branch
        %1582 = sbr.rel (%p1580) target = $region88
      $region87: #{vae_encoder_forward.3} parent=75 // pred_region
        %v1583 = vld [vmem:[%s12] sm:$0xf]
        %v1584 = vld [vmem:[%s12 + $0x4] sm:$0xf]
        %v1585 = vld [vmem:[%s12 + $0x8] sm:$0xf]
        %v1586 = vld [vmem:[%s12 + $0xc] sm:$0xf]
        %v1587 = vld [vmem:[#allocation8] sm:$0xf]
        %v1588 = vld [vmem:[%s12 + $0x10] sm:$0xf]
        %v1589 = vld [vmem:[%s12 + $0x14] sm:$0xf]
        %v1590 = vld [vmem:[%s12 + $0x18] sm:$0xf]
        %v1591 = vld [vmem:[%s12 + $0x1c] sm:$0xf]
        %v1596 = vunpack.c.l.b16 %v1588
        %v1597 = vunpack.c.l.b16 %v1589
        %v1598 = vunpack.c.l.b16 %v1590
        %v1599 = vunpack.c.l.b16 %v1591
        %v1600 = vpack.c.b16 %v1597, %v1596
        %v1601 = vpack.c.b16 %v1599, %v1598
        %v1605 = vsel %vm584, %v1587, 0
        %1607 = vmatprep.subr.bf16.mxu0 0
        %1608 = vmatpush1.bf16.msra.mxu0 0
        %1609 = vmatprep.subr.bf16.mxu0 0
        %1610 = vmatpush1.bf16.msra.mxu0 0
        %1611 = vmatprep.subr.bf16.mxu0 0
        %1612 = vmatpush1.bf16.msra.mxu0 0
        %1613 = vmatprep.subr.bf16.mxu0 0
        %1614 = vmatpush1.bf16.msra.mxu0 0
        %1615 = vmatprep.subr.bf16.mxu0 0
        %1616 = vmatpush1.bf16.msra.mxu0 0
        %1617 = vmatprep.subr.bf16.mxu0 0
        %1618 = vmatpush1.bf16.msra.mxu0 0
        %1619 = vmatprep.subr.bf16.mxu0 0
        %1620 = vmatpush1.bf16.msra.mxu0 %v1601
        %1621 = vmatprep.subr.bf16.mxu0 0
        %1622 = vmatpush1.bf16.msra.mxu0 %v1600
        %1623 = vmatprep.subr.bf16.mxu0 0
        %1624 = vmatpush2.bf16.msra.mxu0 0
        %1625 = vmatprep.subr.bf16.mxu0 0
        %1626 = vmatpush2.bf16.msra.mxu0 0
        %1627 = vmatprep.subr.bf16.mxu0 0
        %1628 = vmatpush2.bf16.msra.mxu0 0
        %1629 = vmatprep.subr.bf16.mxu0 0
        %1630 = vmatpush2.bf16.msra.mxu0 0
        %1631 = vmatprep.subr.bf16.mxu0 0
        %1632 = vmatpush2.bf16.msra.mxu0 0
        %1633 = vmatprep.subr.bf16.mxu0 0
        %1634 = vmatpush2.bf16.msra.mxu0 0
        %1635 = vmatprep.subr.bf16.mxu0 0
        %1636 = vmatpush2.bf16.msra.mxu0 0
        %1637 = vmatprep.subr.bf16.mxu0 0
        %1638 = vmatpush2.bf16.msra.mxu0 0
        %1639 = vmatprep.mubr.bf16.mxu0 0
        %1640 = vmatmul.mubr.bf16.gmra.mxu0 %v1605
        %v1641 = vpop.f32.mrf.mxu0
        %v1642 = vadd.f32 0.0, %v1641
        %v1643 = vpop.f32.mrf.mxu0
        %v1644 = vpop.f32.mrf.mxu0
        %v1645 = vpop.f32.mrf.mxu0
        %1646 = vdwg.mxu0
        %1647 = vrot.lane.b32.xlu0 %v1471, 32
        %v1648 = vpop.permute.xlu0 %1647
        %v1653 = vunpack.c.l.b16 %v1583
        %v1654 = vunpack.c.l.b16 %v1584
        %v1655 = vunpack.c.l.b16 %v1585
        %v1656 = vunpack.c.l.b16 %v1586
        %v1657 = vpack.c.b16 %v1654, %v1653
        %v1658 = vpack.c.b16 %v1656, %v1655
        %v1662 = vsel %vm584, %v1648, 0
        %1664 = vmatprep.subr.bf16.mxu0 0
        %1665 = vmatpush1.bf16.msra.mxu0 0
        %1666 = vmatprep.subr.bf16.mxu0 0
        %1667 = vmatpush1.bf16.msra.mxu0 0
        %1668 = vmatprep.subr.bf16.mxu0 0
        %1669 = vmatpush1.bf16.msra.mxu0 0
        %1670 = vmatprep.subr.bf16.mxu0 0
        %1671 = vmatpush1.bf16.msra.mxu0 0
        %1672 = vmatprep.subr.bf16.mxu0 0
        %1673 = vmatpush1.bf16.msra.mxu0 0
        %1674 = vmatprep.subr.bf16.mxu0 0
        %1675 = vmatpush1.bf16.msra.mxu0 0
        %1676 = vmatprep.subr.bf16.mxu0 0
        %1677 = vmatpush1.bf16.msra.mxu0 %v1658
        %1678 = vmatprep.subr.bf16.mxu0 0
        %1679 = vmatpush1.bf16.msra.mxu0 %v1657
        %1680 = vmatprep.subr.bf16.mxu0 0
        %1681 = vmatpush2.bf16.msra.mxu0 0
        %1682 = vmatprep.subr.bf16.mxu0 0
        %1683 = vmatpush2.bf16.msra.mxu0 0
        %1684 = vmatprep.subr.bf16.mxu0 0
        %1685 = vmatpush2.bf16.msra.mxu0 0
        %1686 = vmatprep.subr.bf16.mxu0 0
        %1687 = vmatpush2.bf16.msra.mxu0 0
        %1688 = vmatprep.subr.bf16.mxu0 0
        %1689 = vmatpush2.bf16.msra.mxu0 0
        %1690 = vmatprep.subr.bf16.mxu0 0
        %1691 = vmatpush2.bf16.msra.mxu0 0
        %1692 = vmatprep.subr.bf16.mxu0 0
        %1693 = vmatpush2.bf16.msra.mxu0 0
        %1694 = vmatprep.subr.bf16.mxu0 0
        %1695 = vmatpush2.bf16.msra.mxu0 0
        %1696 = vmatprep.mubr.bf16.mxu0 0
        %1697 = vmatmul.mubr.bf16.gmra.mxu0 %v1662
        %v1698 = vpop.f32.mrf.mxu0
        %v1699 = vadd.f32 %v1642, %v1698
        %v1700 = vpop.f32.mrf.mxu0
        %v1701 = vpop.f32.mrf.mxu0
        %v1702 = vpop.f32.mrf.mxu0
        %1703 = vdwg.mxu0
        %v1704 = vld [vmem:[%s13] sm:$0x1]
        %v1706 = vlaneseq
        %v1707 = vshrl.u32 %v1706, 7
        %v1708 = vsub.s32 0, %v1707
        %v1709 = vrot.slane %v1704, %v1708
        %v1711 = vadd.f32 %v1699, %v1709
        %1712 = vst.msk [vmem:[%s14] sm:$0xff] %vm584, %v1711
      $region88: #{vae_encoder_forward.3} parent=75 // pred_fallthru
        _
      // Predicated region
      $region89: #{vae_encoder_forward.3} parent=75 // pred_check
        %p1713 = pneg %p356
      $region90: #{vae_encoder_forward.3} parent=75 // pred_check_branch
        %1715 = sbr.rel (%p1713) target = $region92
      $region91: #{vae_encoder_forward.3} parent=75 // pred_region
        _
      $region92: #{vae_encoder_forward.3} parent=75 // pred_fallthru
        _
      // Predicated region
      $region93: #{vae_encoder_forward.3} parent=75 // pred_check
        %p1716 = pneg %p356
      $region94: #{vae_encoder_forward.3} parent=75 // pred_check_branch
        %1718 = sbr.rel (%p1716) target = $region96
      $region95: #{vae_encoder_forward.3} parent=75 // pred_region
        _
      $region96: #{vae_encoder_forward.3} parent=75 // pred_fallthru
        _
    $region76: #{vae_encoder_forward.3} parent=5 // pred_fallthru
      _
    %p1719 = scmp.le.s32.totalorder 2, %s20
    // Predicated region
    $region97: #{vae_encoder_forward.3} parent=5 // pred_check
      %p1720 = pneg %p1719
    $region98: #{vae_encoder_forward.3} parent=5 // pred_check_branch
      %1722 = sbr.rel (%p1720) target = $region100
    $region99: #{vae_encoder_forward.3} parent=5 // pred_region
      %s1723 = ssub.s32 %s20, 2
    $region100: #{vae_encoder_forward.3} parent=5 // pred_fallthru
      _
  $region6: #{vae_encoder_forward.3} parent=0 // loop_footer
    %s24 = sadd.s32 1, %s20
  $region7: #{vae_encoder_forward.3} parent=0 // loop_footer_branch
    %19 = sbr.rel target = $region3
  $region8: #{vae_encoder_forward.3} parent=0 // loop_exit
    _

// kernel: vae_encoder_forward.2
$region0: #{vae_encoder_forward.2}
  #allocation0 [shape = 'u32[]', space=smem, size = 0x4, offset = 0x4, fixed_abs, tag = 'smem constant byte address 0x4 - core index']
  #allocation1 [shape = 'u32[144,128]{1,0:T(1,128)}', space=vmem, size = 0x12000, scoped, tag = 'internal scratch']
  #allocation2 [shape = 'f32[32,128]{1,0:T(8,128)}', space=vmem, size = 0x4000, scoped, tag = 'scratch operand']
  #allocation3 [shape = 'f32[32,128]{1,0:T(8,128)}', space=vmem, size = 0x4000, scoped, tag = 'scratch operand']
  #allocation4 [shape = 'bf16[8,32]{1,0:T(8,128)(2,1)}', space=vmem, size = 0x800, scoped, tag = 'scratch operand']
  #allocation5 [shape = 'f32[8,32]{1,0:T(8,128)}', space=vmem, size = 0x1000, scoped, tag = 'scratch operand']
  #allocation6 [shape = 'bf16[8,32]{1,0:T(8,128)(2,1)}', space=vmem, size = 0x800, scoped, tag = 'scratch operand']
  #allocation7 [shape = 'f32[8,32]{1,0:T(8,128)}', space=vmem, size = 0x1000, scoped, tag = 'scratch operand']
  %s0 = inlined_call_operand.vmem [shape: bf16[64,16], index: 0, kind: input, shape index: {}, may-alias: {0,2}]
  %s1 = inlined_call_operand.vmem [shape: bf16[64,16], index: 1, kind: input, shape index: {}, may-alias: {1,3}]
  %s2 = inlined_call_operand.vmem [shape: bf16[64,16], index: 2, kind: input, shape index: {}, may-alias: {0,2}]
  %s3 = inlined_call_operand.vmem [shape: bf16[64,16], index: 3, kind: input, shape index: {}, may-alias: {1,3}]
  %s4 = inlined_call_operand.vmem [shape: bf16[16,128], index: 4, kind: input, shape index: {}]
  %s5 = inlined_call_operand.vmem [shape: bf16[16,128], index: 5, kind: input, shape index: {}]
  %s6 = inlined_call_operand.vmem [shape: bf16[16,128], index: 6, kind: input, shape index: {}]
  %s7 = inlined_call_operand.vmem [shape: bf16[16,128], index: 7, kind: input, shape index: {}]
  %s8 = inlined_call_operand.vmem [shape: bf16[32,128], index: 8, kind: input, shape index: {}]
  %s9 = inlined_call_operand.vmem [shape: bf16[32,128], index: 9, kind: input, shape index: {}]
  %s10 = inlined_call_operand.vmem [shape: f32[1,128], index: 10, kind: input, shape index: {}]
  %s11 = inlined_call_operand.vmem [shape: f32[1,128], index: 11, kind: input, shape index: {}]
  %s12 = inlined_call_operand.vmem [shape: bf16[64,32], index: 12, kind: output, shape index: {0}]
  %s13 = inlined_call_operand.vmem [shape: bf16[64,32], index: 13, kind: output, shape index: {1}]
  %14 = xla_tuple %s12, %s13
  %s15 = sld [smem:[#allocation0]]
  $region93: #{vae_encoder_forward.2} parent=0
    _
  %s17 = ssub.s32 1, %s15
  %s18 = scalar_select 0, %s17, %s15
  loop: start=0, step=1, limit=4
  $region2: #{vae_encoder_forward.2} parent=0 // loop_pre_header
    _
  $region3: #{vae_encoder_forward.2} parent=0 // loop_header
    %s20 = sphi 0, %s24
    %p21 = scmp.ge.s32.totalorder %s20, 4
    %s30 = sphi 0, %s32
    %s33 = sphi 0, %s30
    %s34 = sphi 0, %s33
    %s50 = sphi 0, %s34
    %s56 = sphi 0, %s58
    %s59 = sphi 0, %s56
    %s60 = sphi 0, %s59
    %s76 = sphi 0, %s60
    %s84 = sphi 0, %s86
    %s87 = sphi 0, %s84
    %s88 = sphi 0, %s87
    %s104 = sphi 0, %s88
    %s112 = sphi 0, %s114
    %s115 = sphi 0, %s112
    %s116 = sphi 0, %s115
    %s132 = sphi 0, %s116
    %s136 = sphi 0, %s136
    %s138 = sphi 0, %s136
    %s139 = sphi 0, %s138
    %s153 = sphi 0, %s139
    %s157 = sphi 0, %s157
    %s159 = sphi 0, %s157
    %s160 = sphi 0, %s159
    %s174 = sphi 0, %s160
    %s178 = sphi 0, %s178
    %s180 = sphi 0, %s178
    %s181 = sphi 0, %s180
    %s195 = sphi 0, %s181
    %s199 = sphi 0, %s199
    %s201 = sphi 0, %s199
    %s202 = sphi 0, %s201
    %s216 = sphi 0, %s202
    %s220 = sphi 0, %s220
    %s222 = sphi 0, %s220
    %s223 = sphi 0, %s222
    %s237 = sphi 0, %s223
    %s241 = sphi 0, %s241
    %s243 = sphi 0, %s241
    %s244 = sphi 0, %s243
    %s258 = sphi 0, %s244
    %s262 = sphi 0, %s262
    %s264 = sphi 0, %s262
    %s265 = sphi 0, %s264
    %s279 = sphi 0, %s265
    %s283 = sphi 0, %s283
    %s285 = sphi 0, %s283
    %s286 = sphi 0, %s285
    %s300 = sphi 0, %s286
    %s306 = sphi 0, %s308
    %s309 = sphi 0, %s306
    %s310 = sphi 0, %s309
    %s326 = sphi 0, %s310
    %s334 = sphi 0, %s336
    %s337 = sphi 0, %s334
    %s338 = sphi 0, %s337
    %s354 = sphi 0, %s338
  $region4: #{vae_encoder_forward.2} parent=0 // loop_header_branch
    %23 = sbr.rel (%p21) target = $region8
  $region5: #{vae_encoder_forward.2} parent=0 // loop_body
    %s25 = ssub.s32 %s20, 1
    %s26 = ssub.s32 %s20, 2
    %s27 = sadd.s32 %s20, 1
    %s28 = ssub.s32 %s20, %s27
    %p29 = scmp.eq.s32.totalorder %s28, 0
    %s31 = sadd.s32 %s30, 1
    %s32 = scalar_select %p29, %s30, %s31
    %p35 = pneg %p29
    %p36 = scmp.eq.s32.totalorder %s20, 1
    %p37 = por %p35, %p36
    %p38 = scmp.ne.s32.totalorder %s30, %s33
    %p39 = scmp.eq.s32.totalorder %s20, 0
    %p40 = por %p38, %p39
    %p41 = scmp.ne.s32.totalorder %s30, %s33
    %p42 = scmp.eq.s32.totalorder %s25, 1
    %p43 = por %p41, %p42
    %p44 = scmp.ne.s32.totalorder %s33, %s34
    %p45 = scmp.eq.s32.totalorder %s25, 0
    %p46 = por %p44, %p45
    %p47 = scmp.ne.s32.totalorder %s33, %s34
    %p48 = scmp.eq.s32.totalorder %s26, 1
    %p49 = por %p47, %p48
    %p51 = scmp.ne.s32.totalorder %s34, %s50
    %p52 = scmp.eq.s32.totalorder %s26, 0
    %p53 = por %p51, %p52
    %s54 = ssub.s32 %s20, %s27
    %p55 = scmp.eq.s32.totalorder %s54, 0
    %s57 = sadd.s32 %s56, 1
    %s58 = scalar_select %p55, %s56, %s57
    %p61 = pneg %p55
    %p62 = scmp.eq.s32.totalorder %s20, 1
    %p63 = por %p61, %p62
    %p64 = scmp.ne.s32.totalorder %s56, %s59
    %p65 = scmp.eq.s32.totalorder %s20, 0
    %p66 = por %p64, %p65
    %p67 = scmp.ne.s32.totalorder %s56, %s59
    %p68 = scmp.eq.s32.totalorder %s25, 1
    %p69 = por %p67, %p68
    %p70 = scmp.ne.s32.totalorder %s59, %s60
    %p71 = scmp.eq.s32.totalorder %s25, 0
    %p72 = por %p70, %p71
    %p73 = scmp.ne.s32.totalorder %s59, %s60
    %p74 = scmp.eq.s32.totalorder %s26, 1
    %p75 = por %p73, %p74
    %p77 = scmp.ne.s32.totalorder %s60, %s76
    %p78 = scmp.eq.s32.totalorder %s26, 0
    %p79 = por %p77, %p78
    %s80 = ssub.s32 1, %s20
    %s81 = ssub.s32 1, %s27
    %s82 = ssub.s32 %s80, %s81
    %p83 = scmp.eq.s32.totalorder %s82, 0
    %s85 = sadd.s32 %s84, 1
    %s86 = scalar_select %p83, %s84, %s85
    %p89 = pneg %p83
    %p90 = scmp.eq.s32.totalorder %s20, 1
    %p91 = por %p89, %p90
    %p92 = scmp.ne.s32.totalorder %s84, %s87
    %p93 = scmp.eq.s32.totalorder %s20, 0
    %p94 = por %p92, %p93
    %p95 = scmp.ne.s32.totalorder %s84, %s87
    %p96 = scmp.eq.s32.totalorder %s25, 1
    %p97 = por %p95, %p96
    %p98 = scmp.ne.s32.totalorder %s87, %s88
    %p99 = scmp.eq.s32.totalorder %s25, 0
    %p100 = por %p98, %p99
    %p101 = scmp.ne.s32.totalorder %s87, %s88
    %p102 = scmp.eq.s32.totalorder %s26, 1
    %p103 = por %p101, %p102
    %p105 = scmp.ne.s32.totalorder %s88, %s104
    %p106 = scmp.eq.s32.totalorder %s26, 0
    %p107 = por %p105, %p106
    %s108 = ssub.s32 1, %s20
    %s109 = ssub.s32 1, %s27
    %s110 = ssub.s32 %s108, %s109
    %p111 = scmp.eq.s32.totalorder %s110, 0
    %s113 = sadd.s32 %s112, 1
    %s114 = scalar_select %p111, %s112, %s113
    %p117 = pneg %p111
    %p118 = scmp.eq.s32.totalorder %s20, 1
    %p119 = por %p117, %p118
    %p120 = scmp.ne.s32.totalorder %s112, %s115
    %p121 = scmp.eq.s32.totalorder %s20, 0
    %p122 = por %p120, %p121
    %p123 = scmp.ne.s32.totalorder %s112, %s115
    %p124 = scmp.eq.s32.totalorder %s25, 1
    %p125 = por %p123, %p124
    %p126 = scmp.ne.s32.totalorder %s115, %s116
    %p127 = scmp.eq.s32.totalorder %s25, 0
    %p128 = por %p126, %p127
    %p129 = scmp.ne.s32.totalorder %s115, %s116
    %p130 = scmp.eq.s32.totalorder %s26, 1
    %p131 = por %p129, %p130
    %p133 = scmp.ne.s32.totalorder %s116, %s132
    %p134 = scmp.eq.s32.totalorder %s26, 0
    %p135 = por %p133, %p134
    %s137 = sadd.s32 %s136, 1
    %p140 = scmp.eq.s32.totalorder %s20, 1
    %p141 = scmp.ne.s32.totalorder %s136, %s138
    %p142 = scmp.eq.s32.totalorder %s20, 0
    %p143 = por %p141, %p142
    %p144 = scmp.ne.s32.totalorder %s136, %s138
    %p145 = scmp.eq.s32.totalorder %s25, 1
    %p146 = por %p144, %p145
    %p147 = scmp.ne.s32.totalorder %s138, %s139
    %p148 = scmp.eq.s32.totalorder %s25, 0
    %p149 = por %p147, %p148
    %p150 = scmp.ne.s32.totalorder %s138, %s139
    %p151 = scmp.eq.s32.totalorder %s26, 1
    %p152 = por %p150, %p151
    %p154 = scmp.ne.s32.totalorder %s139, %s153
    %p155 = scmp.eq.s32.totalorder %s26, 0
    %p156 = por %p154, %p155
    %s158 = sadd.s32 %s157, 1
    %p161 = scmp.eq.s32.totalorder %s20, 1
    %p162 = scmp.ne.s32.totalorder %s157, %s159
    %p163 = scmp.eq.s32.totalorder %s20, 0
    %p164 = por %p162, %p163
    %p165 = scmp.ne.s32.totalorder %s157, %s159
    %p166 = scmp.eq.s32.totalorder %s25, 1
    %p167 = por %p165, %p166
    %p168 = scmp.ne.s32.totalorder %s159, %s160
    %p169 = scmp.eq.s32.totalorder %s25, 0
    %p170 = por %p168, %p169
    %p171 = scmp.ne.s32.totalorder %s159, %s160
    %p172 = scmp.eq.s32.totalorder %s26, 1
    %p173 = por %p171, %p172
    %p175 = scmp.ne.s32.totalorder %s160, %s174
    %p176 = scmp.eq.s32.totalorder %s26, 0
    %p177 = por %p175, %p176
    %s179 = sadd.s32 %s178, 1
    %p182 = scmp.eq.s32.totalorder %s20, 1
    %p183 = scmp.ne.s32.totalorder %s178, %s180
    %p184 = scmp.eq.s32.totalorder %s20, 0
    %p185 = por %p183, %p184
    %p186 = scmp.ne.s32.totalorder %s178, %s180
    %p187 = scmp.eq.s32.totalorder %s25, 1
    %p188 = por %p186, %p187
    %p189 = scmp.ne.s32.totalorder %s180, %s181
    %p190 = scmp.eq.s32.totalorder %s25, 0
    %p191 = por %p189, %p190
    %p192 = scmp.ne.s32.totalorder %s180, %s181
    %p193 = scmp.eq.s32.totalorder %s26, 1
    %p194 = por %p192, %p193
    %p196 = scmp.ne.s32.totalorder %s181, %s195
    %p197 = scmp.eq.s32.totalorder %s26, 0
    %p198 = por %p196, %p197
    %s200 = sadd.s32 %s199, 1
    %p203 = scmp.eq.s32.totalorder %s20, 1
    %p204 = scmp.ne.s32.totalorder %s199, %s201
    %p205 = scmp.eq.s32.totalorder %s20, 0
    %p206 = por %p204, %p205
    %p207 = scmp.ne.s32.totalorder %s199, %s201
    %p208 = scmp.eq.s32.totalorder %s25, 1
    %p209 = por %p207, %p208
    %p210 = scmp.ne.s32.totalorder %s201, %s202
    %p211 = scmp.eq.s32.totalorder %s25, 0
    %p212 = por %p210, %p211
    %p213 = scmp.ne.s32.totalorder %s201, %s202
    %p214 = scmp.eq.s32.totalorder %s26, 1
    %p215 = por %p213, %p214
    %p217 = scmp.ne.s32.totalorder %s202, %s216
    %p218 = scmp.eq.s32.totalorder %s26, 0
    %p219 = por %p217, %p218
    %s221 = sadd.s32 %s220, 1
    %p224 = scmp.eq.s32.totalorder %s20, 1
    %p225 = scmp.ne.s32.totalorder %s220, %s222
    %p226 = scmp.eq.s32.totalorder %s20, 0
    %p227 = por %p225, %p226
    %p228 = scmp.ne.s32.totalorder %s220, %s222
    %p229 = scmp.eq.s32.totalorder %s25, 1
    %p230 = por %p228, %p229
    %p231 = scmp.ne.s32.totalorder %s222, %s223
    %p232 = scmp.eq.s32.totalorder %s25, 0
    %p233 = por %p231, %p232
    %p234 = scmp.ne.s32.totalorder %s222, %s223
    %p235 = scmp.eq.s32.totalorder %s26, 1
    %p236 = por %p234, %p235
    %p238 = scmp.ne.s32.totalorder %s223, %s237
    %p239 = scmp.eq.s32.totalorder %s26, 0
    %p240 = por %p238, %p239
    %s242 = sadd.s32 %s241, 1
    %p245 = scmp.eq.s32.totalorder %s20, 1
    %p246 = scmp.ne.s32.totalorder %s241, %s243
    %p247 = scmp.eq.s32.totalorder %s20, 0
    %p248 = por %p246, %p247
    %p249 = scmp.ne.s32.totalorder %s241, %s243
    %p250 = scmp.eq.s32.totalorder %s25, 1
    %p251 = por %p249, %p250
    %p252 = scmp.ne.s32.totalorder %s243, %s244
    %p253 = scmp.eq.s32.totalorder %s25, 0
    %p254 = por %p252, %p253
    %p255 = scmp.ne.s32.totalorder %s243, %s244
    %p256 = scmp.eq.s32.totalorder %s26, 1
    %p257 = por %p255, %p256
    %p259 = scmp.ne.s32.totalorder %s244, %s258
    %p260 = scmp.eq.s32.totalorder %s26, 0
    %p261 = por %p259, %p260
    %s263 = sadd.s32 %s262, 1
    %p266 = scmp.eq.s32.totalorder %s20, 1
    %p267 = scmp.ne.s32.totalorder %s262, %s264
    %p268 = scmp.eq.s32.totalorder %s20, 0
    %p269 = por %p267, %p268
    %p270 = scmp.ne.s32.totalorder %s262, %s264
    %p271 = scmp.eq.s32.totalorder %s25, 1
    %p272 = por %p270, %p271
    %p273 = scmp.ne.s32.totalorder %s264, %s265
    %p274 = scmp.eq.s32.totalorder %s25, 0
    %p275 = por %p273, %p274
    %p276 = scmp.ne.s32.totalorder %s264, %s265
    %p277 = scmp.eq.s32.totalorder %s26, 1
    %p278 = por %p276, %p277
    %p280 = scmp.ne.s32.totalorder %s265, %s279
    %p281 = scmp.eq.s32.totalorder %s26, 0
    %p282 = por %p280, %p281
    %s284 = sadd.s32 %s283, 1
    %p287 = scmp.eq.s32.totalorder %s20, 1
    %p288 = scmp.ne.s32.totalorder %s283, %s285
    %p289 = scmp.eq.s32.totalorder %s20, 0
    %p290 = por %p288, %p289
    %p291 = scmp.ne.s32.totalorder %s283, %s285
    %p292 = scmp.eq.s32.totalorder %s25, 1
    %p293 = por %p291, %p292
    %p294 = scmp.ne.s32.totalorder %s285, %s286
    %p295 = scmp.eq.s32.totalorder %s25, 0
    %p296 = por %p294, %p295
    %p297 = scmp.ne.s32.totalorder %s285, %s286
    %p298 = scmp.eq.s32.totalorder %s26, 1
    %p299 = por %p297, %p298
    %p301 = scmp.ne.s32.totalorder %s286, %s300
    %p302 = scmp.eq.s32.totalorder %s26, 0
    %p303 = por %p301, %p302
    %s304 = ssub.s32 %s20, %s27
    %p305 = scmp.eq.s32.totalorder %s304, 0
    %s307 = sadd.s32 %s306, 1
    %s308 = scalar_select %p305, %s306, %s307
    %p311 = pneg %p305
    %p312 = scmp.eq.s32.totalorder %s20, 1
    %p313 = por %p311, %p312
    %p314 = scmp.ne.s32.totalorder %s306, %s309
    %p315 = scmp.eq.s32.totalorder %s20, 0
    %p316 = por %p314, %p315
    %p317 = scmp.ne.s32.totalorder %s306, %s309
    %p318 = scmp.eq.s32.totalorder %s25, 1
    %p319 = por %p317, %p318
    %p320 = scmp.ne.s32.totalorder %s309, %s310
    %p321 = scmp.eq.s32.totalorder %s25, 0
    %p322 = por %p320, %p321
    %p323 = scmp.ne.s32.totalorder %s309, %s310
    %p324 = scmp.eq.s32.totalorder %s26, 1
    %p325 = por %p323, %p324
    %p327 = scmp.ne.s32.totalorder %s310, %s326
    %p328 = scmp.eq.s32.totalorder %s26, 0
    %p329 = por %p327, %p328
    %s330 = ssub.s32 1, %s20
    %s331 = ssub.s32 1, %s27
    %s332 = ssub.s32 %s330, %s331
    %p333 = scmp.eq.s32.totalorder %s332, 0
    %s335 = sadd.s32 %s334, 1
    %s336 = scalar_select %p333, %s334, %s335
    %p339 = pneg %p333
    %p340 = scmp.eq.s32.totalorder %s20, 1
    %p341 = por %p339, %p340
    %p342 = scmp.ne.s32.totalorder %s334, %s337
    %p343 = scmp.eq.s32.totalorder %s20, 0
    %p344 = por %p342, %p343
    %p345 = scmp.ne.s32.totalorder %s334, %s337
    %p346 = scmp.eq.s32.totalorder %s25, 1
    %p347 = por %p345, %p346
    %p348 = scmp.ne.s32.totalorder %s337, %s338
    %p349 = scmp.eq.s32.totalorder %s25, 0
    %p350 = por %p348, %p349
    %p351 = scmp.ne.s32.totalorder %s337, %s338
    %p352 = scmp.eq.s32.totalorder %s26, 1
    %p353 = por %p351, %p352
    %p355 = scmp.ne.s32.totalorder %s338, %s354
    %p356 = scmp.eq.s32.totalorder %s26, 0
    %p357 = por %p355, %p356
    %p358 = scmp.le.s32.totalorder 1, %s20
    %p359 = scmp.lt.s32.totalorder %s20, 3
    %p360 = pnand %p358, %p359
    %p361 = pneg %p360
    // Predicated region
    $region9: #{vae_encoder_forward.2} parent=5 // pred_check
      _
    $region10: #{vae_encoder_forward.2} parent=5 // pred_check_branch
      %363 = sbr.rel (%p360) target = $region12
    $region11: #{vae_encoder_forward.2} parent=5 // pred_region
      %s364 = ssub.s32 %s20, 1
      // Predicated region
      $region13: #{vae_encoder_forward.2} parent=11 // pred_check
        %p365 = pneg %p149
      $region14: #{vae_encoder_forward.2} parent=11 // pred_check_branch
        %367 = sbr.rel (%p365) target = $region16
      $region15: #{vae_encoder_forward.2} parent=11 // pred_region
        _
      $region16: #{vae_encoder_forward.2} parent=11 // pred_fallthru
        _
      // Predicated region
      $region17: #{vae_encoder_forward.2} parent=11 // pred_check
        %p368 = pneg %p170
      $region18: #{vae_encoder_forward.2} parent=11 // pred_check_branch
        %370 = sbr.rel (%p368) target = $region20
      $region19: #{vae_encoder_forward.2} parent=11 // pred_region
        _
      $region20: #{vae_encoder_forward.2} parent=11 // pred_fallthru
        _
      // Predicated region
      $region21: #{vae_encoder_forward.2} parent=11 // pred_check
        %p371 = pneg %p191
      $region22: #{vae_encoder_forward.2} parent=11 // pred_check_branch
        %373 = sbr.rel (%p371) target = $region24
      $region23: #{vae_encoder_forward.2} parent=11 // pred_region
        _
      $region24: #{vae_encoder_forward.2} parent=11 // pred_fallthru
        _
      // Predicated region
      $region25: #{vae_encoder_forward.2} parent=11 // pred_check
        %p374 = pneg %p212
      $region26: #{vae_encoder_forward.2} parent=11 // pred_check_branch
        %376 = sbr.rel (%p374) target = $region28
      $region27: #{vae_encoder_forward.2} parent=11 // pred_region
        _
      $region28: #{vae_encoder_forward.2} parent=11 // pred_fallthru
        _
      // Predicated region
      $region29: #{vae_encoder_forward.2} parent=11 // pred_check
        %p377 = pneg %p233
      $region30: #{vae_encoder_forward.2} parent=11 // pred_check_branch
        %379 = sbr.rel (%p377) target = $region32
      $region31: #{vae_encoder_forward.2} parent=11 // pred_region
        _
      $region32: #{vae_encoder_forward.2} parent=11 // pred_fallthru
        _
      // Predicated region
      $region33: #{vae_encoder_forward.2} parent=11 // pred_check
        %p380 = pneg %p254
      $region34: #{vae_encoder_forward.2} parent=11 // pred_check_branch
        %382 = sbr.rel (%p380) target = $region36
      $region35: #{vae_encoder_forward.2} parent=11 // pred_region
        _
      $region36: #{vae_encoder_forward.2} parent=11 // pred_fallthru
        _
      // Predicated region
      $region37: #{vae_encoder_forward.2} parent=11 // pred_check
        %p383 = pneg %p275
      $region38: #{vae_encoder_forward.2} parent=11 // pred_check_branch
        %385 = sbr.rel (%p383) target = $region40
      $region39: #{vae_encoder_forward.2} parent=11 // pred_region
        _
      $region40: #{vae_encoder_forward.2} parent=11 // pred_fallthru
        _
      // Predicated region
      $region41: #{vae_encoder_forward.2} parent=11 // pred_check
        %p386 = pneg %p296
      $region42: #{vae_encoder_forward.2} parent=11 // pred_check_branch
        %388 = sbr.rel (%p386) target = $region44
      $region43: #{vae_encoder_forward.2} parent=11 // pred_region
        _
      $region44: #{vae_encoder_forward.2} parent=11 // pred_fallthru
        _
    $region12: #{vae_encoder_forward.2} parent=5 // pred_fallthru
      _
    %p389 = scmp.lt.s32.totalorder %s20, 2
    // Predicated region
    $region45: #{vae_encoder_forward.2} parent=5 // pred_check
      %p390 = pneg %p389
    $region46: #{vae_encoder_forward.2} parent=5 // pred_check_branch
      %392 = sbr.rel (%p390) target = $region48
    $region47: #{vae_encoder_forward.2} parent=5 // pred_region
      // Predicated region
      $region49: #{vae_encoder_forward.2} parent=47 // pred_check
        %p393 = pneg %p40
      $region50: #{vae_encoder_forward.2} parent=47 // pred_check_branch
        %395 = sbr.rel (%p393) target = $region52
      $region51: #{vae_encoder_forward.2} parent=47 // pred_region
        %s396 = smul.u32 4, %s20
        %p397 = scmp.lt.s32.totalorder %s396, 7
        %s398 = scalar_select %p397, %s396, 7
        %s399 = smul.addr %s398, 4
        %s400 = scalar_lea.vmem %s0, %s399
        %s401 = smul.u32 4, %s20
      $region52: #{vae_encoder_forward.2} parent=47 // pred_fallthru
        _
      // Predicated region
      $region53: #{vae_encoder_forward.2} parent=47 // pred_check
        %p402 = pneg %p66
      $region54: #{vae_encoder_forward.2} parent=47 // pred_check_branch
        %404 = sbr.rel (%p402) target = $region56
      $region55: #{vae_encoder_forward.2} parent=47 // pred_region
        %s405 = smul.u32 4, %s20
        %p406 = scmp.lt.s32.totalorder %s405, 7
        %s407 = scalar_select %p406, %s405, 7
        %s408 = smul.addr %s407, 4
        %s409 = scalar_lea.vmem %s1, %s408
        %s410 = smul.u32 4, %s20
      $region56: #{vae_encoder_forward.2} parent=47 // pred_fallthru
        _
      // Predicated region
      $region57: #{vae_encoder_forward.2} parent=47 // pred_check
        %p411 = pneg %p94
      $region58: #{vae_encoder_forward.2} parent=47 // pred_check_branch
        %413 = sbr.rel (%p411) target = $region60
      $region59: #{vae_encoder_forward.2} parent=47 // pred_region
        %s414 = ssub.s32 1, %s20
        %s415 = smul.u32 4, %s414
        %p416 = scmp.lt.s32.totalorder %s415, 7
        %s417 = scalar_select %p416, %s415, 7
        %s418 = smul.addr %s417, 4
        %s419 = scalar_lea.vmem %s2, %s418
        %s420 = ssub.s32 1, %s20
        %s421 = smul.u32 4, %s420
      $region60: #{vae_encoder_forward.2} parent=47 // pred_fallthru
        _
      // Predicated region
      $region61: #{vae_encoder_forward.2} parent=47 // pred_check
        %p422 = pneg %p122
      $region62: #{vae_encoder_forward.2} parent=47 // pred_check_branch
        %424 = sbr.rel (%p422) target = $region64
      $region63: #{vae_encoder_forward.2} parent=47 // pred_region
        %s425 = ssub.s32 1, %s20
        %s426 = smul.u32 4, %s425
        %p427 = scmp.lt.s32.totalorder %s426, 7
        %s428 = scalar_select %p427, %s426, 7
        %s429 = smul.addr %s428, 4
        %s430 = scalar_lea.vmem %s3, %s429
        %s431 = ssub.s32 1, %s20
        %s432 = smul.u32 4, %s431
      $region64: #{vae_encoder_forward.2} parent=47 // pred_fallthru
        _
    $region48: #{vae_encoder_forward.2} parent=5 // pred_fallthru
      _
    %p433 = scmp.le.s32.totalorder 1, %s20
    %p434 = scmp.lt.s32.totalorder %s20, 3
    %p435 = pnand %p433, %p434
    %p436 = pneg %p435
    // Predicated region
    $region65: #{vae_encoder_forward.2} parent=5 // pred_check
      _
    $region66: #{vae_encoder_forward.2} parent=5 // pred_check_branch
      %438 = sbr.rel (%p435) target = $region68
    $region67: #{vae_encoder_forward.2} parent=5 // pred_region
      %s439 = ssub.s32 %s20, 1
      %s440 = smul.u32 4, %s25
      %p441 = scmp.lt.s32.totalorder %s440, 7
      %s442 = scalar_select %p441, %s440, 7
      %s443 = smul.addr %s442, 4
      %s444 = scalar_lea.vmem %s0, %s443
      %p445 = pneg %p46
      %p446 = pneg %p43
      %s447 = smul.u32 4, %s25
      %p448 = scmp.lt.s32.totalorder %s447, 7
      %s449 = scalar_select %p448, %s447, 7
      %s450 = smul.addr %s449, 4
      %s451 = scalar_lea.vmem %s1, %s450
      %p452 = pneg %p72
      %p453 = pneg %p69
      %s454 = ssub.s32 1, %s25
      %s455 = smul.u32 4, %s454
      %p456 = scmp.lt.s32.totalorder %s455, 7
      %s457 = scalar_select %p456, %s455, 7
      %s458 = smul.addr %s457, 4
      %s459 = scalar_lea.vmem %s2, %s458
      %p460 = pneg %p100
      %p461 = pneg %p97
      %s462 = ssub.s32 1, %s25
      %s463 = smul.u32 4, %s462
      %p464 = scmp.lt.s32.totalorder %s463, 7
      %s465 = scalar_select %p464, %s463, 7
      %s466 = smul.addr %s465, 4
      %s467 = scalar_lea.vmem %s3, %s466
      %p468 = pneg %p128
      %p469 = pneg %p125
      %p470 = pneg %p149
      %p471 = pneg %p146
      %p472 = pneg %p170
      %p473 = pneg %p167
      %p474 = pneg %p191
      %p475 = pneg %p188
      %p476 = pneg %p212
      %p477 = pneg %p209
      %p478 = pneg %p233
      %p479 = pneg %p230
      %p480 = pneg %p254
      %p481 = pneg %p251
      %p482 = pneg %p275
      %p483 = pneg %p272
      %p484 = pneg %p296
      %p485 = pneg %p293
      %p486 = pneg %p322
      %p487 = pneg %p319
      %s488 = smul.u32 4, %s25
      %p489 = scmp.lt.s32.totalorder %s488, 7
      %s490 = scalar_select %p489, %s488, 7
      %s491 = smul.addr %s490, 4
      %s492 = scalar_lea.vmem %s12, %s491
      %p493 = pneg %p350
      %p494 = pneg %p347
      %s495 = ssub.s32 1, %s25
      %s496 = smul.u32 4, %s495
      %p497 = scmp.lt.s32.totalorder %s496, 7
      %s498 = scalar_select %p497, %s496, 7
      %s499 = smul.addr %s498, 4
      %s500 = scalar_lea.vmem %s13, %s499
      %s501 = smul.u32 4, %s25
      %p502 = scmp.lt.s32.totalorder %s501, 7
      %s503 = scalar_select %p502, %s501, 7
      %s504 = smul.addr %s503, 4
      %s505 = scalar_lea.vmem %s0, %s504
      %s506 = smul.u32 4, %s25
      %s507 = smul.u32 4, %s25
      %p508 = scmp.lt.s32.totalorder %s507, 7
      %s509 = scalar_select %p508, %s507, 7
      %s510 = smul.addr %s509, 4
      %s511 = scalar_lea.vmem %s1, %s510
      %s512 = smul.u32 4, %s25
      %s513 = ssub.s32 1, %s25
      %s514 = smul.u32 4, %s513
      %p515 = scmp.lt.s32.totalorder %s514, 7
      %s516 = scalar_select %p515, %s514, 7
      %s517 = smul.addr %s516, 4
      %s518 = scalar_lea.vmem %s2, %s517
      %s519 = ssub.s32 1, %s25
      %s520 = smul.u32 4, %s519
      %s521 = ssub.s32 1, %s25
      %s522 = smul.u32 4, %s521
      %p523 = scmp.lt.s32.totalorder %s522, 7
      %s524 = scalar_select %p523, %s522, 7
      %s525 = smul.addr %s524, 4
      %s526 = scalar_lea.vmem %s3, %s525
      %s527 = ssub.s32 1, %s25
      %s528 = smul.u32 4, %s527
      %s529 = smul.u32 4, %s25
      %p530 = scmp.lt.s32.totalorder %s529, 7
      %s531 = scalar_select %p530, %s529, 7
      %s532 = smul.addr %s531, 4
      %s533 = scalar_lea.vmem %s12, %s532
      %s534 = smul.u32 4, %s25
      %s535 = ssub.s32 1, %s25
      %s536 = smul.u32 4, %s535
      %p537 = scmp.lt.s32.totalorder %s536, 7
      %s538 = scalar_select %p537, %s536, 7
      %s539 = smul.addr %s538, 4
      %s540 = scalar_lea.vmem %s13, %s539
      %s541 = ssub.s32 1, %s25
      %s542 = smul.u32 4, %s541
      %p544 = scmp.eq.s32.totalorder %s25, 0
      // Predicated region
      $region69: #{vae_encoder_forward.2} parent=67 // pred_check
        %p545 = pneg %p544
      $region70: #{vae_encoder_forward.2} parent=67 // pred_check_branch
        %547 = sbr.rel (%p545) target = $region72
      $region71: #{vae_encoder_forward.2} parent=67 // pred_region
        %vm548 = vcmask 257024
        %549 = vst.msk [vmem:[#allocation4] sm:$0xf] %vm548, 0
        %vm550 = vcmask 261120
        %551 = vst.msk [vmem:[#allocation5] sm:$0xff] %vm550, 0.0
        %552 = vst.msk [vmem:[#allocation6] sm:$0xf] %vm548, 0
        %553 = vst.msk [vmem:[#allocation7] sm:$0xff] %vm550, 0.0
      $region72: #{vae_encoder_forward.2} parent=67 // pred_fallthru
        _
      %v554 = vld [vmem:[%s505] sm:$0xf]
      %v555 = vld [vmem:[%s505 + $0x4] sm:$0xf]
      %v556 = vld [vmem:[%s505 + $0x8] sm:$0xf]
      %v557 = vld [vmem:[%s505 + $0xc] sm:$0xf]
      %v558 = vld [vmem:[%s4] sm:$0xf]
      %v559 = vld [vmem:[%s4 + $0x4] sm:$0xf]
      %v560 = vld [vmem:[%s511] sm:$0xf]
      %v561 = vld [vmem:[%s511 + $0x4] sm:$0xf]
      %v562 = vld [vmem:[%s511 + $0x8] sm:$0xf]
      %v563 = vld [vmem:[%s511 + $0xc] sm:$0xf]
      %v564 = vld [vmem:[%s5] sm:$0xf]
      %v565 = vld [vmem:[%s5 + $0x4] sm:$0xf]
      %v570 = vunpack.c.l.b16 %v560
      %v571 = vunpack.c.l.b16 %v561
      %v572 = vunpack.c.l.b16 %v562
      %v573 = vunpack.c.l.b16 %v563
      %v574 = vpack.c.b16 %v571, %v570
      %v575 = vpack.c.b16 %v573, %v572
      %v578 = vunpack.c.l.b16 %v564
      %v579 = vunpack.c.l.b16 %v565
      %v580 = vpack.c.b16 %v579, %v578
      %vm582 = vcmask 130048
      %v584 = vsel %vm582, %v574, 0
      %v587 = vsel %vm582, %v575, 0
      %589 = vmatprep.subr.bf16.mxu0 0
      %590 = vmatpush1.bf16.msra.mxu0 0
      %591 = vmatprep.subr.bf16.mxu0 0
      %592 = vmatpush1.bf16.msra.mxu0 0
      %593 = vmatprep.subr.bf16.mxu0 0
      %594 = vmatpush1.bf16.msra.mxu0 0
      %595 = vmatprep.subr.bf16.mxu0 0
      %596 = vmatpush1.bf16.msra.mxu0 0
      %597 = vmatprep.subr.bf16.mxu0 0
      %598 = vmatpush1.bf16.msra.mxu0 0
      %599 = vmatprep.subr.bf16.mxu0 0
      %600 = vmatpush1.bf16.msra.mxu0 0
      %601 = vmatprep.subr.bf16.mxu0 0
      %602 = vmatpush1.bf16.msra.mxu0 0
      %603 = vmatprep.subr.bf16.mxu0 0
      %604 = vmatpush1.bf16.msra.mxu0 %v580
      %605 = vmatprep.subr.bf16.mxu0 0
      %606 = vmatpush2.bf16.msra.mxu0 0
      %607 = vmatprep.subr.bf16.mxu0 0
      %608 = vmatpush2.bf16.msra.mxu0 0
      %609 = vmatprep.subr.bf16.mxu0 0
      %610 = vmatpush2.bf16.msra.mxu0 0
      %611 = vmatprep.subr.bf16.mxu0 0
      %612 = vmatpush2.bf16.msra.mxu0 0
      %613 = vmatprep.subr.bf16.mxu0 0
      %614 = vmatpush2.bf16.msra.mxu0 0
      %615 = vmatprep.subr.bf16.mxu0 0
      %616 = vmatpush2.bf16.msra.mxu0 0
      %617 = vmatprep.subr.bf16.mxu0 0
      %618 = vmatpush2.bf16.msra.mxu0 0
      %619 = vmatprep.subr.bf16.mxu0 0
      %620 = vmatpush2.bf16.msra.mxu0 0
      %621 = vmatprep.mubr.bf16.mxu0 0
      %622 = vmatmul.mubr.bf16.gmra.mxu0 %v584
      %v623 = vpop.f32.mrf.mxu0
      %v624 = vadd.f32 0.0, %v623
      %v625 = vpop.f32.mrf.mxu0
      %v626 = vpop.f32.mrf.mxu0
      %v627 = vadd.f32 0.0, %v626
      %v628 = vpop.f32.mrf.mxu0
      %629 = vmatprep.mubr.bf16.mxu0 0
      %630 = vmatmul.mubr.bf16.gmra.mxu0 %v587
      %v631 = vpop.f32.mrf.mxu0
      %v632 = vadd.f32 0.0, %v631
      %v633 = vpop.f32.mrf.mxu0
      %v634 = vpop.f32.mrf.mxu0
      %v635 = vadd.f32 0.0, %v634
      %v636 = vpop.f32.mrf.mxu0
      %637 = vdwg.mxu0
      %v642 = vunpack.c.l.b16 %v554
      %v643 = vunpack.c.l.b16 %v555
      %v644 = vunpack.c.l.b16 %v556
      %v645 = vunpack.c.l.b16 %v557
      %v646 = vpack.c.b16 %v643, %v642
      %v647 = vpack.c.b16 %v645, %v644
      %v650 = vunpack.c.l.b16 %v558
      %v651 = vunpack.c.l.b16 %v559
      %v652 = vpack.c.b16 %v651, %v650
      %v655 = vsel %vm582, %v646, 0
      %v658 = vsel %vm582, %v647, 0
      %660 = vmatprep.subr.bf16.mxu0 0
      %661 = vmatpush1.bf16.msra.mxu0 0
      %662 = vmatprep.subr.bf16.mxu0 0
      %663 = vmatpush1.bf16.msra.mxu0 0
      %664 = vmatprep.subr.bf16.mxu0 0
      %665 = vmatpush1.bf16.msra.mxu0 0
      %666 = vmatprep.subr.bf16.mxu0 0
      %667 = vmatpush1.bf16.msra.mxu0 0
      %668 = vmatprep.subr.bf16.mxu0 0
      %669 = vmatpush1.bf16.msra.mxu0 0
      %670 = vmatprep.subr.bf16.mxu0 0
      %671 = vmatpush1.bf16.msra.mxu0 0
      %672 = vmatprep.subr.bf16.mxu0 0
      %673 = vmatpush1.bf16.msra.mxu0 0
      %674 = vmatprep.subr.bf16.mxu0 0
      %675 = vmatpush1.bf16.msra.mxu0 %v652
      %676 = vmatprep.subr.bf16.mxu0 0
      %677 = vmatpush2.bf16.msra.mxu0 0
      %678 = vmatprep.subr.bf16.mxu0 0
      %679 = vmatpush2.bf16.msra.mxu0 0
      %680 = vmatprep.subr.bf16.mxu0 0
      %681 = vmatpush2.bf16.msra.mxu0 0
      %682 = vmatprep.subr.bf16.mxu0 0
      %683 = vmatpush2.bf16.msra.mxu0 0
      %684 = vmatprep.subr.bf16.mxu0 0
      %685 = vmatpush2.bf16.msra.mxu0 0
      %686 = vmatprep.subr.bf16.mxu0 0
      %687 = vmatpush2.bf16.msra.mxu0 0
      %688 = vmatprep.subr.bf16.mxu0 0
      %689 = vmatpush2.bf16.msra.mxu0 0
      %690 = vmatprep.subr.bf16.mxu0 0
      %691 = vmatpush2.bf16.msra.mxu0 0
      %692 = vmatprep.mubr.bf16.mxu0 0
      %693 = vmatmul.mubr.bf16.gmra.mxu0 %v655
      %v694 = vpop.f32.mrf.mxu0
      %v695 = vadd.f32 %v624, %v694
      %v696 = vpop.f32.mrf.mxu0
      %v697 = vpop.f32.mrf.mxu0
      %v698 = vadd.f32 %v627, %v697
      %v699 = vpop.f32.mrf.mxu0
      %700 = vmatprep.mubr.bf16.mxu0 0
      %701 = vmatmul.mubr.bf16.gmra.mxu0 %v658
      %v702 = vpop.f32.mrf.mxu0
      %v703 = vadd.f32 %v632, %v702
      %v704 = vpop.f32.mrf.mxu0
      %v705 = vpop.f32.mrf.mxu0
      %v706 = vadd.f32 %v635, %v705
      %v707 = vpop.f32.mrf.mxu0
      %708 = vdwg.mxu0
      %v709 = vld [vmem:[%s10] sm:$0x1]
      %v711 = vlaneseq
      %v712 = vshrl.u32 %v711, 7
      %v713 = vsub.s32 0, %v712
      %v714 = vrot.slane %v709, %v713
      %v716 = vadd.f32 %v695, %v714
      %v717 = vadd.f32 %v698, %v714
      %v718 = vadd.f32 %v703, %v714
      %v719 = vadd.f32 %v706, %v714
      %720 = vst [vmem:[#allocation2] sm:$0xff] %v716
      %721 = vst [vmem:[#allocation2 + $0x8] sm:$0xff] %v717
      %722 = vst [vmem:[#allocation2 + $0x10] sm:$0xff] %v718
      %723 = vst [vmem:[#allocation2 + $0x18] sm:$0xff] %v719
      %v724 = vld [vmem:[%s518] sm:$0xf]
      %v725 = vld [vmem:[%s518 + $0x4] sm:$0xf]
      %v726 = vld [vmem:[%s518 + $0x8] sm:$0xf]
      %v727 = vld [vmem:[%s518 + $0xc] sm:$0xf]
      %v728 = vld [vmem:[%s6] sm:$0xf]
      %v729 = vld [vmem:[%s6 + $0x4] sm:$0xf]
      %v730 = vld [vmem:[%s526] sm:$0xf]
      %v731 = vld [vmem:[%s526 + $0x4] sm:$0xf]
      %v732 = vld [vmem:[%s526 + $0x8] sm:$0xf]
      %v733 = vld [vmem:[%s526 + $0xc] sm:$0xf]
      %v734 = vld [vmem:[%s7] sm:$0xf]
      %v735 = vld [vmem:[%s7 + $0x4] sm:$0xf]
      %v740 = vunpack.c.l.b16 %v730
      %v741 = vunpack.c.l.b16 %v731
      %v742 = vunpack.c.l.b16 %v732
      %v743 = vunpack.c.l.b16 %v733
      %v744 = vpack.c.b16 %v741, %v740
      %v745 = vpack.c.b16 %v743, %v742
      %v748 = vunpack.c.l.b16 %v734
      %v749 = vunpack.c.l.b16 %v735
      %v750 = vpack.c.b16 %v749, %v748
      %v753 = vsel %vm582, %v744, 0
      %v756 = vsel %vm582, %v745, 0
      %758 = vmatprep.subr.bf16.mxu0 0
      %759 = vmatpush1.bf16.msra.mxu0 0
      %760 = vmatprep.subr.bf16.mxu0 0
      %761 = vmatpush1.bf16.msra.mxu0 0
      %762 = vmatprep.subr.bf16.mxu0 0
      %763 = vmatpush1.bf16.msra.mxu0 0
      %764 = vmatprep.subr.bf16.mxu0 0
      %765 = vmatpush1.bf16.msra.mxu0 0
      %766 = vmatprep.subr.bf16.mxu0 0
      %767 = vmatpush1.bf16.msra.mxu0 0
      %768 = vmatprep.subr.bf16.mxu0 0
      %769 = vmatpush1.bf16.msra.mxu0 0
      %770 = vmatprep.subr.bf16.mxu0 0
      %771 = vmatpush1.bf16.msra.mxu0 0
      %772 = vmatprep.subr.bf16.mxu0 0
      %773 = vmatpush1.bf16.msra.mxu0 %v750
      %774 = vmatprep.subr.bf16.mxu0 0
      %775 = vmatpush2.bf16.msra.mxu0 0
      %776 = vmatprep.subr.bf16.mxu0 0
      %777 = vmatpush2.bf16.msra.mxu0 0
      %778 = vmatprep.subr.bf16.mxu0 0
      %779 = vmatpush2.bf16.msra.mxu0 0
      %780 = vmatprep.subr.bf16.mxu0 0
      %781 = vmatpush2.bf16.msra.mxu0 0
      %782 = vmatprep.subr.bf16.mxu0 0
      %783 = vmatpush2.bf16.msra.mxu0 0
      %784 = vmatprep.subr.bf16.mxu0 0
      %785 = vmatpush2.bf16.msra.mxu0 0
      %786 = vmatprep.subr.bf16.mxu0 0
      %787 = vmatpush2.bf16.msra.mxu0 0
      %788 = vmatprep.subr.bf16.mxu0 0
      %789 = vmatpush2.bf16.msra.mxu0 0
      %790 = vmatprep.mubr.bf16.mxu0 0
      %791 = vmatmul.mubr.bf16.gmra.mxu0 %v753
      %v792 = vpop.f32.mrf.mxu0
      %v793 = vadd.f32 0.0, %v792
      %v794 = vpop.f32.mrf.mxu0
      %v795 = vpop.f32.mrf.mxu0
      %v796 = vadd.f32 0.0, %v795
      %v797 = vpop.f32.mrf.mxu0
      %798 = vmatprep.mubr.bf16.mxu0 0
      %799 = vmatmul.mubr.bf16.gmra.mxu0 %v756
      %v800 = vpop.f32.mrf.mxu0
      %v801 = vadd.f32 0.0, %v800
      %v802 = vpop.f32.mrf.mxu0
      %v803 = vpop.f32.mrf.mxu0
      %v804 = vadd.f32 0.0, %v803
      %v805 = vpop.f32.mrf.mxu0
      %806 = vdwg.mxu0
      %v811 = vunpack.c.l.b16 %v724
      %v812 = vunpack.c.l.b16 %v725
      %v813 = vunpack.c.l.b16 %v726
      %v814 = vunpack.c.l.b16 %v727
      %v815 = vpack.c.b16 %v812, %v811
      %v816 = vpack.c.b16 %v814, %v813
      %v819 = vunpack.c.l.b16 %v728
      %v820 = vunpack.c.l.b16 %v729
      %v821 = vpack.c.b16 %v820, %v819
      %v824 = vsel %vm582, %v815, 0
      %v827 = vsel %vm582, %v816, 0
      %829 = vmatprep.subr.bf16.mxu0 0
      %830 = vmatpush1.bf16.msra.mxu0 0
      %831 = vmatprep.subr.bf16.mxu0 0
      %832 = vmatpush1.bf16.msra.mxu0 0
      %833 = vmatprep.subr.bf16.mxu0 0
      %834 = vmatpush1.bf16.msra.mxu0 0
      %835 = vmatprep.subr.bf16.mxu0 0
      %836 = vmatpush1.bf16.msra.mxu0 0
      %837 = vmatprep.subr.bf16.mxu0 0
      %838 = vmatpush1.bf16.msra.mxu0 0
      %839 = vmatprep.subr.bf16.mxu0 0
      %840 = vmatpush1.bf16.msra.mxu0 0
      %841 = vmatprep.subr.bf16.mxu0 0
      %842 = vmatpush1.bf16.msra.mxu0 0
      %843 = vmatprep.subr.bf16.mxu0 0
      %844 = vmatpush1.bf16.msra.mxu0 %v821
      %845 = vmatprep.subr.bf16.mxu0 0
      %846 = vmatpush2.bf16.msra.mxu0 0
      %847 = vmatprep.subr.bf16.mxu0 0
      %848 = vmatpush2.bf16.msra.mxu0 0
      %849 = vmatprep.subr.bf16.mxu0 0
      %850 = vmatpush2.bf16.msra.mxu0 0
      %851 = vmatprep.subr.bf16.mxu0 0
      %852 = vmatpush2.bf16.msra.mxu0 0
      %853 = vmatprep.subr.bf16.mxu0 0
      %854 = vmatpush2.bf16.msra.mxu0 0
      %855 = vmatprep.subr.bf16.mxu0 0
      %856 = vmatpush2.bf16.msra.mxu0 0
      %857 = vmatprep.subr.bf16.mxu0 0
      %858 = vmatpush2.bf16.msra.mxu0 0
      %859 = vmatprep.subr.bf16.mxu0 0
      %860 = vmatpush2.bf16.msra.mxu0 0
      %861 = vmatprep.mubr.bf16.mxu0 0
      %862 = vmatmul.mubr.bf16.gmra.mxu0 %v824
      %v863 = vpop.f32.mrf.mxu0
      %v864 = vadd.f32 %v793, %v863
      %v865 = vpop.f32.mrf.mxu0
      %v866 = vpop.f32.mrf.mxu0
      %v867 = vadd.f32 %v796, %v866
      %v868 = vpop.f32.mrf.mxu0
      %869 = vmatprep.mubr.bf16.mxu0 0
      %870 = vmatmul.mubr.bf16.gmra.mxu0 %v827
      %v871 = vpop.f32.mrf.mxu0
      %v872 = vadd.f32 %v801, %v871
      %v873 = vpop.f32.mrf.mxu0
      %v874 = vpop.f32.mrf.mxu0
      %v875 = vadd.f32 %v804, %v874
      %v876 = vpop.f32.mrf.mxu0
      %877 = vdwg.mxu0
      %v878 = vld [vmem:[%s11] sm:$0x1]
      %v880 = vlaneseq
      %v881 = vshrl.u32 %v880, 7
      %v882 = vsub.s32 0, %v881
      %v883 = vrot.slane %v878, %v882
      %v885 = vadd.f32 %v864, %v883
      %v886 = vadd.f32 %v867, %v883
      %v887 = vadd.f32 %v872, %v883
      %v888 = vadd.f32 %v875, %v883
      %889 = vst [vmem:[#allocation3] sm:$0xff] %v885
      %890 = vst [vmem:[#allocation3 + $0x8] sm:$0xff] %v886
      %891 = vst [vmem:[#allocation3 + $0x10] sm:$0xff] %v887
      %892 = vst [vmem:[#allocation3 + $0x18] sm:$0xff] %v888
      %v893 = vld [vmem:[%s8] sm:$0xf]
      %v894 = vld [vmem:[%s8 + $0x4] sm:$0xf]
      %v895 = vld [vmem:[%s8 + $0x8] sm:$0xf]
      %v896 = vld [vmem:[%s8 + $0xc] sm:$0xf]
      %v897 = vld [vmem:[%s9] sm:$0xf]
      %v898 = vld [vmem:[%s9 + $0x4] sm:$0xf]
      %v899 = vld [vmem:[%s9 + $0x8] sm:$0xf]
      %v900 = vld [vmem:[%s9 + $0xc] sm:$0xf]
      %v901 = vld [vmem:[#allocation4] sm:$0xf]
      %v902 = vld [vmem:[#allocation5] sm:$0xff]
      %v903 = vld [vmem:[#allocation6] sm:$0xf]
      %v904 = vld [vmem:[#allocation7] sm:$0xff]
      %v905 = vld [vmem:[#allocation2] sm:$0xff]
      %v910 = vunpack.c.l.b16 %v893
      %v911 = vunpack.c.l.b16 %v894
      %v912 = vunpack.c.l.b16 %v895
      %v913 = vunpack.c.l.b16 %v896
      %v914 = vpack.c.b16 %v911, %v910
      %v915 = vpack.c.b16 %v913, %v912
      %vm918 = vcmask 261120
      %v920 = vsel %vm918, %v901, 0
      %922 = vmatprep.subr.bf16.mxu0 0
      %923 = vmatpush1.bf16.msra.mxu0 0
      %924 = vmatprep.subr.bf16.mxu0 0
      %925 = vmatpush1.bf16.msra.mxu0 0
      %926 = vmatprep.subr.bf16.mxu0 0
      %927 = vmatpush1.bf16.msra.mxu0 0
      %928 = vmatprep.subr.bf16.mxu0 0
      %929 = vmatpush1.bf16.msra.mxu0 0
      %930 = vmatprep.subr.bf16.mxu0 0
      %931 = vmatpush1.bf16.msra.mxu0 0
      %932 = vmatprep.subr.bf16.mxu0 0
      %933 = vmatpush1.bf16.msra.mxu0 0
      %934 = vmatprep.subr.bf16.mxu0 0
      %935 = vmatpush1.bf16.msra.mxu0 %v915
      %936 = vmatprep.subr.bf16.mxu0 0
      %937 = vmatpush1.bf16.msra.mxu0 %v914
      %938 = vmatprep.subr.bf16.mxu0 0
      %939 = vmatpush2.bf16.msra.mxu0 0
      %940 = vmatprep.subr.bf16.mxu0 0
      %941 = vmatpush2.bf16.msra.mxu0 0
      %942 = vmatprep.subr.bf16.mxu0 0
      %943 = vmatpush2.bf16.msra.mxu0 0
      %944 = vmatprep.subr.bf16.mxu0 0
      %945 = vmatpush2.bf16.msra.mxu0 0
      %946 = vmatprep.subr.bf16.mxu0 0
      %947 = vmatpush2.bf16.msra.mxu0 0
      %948 = vmatprep.subr.bf16.mxu0 0
      %949 = vmatpush2.bf16.msra.mxu0 0
      %950 = vmatprep.subr.bf16.mxu0 0
      %951 = vmatpush2.bf16.msra.mxu0 0
      %952 = vmatprep.subr.bf16.mxu0 0
      %953 = vmatpush2.bf16.msra.mxu0 0
      %954 = vmatprep.mubr.bf16.mxu0 0
      %955 = vmatmul.mubr.bf16.gmra.mxu0 %v920
      %v956 = vpop.f32.mrf.mxu0
      %v957 = vadd.f32 0.0, %v956
      %v958 = vpop.f32.mrf.mxu0
      %v959 = vpop.f32.mrf.mxu0
      %v960 = vpop.f32.mrf.mxu0
      %961 = vdwg.mxu0
      %v962 = vadd.f32 %v905, %v957
      %v963 = vxor.u32 %v962, 2147483648
      %v964 = vmul.f32 %v963, 1.442695
      %v965 = vpow.pop %v964
      %v966 = vadd.f32 %v965, 1.0
      %v967 = vrcp.pop %v966
      %v968 = vmul.f32 1.0, %v967
      %v969 = vtanh.pop %v962
      %971 = vrot.lane.b32.xlu0 %v902, 32
      %v972 = vpop.permute.xlu0 %971
      %v974 = vmul.f32 %v968, %v972
      %976 = vrot.lane.b32.xlu0 %v969, 64
      %v977 = vpop.permute.xlu0 %976
      %v979 = vmul.f32 %v968, %v977
      %981 = vrot.lane.b32.xlu0 %v979, 32
      %v982 = vpop.permute.xlu0 %981
      %v984 = vadd.f32 %v974, %v982
      %v985 = vtanh.pop %v984
      %987 = vrot.lane.b32.xlu0 %v985, 64
      %v988 = vpop.permute.xlu0 %987
      %v990 = vmul.f32 %v968, %v988
      %v991 = vpack.c.bf16 %v990, %v990
      %s992 = scalar_lea.vmem [#allocation3], 24
      %v993 = vld [vmem:[%s992] sm:$0xff]
      %v998 = vunpack.c.l.b16 %v897
      %v999 = vunpack.c.l.b16 %v898
      %v1000 = vunpack.c.l.b16 %v899
      %v1001 = vunpack.c.l.b16 %v900
      %v1002 = vpack.c.b16 %v999, %v998
      %v1003 = vpack.c.b16 %v1001, %v1000
      %v1007 = vsel %vm918, %v903, 0
      %1009 = vmatprep.subr.bf16.mxu0 0
      %1010 = vmatpush1.bf16.msra.mxu0 0
      %1011 = vmatprep.subr.bf16.mxu0 0
      %1012 = vmatpush1.bf16.msra.mxu0 0
      %1013 = vmatprep.subr.bf16.mxu0 0
      %1014 = vmatpush1.bf16.msra.mxu0 0
      %1015 = vmatprep.subr.bf16.mxu0 0
      %1016 = vmatpush1.bf16.msra.mxu0 0
      %1017 = vmatprep.subr.bf16.mxu0 0
      %1018 = vmatpush1.bf16.msra.mxu0 0
      %1019 = vmatprep.subr.bf16.mxu0 0
      %1020 = vmatpush1.bf16.msra.mxu0 0
      %1021 = vmatprep.subr.bf16.mxu0 0
      %1022 = vmatpush1.bf16.msra.mxu0 %v1003
      %1023 = vmatprep.subr.bf16.mxu0 0
      %1024 = vmatpush1.bf16.msra.mxu0 %v1002
      %1025 = vmatprep.subr.bf16.mxu0 0
      %1026 = vmatpush2.bf16.msra.mxu0 0
      %1027 = vmatprep.subr.bf16.mxu0 0
      %1028 = vmatpush2.bf16.msra.mxu0 0
      %1029 = vmatprep.subr.bf16.mxu0 0
      %1030 = vmatpush2.bf16.msra.mxu0 0
      %1031 = vmatprep.subr.bf16.mxu0 0
      %1032 = vmatpush2.bf16.msra.mxu0 0
      %1033 = vmatprep.subr.bf16.mxu0 0
      %1034 = vmatpush2.bf16.msra.mxu0 0
      %1035 = vmatprep.subr.bf16.mxu0 0
      %1036 = vmatpush2.bf16.msra.mxu0 0
      %1037 = vmatprep.subr.bf16.mxu0 0
      %1038 = vmatpush2.bf16.msra.mxu0 0
      %1039 = vmatprep.subr.bf16.mxu0 0
      %1040 = vmatpush2.bf16.msra.mxu0 0
      %1041 = vmatprep.mubr.bf16.mxu0 0
      %1042 = vmatmul.mubr.bf16.gmra.mxu0 %v1007
      %v1043 = vpop.f32.mrf.mxu0
      %v1044 = vadd.f32 0.0, %v1043
      %v1045 = vpop.f32.mrf.mxu0
      %v1046 = vpop.f32.mrf.mxu0
      %v1047 = vpop.f32.mrf.mxu0
      %1048 = vdwg.mxu0
      %v1049 = vadd.f32 %v993, %v1044
      %v1050 = vxor.u32 %v1049, 2147483648
      %v1051 = vmul.f32 %v1050, 1.442695
      %v1052 = vpow.pop %v1051
      %v1053 = vadd.f32 %v1052, 1.0
      %v1054 = vrcp.pop %v1053
      %v1055 = vmul.f32 1.0, %v1054
      %v1056 = vtanh.pop %v1049
      %1058 = vrot.lane.b32.xlu0 %v904, 32
      %v1059 = vpop.permute.xlu0 %1058
      %v1061 = vmul.f32 %v1055, %v1059
      %1063 = vrot.lane.b32.xlu0 %v1056, 64
      %v1064 = vpop.permute.xlu0 %1063
      %v1066 = vmul.f32 %v1055, %v1064
      %1068 = vrot.lane.b32.xlu0 %v1066, 32
      %v1069 = vpop.permute.xlu0 %1068
      %v1071 = vadd.f32 %v1061, %v1069
      %v1072 = vtanh.pop %v1071
      %1074 = vrot.lane.b32.xlu0 %v1072, 64
      %v1075 = vpop.permute.xlu0 %1074
      %v1077 = vmul.f32 %v1055, %v1075
      %v1078 = vpack.c.bf16 %v1077, %v1077
      %v1080 = vunpack.c.l.b16 %v991
      %v1081 = vpack.c.b16 %v1080, %v1080
      %1082 = vrot.lane.b32.xlu0 %v1081, 32
      %v1083 = vpop.permute.xlu0 %1082
      %vm1085 = vcmask 257024
      %1086 = vst.msk [vmem:[%s533] sm:$0xf] %vm1085, %v1083
      %v1088 = vunpack.c.l.b16 %v1078
      %v1089 = vpack.c.b16 %v1088, %v1088
      %1090 = vrot.lane.b32.xlu0 %v1089, 32
      %v1091 = vpop.permute.xlu0 %1090
      %s1093 = scalar_lea.vmem %s540, 12
      %1094 = vst.msk [vmem:[%s1093] sm:$0xf] %vm1085, %v1091
      %s1095 = scalar_lea.vmem [#allocation2], 8
      %v1096 = vld [vmem:[%s1095] sm:$0xff]
      %1097 = vrot.lane.b32.xlu0 %v991, 32
      %v1098 = vpop.permute.xlu0 %1097
      %v1100 = vsel %vm918, %v1098, 0
      %1102 = vmatprep.subr.bf16.mxu0 0
      %1103 = vmatpush1.bf16.msra.mxu0 0
      %1104 = vmatprep.subr.bf16.mxu0 0
      %1105 = vmatpush1.bf16.msra.mxu0 0
      %1106 = vmatprep.subr.bf16.mxu0 0
      %1107 = vmatpush1.bf16.msra.mxu0 0
      %1108 = vmatprep.subr.bf16.mxu0 0
      %1109 = vmatpush1.bf16.msra.mxu0 0
      %1110 = vmatprep.subr.bf16.mxu0 0
      %1111 = vmatpush1.bf16.msra.mxu0 0
      %1112 = vmatprep.subr.bf16.mxu0 0
      %1113 = vmatpush1.bf16.msra.mxu0 0
      %1114 = vmatprep.subr.bf16.mxu0 0
      %1115 = vmatpush1.bf16.msra.mxu0 %v915
      %1116 = vmatprep.subr.bf16.mxu0 0
      %1117 = vmatpush1.bf16.msra.mxu0 %v914
      %1118 = vmatprep.subr.bf16.mxu0 0
      %1119 = vmatpush2.bf16.msra.mxu0 0
      %1120 = vmatprep.subr.bf16.mxu0 0
      %1121 = vmatpush2.bf16.msra.mxu0 0
      %1122 = vmatprep.subr.bf16.mxu0 0
      %1123 = vmatpush2.bf16.msra.mxu0 0
      %1124 = vmatprep.subr.bf16.mxu0 0
      %1125 = vmatpush2.bf16.msra.mxu0 0
      %1126 = vmatprep.subr.bf16.mxu0 0
      %1127 = vmatpush2.bf16.msra.mxu0 0
      %1128 = vmatprep.subr.bf16.mxu0 0
      %1129 = vmatpush2.bf16.msra.mxu0 0
      %1130 = vmatprep.subr.bf16.mxu0 0
      %1131 = vmatpush2.bf16.msra.mxu0 0
      %1132 = vmatprep.subr.bf16.mxu0 0
      %1133 = vmatpush2.bf16.msra.mxu0 0
      %1134 = vmatprep.mubr.bf16.mxu0 0
      %1135 = vmatmul.mubr.bf16.gmra.mxu0 %v1100
      %v1136 = vpop.f32.mrf.mxu0
      %v1137 = vadd.f32 0.0, %v1136
      %v1138 = vpop.f32.mrf.mxu0
      %v1139 = vpop.f32.mrf.mxu0
      %v1140 = vpop.f32.mrf.mxu0
      %1141 = vdwg.mxu0
      %v1142 = vadd.f32 %v1096, %v1137
      %v1143 = vxor.u32 %v1142, 2147483648
      %v1144 = vmul.f32 %v1143, 1.442695
      %v1145 = vpow.pop %v1144
      %v1146 = vadd.f32 %v1145, 1.0
      %v1147 = vrcp.pop %v1146
      %v1148 = vmul.f32 1.0, %v1147
      %v1149 = vtanh.pop %v1142
      %v1150 = vmul.f32 %v1148, %v984
      %1152 = vrot.lane.b32.xlu0 %v1149, 64
      %v1153 = vpop.permute.xlu0 %1152
      %v1155 = vmul.f32 %v1148, %v1153
      %1157 = vrot.lane.b32.xlu0 %v1155, 32
      %v1158 = vpop.permute.xlu0 %1157
      %v1160 = vadd.f32 %v1150, %v1158
      %v1161 = vtanh.pop %v1160
      %1163 = vrot.lane.b32.xlu0 %v1161, 64
      %v1164 = vpop.permute.xlu0 %1163
      %v1166 = vmul.f32 %v1148, %v1164
      %v1167 = vpack.c.bf16 %v1166, %v1166
      %s1168 = scalar_lea.vmem [#allocation3], 16
      %v1169 = vld [vmem:[%s1168] sm:$0xff]
      %1170 = vrot.lane.b32.xlu0 %v1078, 32
      %v1171 = vpop.permute.xlu0 %1170
      %v1173 = vsel %vm918, %v1171, 0
      %1175 = vmatprep.subr.bf16.mxu0 0
      %1176 = vmatpush1.bf16.msra.mxu0 0
      %1177 = vmatprep.subr.bf16.mxu0 0
      %1178 = vmatpush1.bf16.msra.mxu0 0
      %1179 = vmatprep.subr.bf16.mxu0 0
      %1180 = vmatpush1.bf16.msra.mxu0 0
      %1181 = vmatprep.subr.bf16.mxu0 0
      %1182 = vmatpush1.bf16.msra.mxu0 0
      %1183 = vmatprep.subr.bf16.mxu0 0
      %1184 = vmatpush1.bf16.msra.mxu0 0
      %1185 = vmatprep.subr.bf16.mxu0 0
      %1186 = vmatpush1.bf16.msra.mxu0 0
      %1187 = vmatprep.subr.bf16.mxu0 0
      %1188 = vmatpush1.bf16.msra.mxu0 %v1003
      %1189 = vmatprep.subr.bf16.mxu0 0
      %1190 = vmatpush1.bf16.msra.mxu0 %v1002
      %1191 = vmatprep.subr.bf16.mxu0 0
      %1192 = vmatpush2.bf16.msra.mxu0 0
      %1193 = vmatprep.subr.bf16.mxu0 0
      %1194 = vmatpush2.bf16.msra.mxu0 0
      %1195 = vmatprep.subr.bf16.mxu0 0
      %1196 = vmatpush2.bf16.msra.mxu0 0
      %1197 = vmatprep.subr.bf16.mxu0 0
      %1198 = vmatpush2.bf16.msra.mxu0 0
      %1199 = vmatprep.subr.bf16.mxu0 0
      %1200 = vmatpush2.bf16.msra.mxu0 0
      %1201 = vmatprep.subr.bf16.mxu0 0
      %1202 = vmatpush2.bf16.msra.mxu0 0
      %1203 = vmatprep.subr.bf16.mxu0 0
      %1204 = vmatpush2.bf16.msra.mxu0 0
      %1205 = vmatprep.subr.bf16.mxu0 0
      %1206 = vmatpush2.bf16.msra.mxu0 0
      %1207 = vmatprep.mubr.bf16.mxu0 0
      %1208 = vmatmul.mubr.bf16.gmra.mxu0 %v1173
      %v1209 = vpop.f32.mrf.mxu0
      %v1210 = vadd.f32 0.0, %v1209
      %v1211 = vpop.f32.mrf.mxu0
      %v1212 = vpop.f32.mrf.mxu0
      %v1213 = vpop.f32.mrf.mxu0
      %1214 = vdwg.mxu0
      %v1215 = vadd.f32 %v1169, %v1210
      %v1216 = vxor.u32 %v1215, 2147483648
      %v1217 = vmul.f32 %v1216, 1.442695
      %v1218 = vpow.pop %v1217
      %v1219 = vadd.f32 %v1218, 1.0
      %v1220 = vrcp.pop %v1219
      %v1221 = vmul.f32 1.0, %v1220
      %v1222 = vtanh.pop %v1215
      %v1223 = vmul.f32 %v1221, %v1071
      %1225 = vrot.lane.b32.xlu0 %v1222, 64
      %v1226 = vpop.permute.xlu0 %1225
      %v1228 = vmul.f32 %v1221, %v1226
      %1230 = vrot.lane.b32.xlu0 %v1228, 32
      %v1231 = vpop.permute.xlu0 %1230
      %v1233 = vadd.f32 %v1223, %v1231
      %v1234 = vtanh.pop %v1233
      %1236 = vrot.lane.b32.xlu0 %v1234, 64
      %v1237 = vpop.permute.xlu0 %1236
      %v1239 = vmul.f32 %v1221, %v1237
      %v1240 = vpack.c.bf16 %v1239, %v1239
      %v1242 = vunpack.c.l.b16 %v1167
      %v1243 = vpack.c.b16 %v1242, %v1242
      %1244 = vrot.lane.b32.xlu0 %v1243, 32
      %v1245 = vpop.permute.xlu0 %1244
      %s1247 = scalar_lea.vmem %s533, 4
      %1248 = vst.msk [vmem:[%s1247] sm:$0xf] %vm1085, %v1245
      %v1250 = vunpack.c.l.b16 %v1240
      %v1251 = vpack.c.b16 %v1250, %v1250
      %1252 = vrot.lane.b32.xlu0 %v1251, 32
      %v1253 = vpop.permute.xlu0 %1252
      %s1255 = scalar_lea.vmem %s540, 8
      %1256 = vst.msk [vmem:[%s1255] sm:$0xf] %vm1085, %v1253
      %s1257 = scalar_lea.vmem [#allocation2], 16
      %v1258 = vld [vmem:[%s1257] sm:$0xff]
      %1259 = vrot.lane.b32.xlu0 %v1167, 32
      %v1260 = vpop.permute.xlu0 %1259
      %v1262 = vsel %vm918, %v1260, 0
      %1264 = vmatprep.subr.bf16.mxu0 0
      %1265 = vmatpush1.bf16.msra.mxu0 0
      %1266 = vmatprep.subr.bf16.mxu0 0
      %1267 = vmatpush1.bf16.msra.mxu0 0
      %1268 = vmatprep.subr.bf16.mxu0 0
      %1269 = vmatpush1.bf16.msra.mxu0 0
      %1270 = vmatprep.subr.bf16.mxu0 0
      %1271 = vmatpush1.bf16.msra.mxu0 0
      %1272 = vmatprep.subr.bf16.mxu0 0
      %1273 = vmatpush1.bf16.msra.mxu0 0
      %1274 = vmatprep.subr.bf16.mxu0 0
      %1275 = vmatpush1.bf16.msra.mxu0 0
      %1276 = vmatprep.subr.bf16.mxu0 0
      %1277 = vmatpush1.bf16.msra.mxu0 %v915
      %1278 = vmatprep.subr.bf16.mxu0 0
      %1279 = vmatpush1.bf16.msra.mxu0 %v914
      %1280 = vmatprep.subr.bf16.mxu0 0
      %1281 = vmatpush2.bf16.msra.mxu0 0
      %1282 = vmatprep.subr.bf16.mxu0 0
      %1283 = vmatpush2.bf16.msra.mxu0 0
      %1284 = vmatprep.subr.bf16.mxu0 0
      %1285 = vmatpush2.bf16.msra.mxu0 0
      %1286 = vmatprep.subr.bf16.mxu0 0
      %1287 = vmatpush2.bf16.msra.mxu0 0
      %1288 = vmatprep.subr.bf16.mxu0 0
      %1289 = vmatpush2.bf16.msra.mxu0 0
      %1290 = vmatprep.subr.bf16.mxu0 0
      %1291 = vmatpush2.bf16.msra.mxu0 0
      %1292 = vmatprep.subr.bf16.mxu0 0
      %1293 = vmatpush2.bf16.msra.mxu0 0
      %1294 = vmatprep.subr.bf16.mxu0 0
      %1295 = vmatpush2.bf16.msra.mxu0 0
      %1296 = vmatprep.mubr.bf16.mxu0 0
      %1297 = vmatmul.mubr.bf16.gmra.mxu0 %v1262
      %v1298 = vpop.f32.mrf.mxu0
      %v1299 = vadd.f32 0.0, %v1298
      %v1300 = vpop.f32.mrf.mxu0
      %v1301 = vpop.f32.mrf.mxu0
      %v1302 = vpop.f32.mrf.mxu0
      %1303 = vdwg.mxu0
      %v1304 = vadd.f32 %v1258, %v1299
      %v1305 = vxor.u32 %v1304, 2147483648
      %v1306 = vmul.f32 %v1305, 1.442695
      %v1307 = vpow.pop %v1306
      %v1308 = vadd.f32 %v1307, 1.0
      %v1309 = vrcp.pop %v1308
      %v1310 = vmul.f32 1.0, %v1309
      %v1311 = vtanh.pop %v1304
      %v1312 = vmul.f32 %v1310, %v1160
      %1314 = vrot.lane.b32.xlu0 %v1311, 64
      %v1315 = vpop.permute.xlu0 %1314
      %v1317 = vmul.f32 %v1310, %v1315
      %1319 = vrot.lane.b32.xlu0 %v1317, 32
      %v1320 = vpop.permute.xlu0 %1319
      %v1322 = vadd.f32 %v1312, %v1320
      %v1323 = vtanh.pop %v1322
      %1325 = vrot.lane.b32.xlu0 %v1323, 64
      %v1326 = vpop.permute.xlu0 %1325
      %v1328 = vmul.f32 %v1310, %v1326
      %v1329 = vpack.c.bf16 %v1328, %v1328
      %s1330 = scalar_lea.vmem [#allocation3], 8
      %v1331 = vld [vmem:[%s1330] sm:$0xff]
      %1332 = vrot.lane.b32.xlu0 %v1240, 32
      %v1333 = vpop.permute.xlu0 %1332
      %v1335 = vsel %vm918, %v1333, 0
      %1337 = vmatprep.subr.bf16.mxu0 0
      %1338 = vmatpush1.bf16.msra.mxu0 0
      %1339 = vmatprep.subr.bf16.mxu0 0
      %1340 = vmatpush1.bf16.msra.mxu0 0
      %1341 = vmatprep.subr.bf16.mxu0 0
      %1342 = vmatpush1.bf16.msra.mxu0 0
      %1343 = vmatprep.subr.bf16.mxu0 0
      %1344 = vmatpush1.bf16.msra.mxu0 0
      %1345 = vmatprep.subr.bf16.mxu0 0
      %1346 = vmatpush1.bf16.msra.mxu0 0
      %1347 = vmatprep.subr.bf16.mxu0 0
      %1348 = vmatpush1.bf16.msra.mxu0 0
      %1349 = vmatprep.subr.bf16.mxu0 0
      %1350 = vmatpush1.bf16.msra.mxu0 %v1003
      %1351 = vmatprep.subr.bf16.mxu0 0
      %1352 = vmatpush1.bf16.msra.mxu0 %v1002
      %1353 = vmatprep.subr.bf16.mxu0 0
      %1354 = vmatpush2.bf16.msra.mxu0 0
      %1355 = vmatprep.subr.bf16.mxu0 0
      %1356 = vmatpush2.bf16.msra.mxu0 0
      %1357 = vmatprep.subr.bf16.mxu0 0
      %1358 = vmatpush2.bf16.msra.mxu0 0
      %1359 = vmatprep.subr.bf16.mxu0 0
      %1360 = vmatpush2.bf16.msra.mxu0 0
      %1361 = vmatprep.subr.bf16.mxu0 0
      %1362 = vmatpush2.bf16.msra.mxu0 0
      %1363 = vmatprep.subr.bf16.mxu0 0
      %1364 = vmatpush2.bf16.msra.mxu0 0
      %1365 = vmatprep.subr.bf16.mxu0 0
      %1366 = vmatpush2.bf16.msra.mxu0 0
      %1367 = vmatprep.subr.bf16.mxu0 0
      %1368 = vmatpush2.bf16.msra.mxu0 0
      %1369 = vmatprep.mubr.bf16.mxu0 0
      %1370 = vmatmul.mubr.bf16.gmra.mxu0 %v1335
      %v1371 = vpop.f32.mrf.mxu0
      %v1372 = vadd.f32 0.0, %v1371
      %v1373 = vpop.f32.mrf.mxu0
      %v1374 = vpop.f32.mrf.mxu0
      %v1375 = vpop.f32.mrf.mxu0
      %1376 = vdwg.mxu0
      %v1377 = vadd.f32 %v1331, %v1372
      %v1378 = vxor.u32 %v1377, 2147483648
      %v1379 = vmul.f32 %v1378, 1.442695
      %v1380 = vpow.pop %v1379
      %v1381 = vadd.f32 %v1380, 1.0
      %v1382 = vrcp.pop %v1381
      %v1383 = vmul.f32 1.0, %v1382
      %v1384 = vtanh.pop %v1377
      %v1385 = vmul.f32 %v1383, %v1233
      %1387 = vrot.lane.b32.xlu0 %v1384, 64
      %v1388 = vpop.permute.xlu0 %1387
      %v1390 = vmul.f32 %v1383, %v1388
      %1392 = vrot.lane.b32.xlu0 %v1390, 32
      %v1393 = vpop.permute.xlu0 %1392
      %v1395 = vadd.f32 %v1385, %v1393
      %v1396 = vtanh.pop %v1395
      %1398 = vrot.lane.b32.xlu0 %v1396, 64
      %v1399 = vpop.permute.xlu0 %1398
      %v1401 = vmul.f32 %v1383, %v1399
      %v1402 = vpack.c.bf16 %v1401, %v1401
      %v1404 = vunpack.c.l.b16 %v1329
      %v1405 = vpack.c.b16 %v1404, %v1404
      %1406 = vrot.lane.b32.xlu0 %v1405, 32
      %v1407 = vpop.permute.xlu0 %1406
      %s1409 = scalar_lea.vmem %s533, 8
      %1410 = vst.msk [vmem:[%s1409] sm:$0xf] %vm1085, %v1407
      %v1412 = vunpack.c.l.b16 %v1402
      %v1413 = vpack.c.b16 %v1412, %v1412
      %1414 = vrot.lane.b32.xlu0 %v1413, 32
      %v1415 = vpop.permute.xlu0 %1414
      %s1417 = scalar_lea.vmem %s540, 4
      %1418 = vst.msk [vmem:[%s1417] sm:$0xf] %vm1085, %v1415
      %s1419 = scalar_lea.vmem [#allocation2], 24
      %v1420 = vld [vmem:[%s1419] sm:$0xff]
      %1421 = vrot.lane.b32.xlu0 %v1329, 32
      %v1422 = vpop.permute.xlu0 %1421
      %v1424 = vsel %vm918, %v1422, 0
      %1426 = vmatprep.subr.bf16.mxu0 0
      %1427 = vmatpush1.bf16.msra.mxu0 0
      %1428 = vmatprep.subr.bf16.mxu0 0
      %1429 = vmatpush1.bf16.msra.mxu0 0
      %1430 = vmatprep.subr.bf16.mxu0 0
      %1431 = vmatpush1.bf16.msra.mxu0 0
      %1432 = vmatprep.subr.bf16.mxu0 0
      %1433 = vmatpush1.bf16.msra.mxu0 0
      %1434 = vmatprep.subr.bf16.mxu0 0
      %1435 = vmatpush1.bf16.msra.mxu0 0
      %1436 = vmatprep.subr.bf16.mxu0 0
      %1437 = vmatpush1.bf16.msra.mxu0 0
      %1438 = vmatprep.subr.bf16.mxu0 0
      %1439 = vmatpush1.bf16.msra.mxu0 %v915
      %1440 = vmatprep.subr.bf16.mxu0 0
      %1441 = vmatpush1.bf16.msra.mxu0 %v914
      %1442 = vmatprep.subr.bf16.mxu0 0
      %1443 = vmatpush2.bf16.msra.mxu0 0
      %1444 = vmatprep.subr.bf16.mxu0 0
      %1445 = vmatpush2.bf16.msra.mxu0 0
      %1446 = vmatprep.subr.bf16.mxu0 0
      %1447 = vmatpush2.bf16.msra.mxu0 0
      %1448 = vmatprep.subr.bf16.mxu0 0
      %1449 = vmatpush2.bf16.msra.mxu0 0
      %1450 = vmatprep.subr.bf16.mxu0 0
      %1451 = vmatpush2.bf16.msra.mxu0 0
      %1452 = vmatprep.subr.bf16.mxu0 0
      %1453 = vmatpush2.bf16.msra.mxu0 0
      %1454 = vmatprep.subr.bf16.mxu0 0
      %1455 = vmatpush2.bf16.msra.mxu0 0
      %1456 = vmatprep.subr.bf16.mxu0 0
      %1457 = vmatpush2.bf16.msra.mxu0 0
      %1458 = vmatprep.mubr.bf16.mxu0 0
      %1459 = vmatmul.mubr.bf16.gmra.mxu0 %v1424
      %v1460 = vpop.f32.mrf.mxu0
      %v1461 = vadd.f32 0.0, %v1460
      %v1462 = vpop.f32.mrf.mxu0
      %v1463 = vpop.f32.mrf.mxu0
      %v1464 = vpop.f32.mrf.mxu0
      %1465 = vdwg.mxu0
      %v1466 = vadd.f32 %v1420, %v1461
      %v1467 = vxor.u32 %v1466, 2147483648
      %v1468 = vmul.f32 %v1467, 1.442695
      %v1469 = vpow.pop %v1468
      %v1470 = vadd.f32 %v1469, 1.0
      %v1471 = vrcp.pop %v1470
      %v1472 = vmul.f32 1.0, %v1471
      %v1473 = vtanh.pop %v1466
      %v1474 = vmul.f32 %v1472, %v1322
      %1476 = vrot.lane.b32.xlu0 %v1473, 64
      %v1477 = vpop.permute.xlu0 %1476
      %v1479 = vmul.f32 %v1472, %v1477
      %1481 = vrot.lane.b32.xlu0 %v1479, 32
      %v1482 = vpop.permute.xlu0 %1481
      %v1484 = vadd.f32 %v1474, %v1482
      %v1485 = vtanh.pop %v1484
      %1487 = vrot.lane.b32.xlu0 %v1485, 64
      %v1488 = vpop.permute.xlu0 %1487
      %v1490 = vmul.f32 %v1472, %v1488
      %v1491 = vpack.c.bf16 %v1490, %v1490
      %v1492 = vld [vmem:[#allocation3] sm:$0xff]
      %1493 = vrot.lane.b32.xlu0 %v1402, 32
      %v1494 = vpop.permute.xlu0 %1493
      %v1496 = vsel %vm918, %v1494, 0
      %1498 = vmatprep.subr.bf16.mxu0 0
      %1499 = vmatpush1.bf16.msra.mxu0 0
      %1500 = vmatprep.subr.bf16.mxu0 0
      %1501 = vmatpush1.bf16.msra.mxu0 0
      %1502 = vmatprep.subr.bf16.mxu0 0
      %1503 = vmatpush1.bf16.msra.mxu0 0
      %1504 = vmatprep.subr.bf16.mxu0 0
      %1505 = vmatpush1.bf16.msra.mxu0 0
      %1506 = vmatprep.subr.bf16.mxu0 0
      %1507 = vmatpush1.bf16.msra.mxu0 0
      %1508 = vmatprep.subr.bf16.mxu0 0
      %1509 = vmatpush1.bf16.msra.mxu0 0
      %1510 = vmatprep.subr.bf16.mxu0 0
      %1511 = vmatpush1.bf16.msra.mxu0 %v1003
      %1512 = vmatprep.subr.bf16.mxu0 0
      %1513 = vmatpush1.bf16.msra.mxu0 %v1002
      %1514 = vmatprep.subr.bf16.mxu0 0
      %1515 = vmatpush2.bf16.msra.mxu0 0
      %1516 = vmatprep.subr.bf16.mxu0 0
      %1517 = vmatpush2.bf16.msra.mxu0 0
      %1518 = vmatprep.subr.bf16.mxu0 0
      %1519 = vmatpush2.bf16.msra.mxu0 0
      %1520 = vmatprep.subr.bf16.mxu0 0
      %1521 = vmatpush2.bf16.msra.mxu0 0
      %1522 = vmatprep.subr.bf16.mxu0 0
      %1523 = vmatpush2.bf16.msra.mxu0 0
      %1524 = vmatprep.subr.bf16.mxu0 0
      %1525 = vmatpush2.bf16.msra.mxu0 0
      %1526 = vmatprep.subr.bf16.mxu0 0
      %1527 = vmatpush2.bf16.msra.mxu0 0
      %1528 = vmatprep.subr.bf16.mxu0 0
      %1529 = vmatpush2.bf16.msra.mxu0 0
      %1530 = vmatprep.mubr.bf16.mxu0 0
      %1531 = vmatmul.mubr.bf16.gmra.mxu0 %v1496
      %v1532 = vpop.f32.mrf.mxu0
      %v1533 = vadd.f32 0.0, %v1532
      %v1534 = vpop.f32.mrf.mxu0
      %v1535 = vpop.f32.mrf.mxu0
      %v1536 = vpop.f32.mrf.mxu0
      %1537 = vdwg.mxu0
      %v1538 = vadd.f32 %v1492, %v1533
      %v1539 = vxor.u32 %v1538, 2147483648
      %v1540 = vmul.f32 %v1539, 1.442695
      %v1541 = vpow.pop %v1540
      %v1542 = vadd.f32 %v1541, 1.0
      %v1543 = vrcp.pop %v1542
      %v1544 = vmul.f32 1.0, %v1543
      %v1545 = vtanh.pop %v1538
      %v1546 = vmul.f32 %v1544, %v1395
      %1548 = vrot.lane.b32.xlu0 %v1545, 64
      %v1549 = vpop.permute.xlu0 %1548
      %v1551 = vmul.f32 %v1544, %v1549
      %1553 = vrot.lane.b32.xlu0 %v1551, 32
      %v1554 = vpop.permute.xlu0 %1553
      %v1556 = vadd.f32 %v1546, %v1554
      %v1557 = vtanh.pop %v1556
      %1559 = vrot.lane.b32.xlu0 %v1557, 64
      %v1560 = vpop.permute.xlu0 %1559
      %v1562 = vmul.f32 %v1544, %v1560
      %v1563 = vpack.c.bf16 %v1562, %v1562
      %v1565 = vunpack.c.l.b16 %v1491
      %v1566 = vpack.c.b16 %v1565, %v1565
      %1567 = vrot.lane.b32.xlu0 %v1566, 32
      %v1568 = vpop.permute.xlu0 %1567
      %s1570 = scalar_lea.vmem %s533, 12
      %1571 = vst.msk [vmem:[%s1570] sm:$0xf] %vm1085, %v1568
      %v1573 = vunpack.c.l.b16 %v1563
      %v1574 = vpack.c.b16 %v1573, %v1573
      %1575 = vrot.lane.b32.xlu0 %v1574, 32
      %v1576 = vpop.permute.xlu0 %1575
      %1578 = vst.msk [vmem:[%s540] sm:$0xf] %vm1085, %v1576
      %1579 = vst.msk [vmem:[#allocation4] sm:$0xf] %vm1085, %v1568
      %1581 = vrot.lane.b32.xlu0 %v1484, 96
      %v1582 = vpop.permute.xlu0 %1581
      %1584 = vst.msk [vmem:[#allocation5] sm:$0xff] %vm918, %v1582
      %1585 = vst.msk [vmem:[#allocation6] sm:$0xf] %vm1085, %v1576
      %1587 = vrot.lane.b32.xlu0 %v1556, 96
      %v1588 = vpop.permute.xlu0 %1587
      %1590 = vst.msk [vmem:[#allocation7] sm:$0xff] %vm918, %v1588
      %s1591 = smul.u32 4, %s25
      %p1592 = scmp.lt.s32.totalorder %s1591, 7
      %s1593 = scalar_select %p1592, %s1591, 7
      %s1594 = smul.addr %s1593, 4
      %s1595 = scalar_lea.vmem %s12, %s1594
      %s1596 = ssub.s32 1, %s25
      %s1597 = smul.u32 4, %s1596
      %p1598 = scmp.lt.s32.totalorder %s1597, 7
      %s1599 = scalar_select %p1598, %s1597, 7
      %s1600 = smul.addr %s1599, 4
      %s1601 = scalar_lea.vmem %s13, %s1600
      // Predicated region
      $region73: #{vae_encoder_forward.2} parent=67 // pred_check
        %p1602 = pneg %p319
      $region74: #{vae_encoder_forward.2} parent=67 // pred_check_branch
        %1604 = sbr.rel (%p1602) target = $region76
      $region75: #{vae_encoder_forward.2} parent=67 // pred_region
        %s1605 = smul.u32 4, %s25
      $region76: #{vae_encoder_forward.2} parent=67 // pred_fallthru
        _
      // Predicated region
      $region77: #{vae_encoder_forward.2} parent=67 // pred_check
        %p1606 = pneg %p347
      $region78: #{vae_encoder_forward.2} parent=67 // pred_check_branch
        %1608 = sbr.rel (%p1606) target = $region80
      $region79: #{vae_encoder_forward.2} parent=67 // pred_region
        %s1609 = ssub.s32 1, %s25
        %s1610 = smul.u32 4, %s1609
      $region80: #{vae_encoder_forward.2} parent=67 // pred_fallthru
        _
    $region68: #{vae_encoder_forward.2} parent=5 // pred_fallthru
      _
    %p1611 = scmp.le.s32.totalorder 2, %s20
    // Predicated region
    $region81: #{vae_encoder_forward.2} parent=5 // pred_check
      %p1612 = pneg %p1611
    $region82: #{vae_encoder_forward.2} parent=5 // pred_check_branch
      %1614 = sbr.rel (%p1612) target = $region84
    $region83: #{vae_encoder_forward.2} parent=5 // pred_region
      %s1615 = ssub.s32 %s20, 2
      // Predicated region
      $region85: #{vae_encoder_forward.2} parent=83 // pred_check
        %p1616 = pneg %p325
      $region86: #{vae_encoder_forward.2} parent=83 // pred_check_branch
        %1618 = sbr.rel (%p1616) target = $region88
      $region87: #{vae_encoder_forward.2} parent=83 // pred_region
        %s1619 = smul.u32 4, %s26
        %p1620 = scmp.lt.s32.totalorder %s1619, 7
        %s1621 = scalar_select %p1620, %s1619, 7
        %s1622 = smul.addr %s1621, 4
        %s1623 = scalar_lea.vmem %s12, %s1622
      $region88: #{vae_encoder_forward.2} parent=83 // pred_fallthru
        _
      // Predicated region
      $region89: #{vae_encoder_forward.2} parent=83 // pred_check
        %p1624 = pneg %p353
      $region90: #{vae_encoder_forward.2} parent=83 // pred_check_branch
        %1626 = sbr.rel (%p1624) target = $region92
      $region91: #{vae_encoder_forward.2} parent=83 // pred_region
        %s1627 = ssub.s32 1, %s26
        %s1628 = smul.u32 4, %s1627
        %p1629 = scmp.lt.s32.totalorder %s1628, 7
        %s1630 = scalar_select %p1629, %s1628, 7
        %s1631 = smul.addr %s1630, 4
        %s1632 = scalar_lea.vmem %s13, %s1631
      $region92: #{vae_encoder_forward.2} parent=83 // pred_fallthru
        _
    $region84: #{vae_encoder_forward.2} parent=5 // pred_fallthru
      _
  $region6: #{vae_encoder_forward.2} parent=0 // loop_footer
    %s24 = sadd.s32 1, %s20
  $region7: #{vae_encoder_forward.2} parent=0 // loop_footer_branch
    %19 = sbr.rel target = $region3
  $region8: #{vae_encoder_forward.2} parent=0 // loop_exit
    _

</llo_original>
